<compile_context>
chip_gen: v7x
topology: tpu7x:2x2x1
jax: 0.10.0
libtpu: 0.0.40
codegen_flags: <defaults>
</compile_context>

<pallas_src>
import functools

import jax
import jax.numpy as jnp
from jax.experimental import pallas as pl
from jax.experimental.pallas import tpu as pltpu

KSIZE = 7
PAD = (KSIZE - 1) // 2  # 3


def _spatial_gate_kernel(w_ref, b_ref, col_ref, x_ref, o_ref, pad_ref,
                         *, nb, C, H, W, base):
    """One block of `nb` batch elements, fully in the flattened (lane-dense) domain.

    w_ref   : SMEM f32[2*7*7]       BN-folded conv weights, index c*49 + ki*7 + kj
    b_ref   : SMEM f32[1]           BN-folded bias
    col_ref : VMEM i32[1, H*W]      col_ref[0, p] = p % W  (precomputed in wrapper)
    x_ref   : VMEM f32[nb, C, H*W]  input block (lane-dense)
    o_ref   : VMEM f32[nb, C, H*W]  output block (lane-dense)
    pad_ref : VMEM f32[2, nb, L]    flat, row-padded pooled maps; interior starts at `base`
    """
    HW = H * W
    L = pad_ref.shape[-1]

    # ---- single pass over x: channel max + channel sum from one load -------------------
    x = x_ref[...]                                  # (nb, C, HW)
    xf = x.astype(jnp.float32)                      # f32 accumulation even for bf16 inputs
    cmax = jnp.max(xf, axis=1)                      # (nb, HW)
    cmean = jnp.sum(xf, axis=1) * (1.0 / C)         # (nb, HW)

    # ---- fill the flat padded scratch ---------------------------------------------------
    # Only the small borders are zeroed (interior is fully rewritten every step); this is
    # megacore-safe (no state carried across grid steps) and avoids a full scratch clear.
    pad_ref[:, :, 0:base] = jnp.zeros((2, nb, base), jnp.float32)
    pad_ref[:, :, base + HW:L] = jnp.zeros((2, nb, L - base - HW), jnp.float32)
    pad_ref[0, :, base:base + HW] = cmax            # channel 0 of ChannelPool = max
    pad_ref[1, :, base:base + HW] = cmean           # channel 1 of ChannelPool = mean

    # ---- column-validity masks (one comparison per horizontal offset) -------------------
    col = col_ref[...]                              # (1, HW) int32, col[p] = p % W
    col_masks = {0: None}
    for dj in range(1, PAD + 1):
        col_masks[dj] = col < (W - dj)              # j + dj <  W
        col_masks[-dj] = col >= dj                  # j + dj >= 0

    # ---- 7x7 conv (2 -> 1 channels, stride 1, pad 3) over the flattened maps ------------
    # Tap (c, ki, kj): out[p] += w * pooled_c[i+di, j+dj], di=ki-3, dj=kj-3, p=i*W+j.
    # In the flat row-padded buffer this is one contiguous slice at offset base+di*W+dj;
    # row under/overflow lands in the zero borders, column wrap is killed by the mask.
    acc = jnp.zeros((nb, HW), jnp.float32)
    for c in range(2):
        for ki in range(KSIZE):
            di = ki - PAD
            for kj in range(KSIZE):
                dj = kj - PAD
                wv = w_ref[c * KSIZE * KSIZE + ki * KSIZE + kj]   # scalar from SMEM
                s0 = base + di * W + dj
                tap = pad_ref[c, :, s0:s0 + HW]                   # (nb, HW) flat slice
                mask = col_masks[dj]
                if mask is not None:
                    tap = jnp.where(mask, tap, 0.0)
                acc = acc + wv * tap

    scale = jax.nn.sigmoid(acc + b_ref[0])          # folded BN bias, then sigmoid
    o_ref[...] = (xf * scale[:, None, :]).astype(o_ref.dtype)


def spatial_gate(x, conv_w, bn_gamma, bn_beta, bn_mean, bn_var, eps=1e-5,
                 batch_block=None):
    """x: f32[N, C, H, W]; conv_w: f32[1, 2, 7, 7]; bn_*: f32[1]."""
    N, C, H, W = x.shape
    HW = H * W

    # Fold BatchNorm (inference / running-stats mode) into conv weight + bias.
    a = bn_gamma / jnp.sqrt(bn_var + eps)                            # (1,)
    w_folded = (conv_w[0] * a[0]).reshape(-1).astype(jnp.float32)    # (2*7*7,)
    bias = (bn_beta - bn_mean * a).astype(jnp.float32)               # (1,)

    # Lane-dense layout for the heavy elementwise traffic (wrapper-side reshape is free
    # for contiguous NCHW), plus the precomputed column-index vector for the conv masks.
    x_flat = x.reshape(N, C, HW)
    col_idx = (jnp.arange(HW, dtype=jnp.int32) % W).reshape(1, HW)

    # Batch-block size: as many batch elements per grid step as fit a conservative VMEM
    # budget (keeps in+out double-buffered blocks well under v5e's 16 MiB default scoped
    # limit and v7x's 64 MiB physical VMEM) while amortizing per-step overhead.
    if batch_block is None:
        bytes_per_batch = C * HW * x.dtype.itemsize
        nb = max(1, min(N, (3 * 1024 * 1024) // max(1, bytes_per_batch)))
        while N % nb:
            nb -= 1
    else:
        nb = batch_block
    grid = (N // nb,)

    # Flat row-padded scratch: interior of length HW starts at `base` (128-aligned so the
    # pooled-map store is an unmasked aligned store); borders hold the conv zero padding.
    base = -(-(PAD * W + PAD) // 128) * 128
    L = base + HW + PAD * W + PAD

    block_bytes = nb * C * HW * x.dtype.itemsize
    vmem_limit = max(32 * 1024 * 1024, 4 * block_bytes + 2 * 1024 * 1024)

    kernel = functools.partial(_spatial_gate_kernel, nb=nb, C=C, H=H, W=W, base=base)

    out_flat = pl.pallas_call(
        kernel,
        out_shape=jax.ShapeDtypeStruct((N, C, HW), x.dtype),
        grid=grid,
        in_specs=[
            pl.BlockSpec(memory_space=pltpu.MemorySpace.SMEM),   # folded conv weights
            pl.BlockSpec(memory_space=pltpu.MemorySpace.SMEM),   # folded BN bias
            pl.BlockSpec((1, HW), lambda i: (0, 0)),             # col index (resident)
            pl.BlockSpec((nb, C, HW), lambda i: (i, 0, 0)),      # x (lane-dense)
        ],
        out_specs=pl.BlockSpec((nb, C, HW), lambda i: (i, 0, 0)),
        scratch_shapes=[pltpu.VMEM((2, nb, L), jnp.float32)],
        compiler_params=pltpu.CompilerParams(
            dimension_semantics=("parallel",),      # batch steps independent (v7x 2 TCs)
            vmem_limit_bytes=vmem_limit,
        ),
    )(w_folded, bias, col_idx, x_flat)

    return out_flat.reshape(N, C, H, W)


def spatial_gate_reference(x, conv_w, bn_gamma, bn_beta, bn_mean, bn_var, eps=1e-5):
    """Pure-JAX reference matching the PyTorch forward (BN in eval mode)."""
    cmax = jnp.max(x, axis=1, keepdims=True)
    cmean = jnp.mean(x, axis=1, keepdims=True)
    comp = jnp.concatenate([cmax, cmean], axis=1)              # (N, 2, H, W)
    y = jax.lax.conv_general_dilated(
        comp, conv_w, window_strides=(1, 1),
        padding=[(PAD, PAD), (PAD, PAD)],
        dimension_numbers=("NCHW", "OIHW", "NCHW"))
    g = bn_gamma.reshape(1, -1, 1, 1)
    b = bn_beta.reshape(1, -1, 1, 1)
    m = bn_mean.reshape(1, -1, 1, 1)
    v = bn_var.reshape(1, -1, 1, 1)
    y = (y - m) / jnp.sqrt(v + eps) * g + b
    return x * jax.nn.sigmoid(y)


if __name__ == "__main__":
    key = jax.random.PRNGKey(0)
    kx, kw = jax.random.split(key)

    N, C, H, W = 2, 4, 16, 16
    x = jax.random.normal(kx, (N, C, H, W), dtype=jnp.float32)

    # Conv2d(2, 1, kernel_size=7, padding=3, bias=False) -> weight (1, 2, 7, 7)
    conv_w = 0.1 * jax.random.normal(kw, (1, 2, KSIZE, KSIZE), dtype=jnp.float32)
    # BatchNorm2d(1): PyTorch defaults gamma=1, beta=0, running_mean=0, running_var=1
    bn_gamma = jnp.ones((1,), jnp.float32)
    bn_beta = jnp.zeros((1,), jnp.float32)
    bn_mean = jnp.zeros((1,), jnp.float32)
    bn_var = jnp.ones((1,), jnp.float32)

    out = spatial_gate(x, conv_w, bn_gamma, bn_beta, bn_mean, bn_var)
    out = jax.block_until_ready(out)

    ref = spatial_gate_reference(x, conv_w, bn_gamma, bn_beta, bn_mean, bn_var)
    assert out.shape == x.shape and out.dtype == x.dtype
    assert jnp.max(jnp.abs(out - ref)) < 1e-4, "mismatch vs JAX reference"

    print("KERNEL_OK")
</pallas_src>

<mosaic_0001>
module attributes {stable_mosaic.version = 11 : i64} {
  func.func @_spatial_gate_kernel(%arg0: i32, %arg1: memref<98xf32, #tpu.memory_space<smem>>, %arg2: memref<1xf32, #tpu.memory_space<smem>>, %arg3: memref<1x256xi32, #tpu.memory_space<vmem>>, %arg4: memref<2x4x256xf32, #tpu.memory_space<vmem>>, %arg5: memref<2x4x256xf32, #tpu.memory_space<vmem>>, %arg6: memref<2x2x435xf32, #tpu.memory_space<vmem>>) attributes {dimension_semantics = [#tpu.dimension_semantics<parallel>], iteration_bounds = array<i64: 1>, scalar_prefetch = 0 : i64, scratch_operands = 1 : i64, tpu.core_type = #tpu.core_type<tc>, window_params = [{transform_indices = @transform_0, window_bounds = array<i64: 98>}, {transform_indices = @transform_1, window_bounds = array<i64: 1>}, {pipeline_mode = #tpu.pipeline_mode<synchronous>, transform_indices = @transform_2, window_bounds = array<i64: 1, 256>}, {transform_indices = @transform_3, window_bounds = array<i64: 2, 4, 256>}, {transform_indices = @transform_4, window_bounds = array<i64: 2, 4, 256>}]} {
    %c0 = arith.constant 0 : index
    %c0_0 = arith.constant 0 : index
    %c0_1 = arith.constant 0 : index
    %0 = vector.load %arg4[%c0, %c0_0, %c0_1] : memref<2x4x256xf32, #tpu.memory_space<vmem>>, vector<2x4x256xf32>
    %cst = arith.constant dense<0xFF800000> : vector<2x256xf32>
    %1 = vector.multi_reduction <maximumf>, %0, %cst [1] : vector<2x4x256xf32> to vector<2x256xf32>
    %cst_2 = arith.constant dense<0.000000e+00> : vector<2x256xf32>
    %2 = vector.multi_reduction <add>, %0, %cst_2 [1] : vector<2x4x256xf32> to vector<2x256xf32>
    %cst_3 = arith.constant 2.500000e-01 : f32
    %3 = vector.broadcast %cst_3 : f32 to vector<2x256xf32>
    %4 = arith.mulf %2, %3 : vector<2x256xf32>
    %cst_4 = arith.constant 0.000000e+00 : f32
    %5 = vector.broadcast %cst_4 : f32 to vector<2x2x128xf32>
    %c0_5 = arith.constant 0 : index
    %c0_6 = arith.constant 0 : index
    %c0_7 = arith.constant 0 : index
    %6 = vector.load %arg6[%c0_5, %c0_6, %c0_7] : memref<2x2x435xf32, #tpu.memory_space<vmem>>, vector<2x2x128xf32>
    tpu.vector_store %arg6[%c0_5, %c0_6, %c0_7], %5 {strides = array<i32>} : memref<2x2x435xf32, #tpu.memory_space<vmem>>, vector<2x2x128xf32>,
    %cst_8 = arith.constant 0.000000e+00 : f32
    %7 = vector.broadcast %cst_8 : f32 to vector<2x2x51xf32>
    %c0_9 = arith.constant 0 : index
    %c0_10 = arith.constant 0 : index
    %c384 = arith.constant 384 : index
    %8 = vector.load %arg6[%c0_9, %c0_10, %c384] : memref<2x2x435xf32, #tpu.memory_space<vmem>>, vector<2x2x51xf32>
    tpu.vector_store %arg6[%c0_9, %c0_10, %c384], %7 {strides = array<i32>} : memref<2x2x435xf32, #tpu.memory_space<vmem>>, vector<2x2x51xf32>,
    %c0_11 = arith.constant 0 : index
    %c0_12 = arith.constant 0 : index
    %c128 = arith.constant 128 : index
    %9 = vector.load %arg6[%c0_11, %c0_12, %c128] : memref<2x2x435xf32, #tpu.memory_space<vmem>>, vector<1x2x256xf32>
    %10 = vector.shape_cast %9 : vector<1x2x256xf32> to vector<2x256xf32>
    %11 = vector.shape_cast %1 : vector<2x256xf32> to vector<1x2x256xf32>
    tpu.vector_store %arg6[%c0_11, %c0_12, %c128], %11 {strides = array<i32>} : memref<2x2x435xf32, #tpu.memory_space<vmem>>, vector<1x2x256xf32>,
    %c1 = arith.constant 1 : index
    %c0_13 = arith.constant 0 : index
    %c128_14 = arith.constant 128 : index
    %12 = vector.load %arg6[%c1, %c0_13, %c128_14] : memref<2x2x435xf32, #tpu.memory_space<vmem>>, vector<1x2x256xf32>
    %13 = vector.shape_cast %12 : vector<1x2x256xf32> to vector<2x256xf32>
    %14 = vector.shape_cast %4 : vector<2x256xf32> to vector<1x2x256xf32>
    tpu.vector_store %arg6[%c1, %c0_13, %c128_14], %14 {strides = array<i32>} : memref<2x2x435xf32, #tpu.memory_space<vmem>>, vector<1x2x256xf32>,
    %c0_15 = arith.constant 0 : index
    %c0_16 = arith.constant 0 : index
    %15 = vector.load %arg3[%c0_15, %c0_16] : memref<1x256xi32, #tpu.memory_space<vmem>>, vector<1x256xi32>
    %c15_i32 = arith.constant 15 : i32
    %16 = vector.broadcast %c15_i32 : i32 to vector<1x256xi32>
    %17 = arith.cmpi slt, %15, %16 : vector<1x256xi32>
    %c1_i32 = arith.constant 1 : i32
    %18 = vector.broadcast %c1_i32 : i32 to vector<1x256xi32>
    %19 = arith.cmpi sge, %15, %18 : vector<1x256xi32>
    %c14_i32 = arith.constant 14 : i32
    %20 = vector.broadcast %c14_i32 : i32 to vector<1x256xi32>
    %21 = arith.cmpi slt, %15, %20 : vector<1x256xi32>
    %c2_i32 = arith.constant 2 : i32
    %22 = vector.broadcast %c2_i32 : i32 to vector<1x256xi32>
    %23 = arith.cmpi sge, %15, %22 : vector<1x256xi32>
    %c13_i32 = arith.constant 13 : i32
    %24 = vector.broadcast %c13_i32 : i32 to vector<1x256xi32>
    %25 = arith.cmpi slt, %15, %24 : vector<1x256xi32>
    %c3_i32 = arith.constant 3 : i32
    %26 = vector.broadcast %c3_i32 : i32 to vector<1x256xi32>
    %27 = arith.cmpi sge, %15, %26 : vector<1x256xi32>
    %cst_17 = arith.constant 0.000000e+00 : f32
    %28 = vector.broadcast %cst_17 : f32 to vector<2x256xf32>
    %c0_18 = arith.constant 0 : index
    %29 = memref.load %arg1[%c0_18] : memref<98xf32, #tpu.memory_space<smem>>
    %c0_19 = arith.constant 0 : index
    %c0_20 = arith.constant 0 : index
    %c77 = arith.constant 77 : index
    %30 = vector.load %arg6[%c0_19, %c0_20, %c77] : memref<2x2x435xf32, #tpu.memory_space<vmem>>, vector<1x2x256xf32>
    %31 = vector.shape_cast %30 : vector<1x2x256xf32> to vector<2x256xf32>
    %cst_21 = arith.constant 0.000000e+00 : f32
    %32 = vector.shape_cast %27 : vector<1x256xi1> to vector<1x256xi1>
    %33 = vector.broadcast %32 : vector<1x256xi1> to vector<2x256xi1>
    %34 = vector.broadcast %cst_21 : f32 to vector<2x256xf32>
    %35 = arith.select %33, %31, %34 : vector<2x256xi1>, vector<2x256xf32>
    %36 = vector.broadcast %29 : f32 to vector<2x256xf32>
    %37 = arith.mulf %36, %35 : vector<2x256xf32>
    %38 = arith.addf %28, %37 : vector<2x256xf32>
    %c1_22 = arith.constant 1 : index
    %39 = memref.load %arg1[%c1_22] : memref<98xf32, #tpu.memory_space<smem>>
    %c0_23 = arith.constant 0 : index
    %c0_24 = arith.constant 0 : index
    %c78 = arith.constant 78 : index
    %40 = vector.load %arg6[%c0_23, %c0_24, %c78] : memref<2x2x435xf32, #tpu.memory_space<vmem>>, vector<1x2x256xf32>
    %41 = vector.shape_cast %40 : vector<1x2x256xf32> to vector<2x256xf32>
    %cst_25 = arith.constant 0.000000e+00 : f32
    %42 = vector.shape_cast %23 : vector<1x256xi1> to vector<1x256xi1>
    %43 = vector.broadcast %42 : vector<1x256xi1> to vector<2x256xi1>
    %44 = vector.broadcast %cst_25 : f32 to vector<2x256xf32>
    %45 = arith.select %43, %41, %44 : vector<2x256xi1>, vector<2x256xf32>
    %46 = vector.broadcast %39 : f32 to vector<2x256xf32>
    %47 = arith.mulf %46, %45 : vector<2x256xf32>
    %48 = arith.addf %38, %47 : vector<2x256xf32>
    %c2 = arith.constant 2 : index
    %49 = memref.load %arg1[%c2] : memref<98xf32, #tpu.memory_space<smem>>
    %c0_26 = arith.constant 0 : index
    %c0_27 = arith.constant 0 : index
    %c79 = arith.constant 79 : index
    %50 = vector.load %arg6[%c0_26, %c0_27, %c79] : memref<2x2x435xf32, #tpu.memory_space<vmem>>, vector<1x2x256xf32>
    %51 = vector.shape_cast %50 : vector<1x2x256xf32> to vector<2x256xf32>
    %cst_28 = arith.constant 0.000000e+00 : f32
    %52 = vector.shape_cast %19 : vector<1x256xi1> to vector<1x256xi1>
    %53 = vector.broadcast %52 : vector<1x256xi1> to vector<2x256xi1>
    %54 = vector.broadcast %cst_28 : f32 to vector<2x256xf32>
    %55 = arith.select %53, %51, %54 : vector<2x256xi1>, vector<2x256xf32>
    %56 = vector.broadcast %49 : f32 to vector<2x256xf32>
    %57 = arith.mulf %56, %55 : vector<2x256xf32>
    %58 = arith.addf %48, %57 : vector<2x256xf32>
    %c3 = arith.constant 3 : index
    %59 = memref.load %arg1[%c3] : memref<98xf32, #tpu.memory_space<smem>>
    %c0_29 = arith.constant 0 : index
    %c0_30 = arith.constant 0 : index
    %c80 = arith.constant 80 : index
    %60 = vector.load %arg6[%c0_29, %c0_30, %c80] : memref<2x2x435xf32, #tpu.memory_space<vmem>>, vector<1x2x256xf32>
    %61 = vector.shape_cast %60 : vector<1x2x256xf32> to vector<2x256xf32>
    %62 = vector.broadcast %59 : f32 to vector<2x256xf32>
    %63 = arith.mulf %62, %61 : vector<2x256xf32>
    %64 = arith.addf %58, %63 : vector<2x256xf32>
    %c4 = arith.constant 4 : index
    %65 = memref.load %arg1[%c4] : memref<98xf32, #tpu.memory_space<smem>>
    %c0_31 = arith.constant 0 : index
    %c0_32 = arith.constant 0 : index
    %c81 = arith.constant 81 : index
    %66 = vector.load %arg6[%c0_31, %c0_32, %c81] : memref<2x2x435xf32, #tpu.memory_space<vmem>>, vector<1x2x256xf32>
    %67 = vector.shape_cast %66 : vector<1x2x256xf32> to vector<2x256xf32>
    %cst_33 = arith.constant 0.000000e+00 : f32
    %68 = vector.shape_cast %17 : vector<1x256xi1> to vector<1x256xi1>
    %69 = vector.broadcast %68 : vector<1x256xi1> to vector<2x256xi1>
    %70 = vector.broadcast %cst_33 : f32 to vector<2x256xf32>
    %71 = arith.select %69, %67, %70 : vector<2x256xi1>, vector<2x256xf32>
    %72 = vector.broadcast %65 : f32 to vector<2x256xf32>
    %73 = arith.mulf %72, %71 : vector<2x256xf32>
    %74 = arith.addf %64, %73 : vector<2x256xf32>
    %c5 = arith.constant 5 : index
    %75 = memref.load %arg1[%c5] : memref<98xf32, #tpu.memory_space<smem>>
    %c0_34 = arith.constant 0 : index
    %c0_35 = arith.constant 0 : index
    %c82 = arith.constant 82 : index
    %76 = vector.load %arg6[%c0_34, %c0_35, %c82] : memref<2x2x435xf32, #tpu.memory_space<vmem>>, vector<1x2x256xf32>
    %77 = vector.shape_cast %76 : vector<1x2x256xf32> to vector<2x256xf32>
    %cst_36 = arith.constant 0.000000e+00 : f32
    %78 = vector.shape_cast %21 : vector<1x256xi1> to vector<1x256xi1>
    %79 = vector.broadcast %78 : vector<1x256xi1> to vector<2x256xi1>
    %80 = vector.broadcast %cst_36 : f32 to vector<2x256xf32>
    %81 = arith.select %79, %77, %80 : vector<2x256xi1>, vector<2x256xf32>
    %82 = vector.broadcast %75 : f32 to vector<2x256xf32>
    %83 = arith.mulf %82, %81 : vector<2x256xf32>
    %84 = arith.addf %74, %83 : vector<2x256xf32>
    %c6 = arith.constant 6 : index
    %85 = memref.load %arg1[%c6] : memref<98xf32, #tpu.memory_space<smem>>
    %c0_37 = arith.constant 0 : index
    %c0_38 = arith.constant 0 : index
    %c83 = arith.constant 83 : index
    %86 = vector.load %arg6[%c0_37, %c0_38, %c83] : memref<2x2x435xf32, #tpu.memory_space<vmem>>, vector<1x2x256xf32>
    %87 = vector.shape_cast %86 : vector<1x2x256xf32> to vector<2x256xf32>
    %cst_39 = arith.constant 0.000000e+00 : f32
    %88 = vector.shape_cast %25 : vector<1x256xi1> to vector<1x256xi1>
    %89 = vector.broadcast %88 : vector<1x256xi1> to vector<2x256xi1>
    %90 = vector.broadcast %cst_39 : f32 to vector<2x256xf32>
    %91 = arith.select %89, %87, %90 : vector<2x256xi1>, vector<2x256xf32>
    %92 = vector.broadcast %85 : f32 to vector<2x256xf32>
    %93 = arith.mulf %92, %91 : vector<2x256xf32>
    %94 = arith.addf %84, %93 : vector<2x256xf32>
    %c7 = arith.constant 7 : index
    %95 = memref.load %arg1[%c7] : memref<98xf32, #tpu.memory_space<smem>>
    %c0_40 = arith.constant 0 : index
    %c0_41 = arith.constant 0 : index
    %c93 = arith.constant 93 : index
    %96 = vector.load %arg6[%c0_40, %c0_41, %c93] : memref<2x2x435xf32, #tpu.memory_space<vmem>>, vector<1x2x256xf32>
    %97 = vector.shape_cast %96 : vector<1x2x256xf32> to vector<2x256xf32>
    %cst_42 = arith.constant 0.000000e+00 : f32
    %98 = vector.shape_cast %27 : vector<1x256xi1> to vector<1x256xi1>
    %99 = vector.broadcast %98 : vector<1x256xi1> to vector<2x256xi1>
    %100 = vector.broadcast %cst_42 : f32 to vector<2x256xf32>
    %101 = arith.select %99, %97, %100 : vector<2x256xi1>, vector<2x256xf32>
    %102 = vector.broadcast %95 : f32 to vector<2x256xf32>
    %103 = arith.mulf %102, %101 : vector<2x256xf32>
    %104 = arith.addf %94, %103 : vector<2x256xf32>
    %c8 = arith.constant 8 : index
    %105 = memref.load %arg1[%c8] : memref<98xf32, #tpu.memory_space<smem>>
    %c0_43 = arith.constant 0 : index
    %c0_44 = arith.constant 0 : index
    %c94 = arith.constant 94 : index
    %106 = vector.load %arg6[%c0_43, %c0_44, %c94] : memref<2x2x435xf32, #tpu.memory_space<vmem>>, vector<1x2x256xf32>
    %107 = vector.shape_cast %106 : vector<1x2x256xf32> to vector<2x256xf32>
    %cst_45 = arith.constant 0.000000e+00 : f32
    %108 = vector.shape_cast %23 : vector<1x256xi1> to vector<1x256xi1>
    %109 = vector.broadcast %108 : vector<1x256xi1> to vector<2x256xi1>
    %110 = vector.broadcast %cst_45 : f32 to vector<2x256xf32>
    %111 = arith.select %109, %107, %110 : vector<2x256xi1>, vector<2x256xf32>
    %112 = vector.broadcast %105 : f32 to vector<2x256xf32>
    %113 = arith.mulf %112, %111 : vector<2x256xf32>
    %114 = arith.addf %104, %113 : vector<2x256xf32>
    %c9 = arith.constant 9 : index
    %115 = memref.load %arg1[%c9] : memref<98xf32, #tpu.memory_space<smem>>
    %c0_46 = arith.constant 0 : index
    %c0_47 = arith.constant 0 : index
    %c95 = arith.constant 95 : index
    %116 = vector.load %arg6[%c0_46, %c0_47, %c95] : memref<2x2x435xf32, #tpu.memory_space<vmem>>, vector<1x2x256xf32>
    %117 = vector.shape_cast %116 : vector<1x2x256xf32> to vector<2x256xf32>
    %cst_48 = arith.constant 0.000000e+00 : f32
    %118 = vector.shape_cast %19 : vector<1x256xi1> to vector<1x256xi1>
    %119 = vector.broadcast %118 : vector<1x256xi1> to vector<2x256xi1>
    %120 = vector.broadcast %cst_48 : f32 to vector<2x256xf32>
    %121 = arith.select %119, %117, %120 : vector<2x256xi1>, vector<2x256xf32>
    %122 = vector.broadcast %115 : f32 to vector<2x256xf32>
    %123 = arith.mulf %122, %121 : vector<2x256xf32>
    %124 = arith.addf %114, %123 : vector<2x256xf32>
    %c10 = arith.constant 10 : index
    %125 = memref.load %arg1[%c10] : memref<98xf32, #tpu.memory_space<smem>>
    %c0_49 = arith.constant 0 : index
    %c0_50 = arith.constant 0 : index
    %c96 = arith.constant 96 : index
    %126 = vector.load %arg6[%c0_49, %c0_50, %c96] : memref<2x2x435xf32, #tpu.memory_space<vmem>>, vector<1x2x256xf32>
    %127 = vector.shape_cast %126 : vector<1x2x256xf32> to vector<2x256xf32>
    %128 = vector.broadcast %125 : f32 to vector<2x256xf32>
    %129 = arith.mulf %128, %127 : vector<2x256xf32>
    %130 = arith.addf %124, %129 : vector<2x256xf32>
    %c11 = arith.constant 11 : index
    %131 = memref.load %arg1[%c11] : memref<98xf32, #tpu.memory_space<smem>>
    %c0_51 = arith.constant 0 : index
    %c0_52 = arith.constant 0 : index
    %c97 = arith.constant 97 : index
    %132 = vector.load %arg6[%c0_51, %c0_52, %c97] : memref<2x2x435xf32, #tpu.memory_space<vmem>>, vector<1x2x256xf32>
    %133 = vector.shape_cast %132 : vector<1x2x256xf32> to vector<2x256xf32>
    %cst_53 = arith.constant 0.000000e+00 : f32
    %134 = vector.shape_cast %17 : vector<1x256xi1> to vector<1x256xi1>
    %135 = vector.broadcast %134 : vector<1x256xi1> to vector<2x256xi1>
    %136 = vector.broadcast %cst_53 : f32 to vector<2x256xf32>
    %137 = arith.select %135, %133, %136 : vector<2x256xi1>, vector<2x256xf32>
    %138 = vector.broadcast %131 : f32 to vector<2x256xf32>
    %139 = arith.mulf %138, %137 : vector<2x256xf32>
    %140 = arith.addf %130, %139 : vector<2x256xf32>
    %c12 = arith.constant 12 : index
    %141 = memref.load %arg1[%c12] : memref<98xf32, #tpu.memory_space<smem>>
    %c0_54 = arith.constant 0 : index
    %c0_55 = arith.constant 0 : index
    %c98 = arith.constant 98 : index
    %142 = vector.load %arg6[%c0_54, %c0_55, %c98] : memref<2x2x435xf32, #tpu.memory_space<vmem>>, vector<1x2x256xf32>
    %143 = vector.shape_cast %142 : vector<1x2x256xf32> to vector<2x256xf32>
    %cst_56 = arith.constant 0.000000e+00 : f32
    %144 = vector.shape_cast %21 : vector<1x256xi1> to vector<1x256xi1>
    %145 = vector.broadcast %144 : vector<1x256xi1> to vector<2x256xi1>
    %146 = vector.broadcast %cst_56 : f32 to vector<2x256xf32>
    %147 = arith.select %145, %143, %146 : vector<2x256xi1>, vector<2x256xf32>
    %148 = vector.broadcast %141 : f32 to vector<2x256xf32>
    %149 = arith.mulf %148, %147 : vector<2x256xf32>
    %150 = arith.addf %140, %149 : vector<2x256xf32>
    %c13 = arith.constant 13 : index
    %151 = memref.load %arg1[%c13] : memref<98xf32, #tpu.memory_space<smem>>
    %c0_57 = arith.constant 0 : index
    %c0_58 = arith.constant 0 : index
    %c99 = arith.constant 99 : index
    %152 = vector.load %arg6[%c0_57, %c0_58, %c99] : memref<2x2x435xf32, #tpu.memory_space<vmem>>, vector<1x2x256xf32>
    %153 = vector.shape_cast %152 : vector<1x2x256xf32> to vector<2x256xf32>
    %cst_59 = arith.constant 0.000000e+00 : f32
    %154 = vector.shape_cast %25 : vector<1x256xi1> to vector<1x256xi1>
    %155 = vector.broadcast %154 : vector<1x256xi1> to vector<2x256xi1>
    %156 = vector.broadcast %cst_59 : f32 to vector<2x256xf32>
    %157 = arith.select %155, %153, %156 : vector<2x256xi1>, vector<2x256xf32>
    %158 = vector.broadcast %151 : f32 to vector<2x256xf32>
    %159 = arith.mulf %158, %157 : vector<2x256xf32>
    %160 = arith.addf %150, %159 : vector<2x256xf32>
    %c14 = arith.constant 14 : index
    %161 = memref.load %arg1[%c14] : memref<98xf32, #tpu.memory_space<smem>>
    %c0_60 = arith.constant 0 : index
    %c0_61 = arith.constant 0 : index
    %c109 = arith.constant 109 : index
    %162 = vector.load %arg6[%c0_60, %c0_61, %c109] : memref<2x2x435xf32, #tpu.memory_space<vmem>>, vector<1x2x256xf32>
    %163 = vector.shape_cast %162 : vector<1x2x256xf32> to vector<2x256xf32>
    %cst_62 = arith.constant 0.000000e+00 : f32
    %164 = vector.shape_cast %27 : vector<1x256xi1> to vector<1x256xi1>
    %165 = vector.broadcast %164 : vector<1x256xi1> to vector<2x256xi1>
    %166 = vector.broadcast %cst_62 : f32 to vector<2x256xf32>
    %167 = arith.select %165, %163, %166 : vector<2x256xi1>, vector<2x256xf32>
    %168 = vector.broadcast %161 : f32 to vector<2x256xf32>
    %169 = arith.mulf %168, %167 : vector<2x256xf32>
    %170 = arith.addf %160, %169 : vector<2x256xf32>
    %c15 = arith.constant 15 : index
    %171 = memref.load %arg1[%c15] : memref<98xf32, #tpu.memory_space<smem>>
    %c0_63 = arith.constant 0 : index
    %c0_64 = arith.constant 0 : index
    %c110 = arith.constant 110 : index
    %172 = vector.load %arg6[%c0_63, %c0_64, %c110] : memref<2x2x435xf32, #tpu.memory_space<vmem>>, vector<1x2x256xf32>
    %173 = vector.shape_cast %172 : vector<1x2x256xf32> to vector<2x256xf32>
    %cst_65 = arith.constant 0.000000e+00 : f32
    %174 = vector.shape_cast %23 : vector<1x256xi1> to vector<1x256xi1>
    %175 = vector.broadcast %174 : vector<1x256xi1> to vector<2x256xi1>
    %176 = vector.broadcast %cst_65 : f32 to vector<2x256xf32>
    %177 = arith.select %175, %173, %176 : vector<2x256xi1>, vector<2x256xf32>
    %178 = vector.broadcast %171 : f32 to vector<2x256xf32>
    %179 = arith.mulf %178, %177 : vector<2x256xf32>
    %180 = arith.addf %170, %179 : vector<2x256xf32>
    %c16 = arith.constant 16 : index
    %181 = memref.load %arg1[%c16] : memref<98xf32, #tpu.memory_space<smem>>
    %c0_66 = arith.constant 0 : index
    %c0_67 = arith.constant 0 : index
    %c111 = arith.constant 111 : index
    %182 = vector.load %arg6[%c0_66, %c0_67, %c111] : memref<2x2x435xf32, #tpu.memory_space<vmem>>, vector<1x2x256xf32>
    %183 = vector.shape_cast %182 : vector<1x2x256xf32> to vector<2x256xf32>
    %cst_68 = arith.constant 0.000000e+00 : f32
    %184 = vector.shape_cast %19 : vector<1x256xi1> to vector<1x256xi1>
    %185 = vector.broadcast %184 : vector<1x256xi1> to vector<2x256xi1>
    %186 = vector.broadcast %cst_68 : f32 to vector<2x256xf32>
    %187 = arith.select %185, %183, %186 : vector<2x256xi1>, vector<2x256xf32>
    %188 = vector.broadcast %181 : f32 to vector<2x256xf32>
    %189 = arith.mulf %188, %187 : vector<2x256xf32>
    %190 = arith.addf %180, %189 : vector<2x256xf32>
    %c17 = arith.constant 17 : index
    %191 = memref.load %arg1[%c17] : memref<98xf32, #tpu.memory_space<smem>>
    %c0_69 = arith.constant 0 : index
    %c0_70 = arith.constant 0 : index
    %c112 = arith.constant 112 : index
    %192 = vector.load %arg6[%c0_69, %c0_70, %c112] : memref<2x2x435xf32, #tpu.memory_space<vmem>>, vector<1x2x256xf32>
    %193 = vector.shape_cast %192 : vector<1x2x256xf32> to vector<2x256xf32>
    %194 = vector.broadcast %191 : f32 to vector<2x256xf32>
    %195 = arith.mulf %194, %193 : vector<2x256xf32>
    %196 = arith.addf %190, %195 : vector<2x256xf32>
    %c18 = arith.constant 18 : index
    %197 = memref.load %arg1[%c18] : memref<98xf32, #tpu.memory_space<smem>>
    %c0_71 = arith.constant 0 : index
    %c0_72 = arith.constant 0 : index
    %c113 = arith.constant 113 : index
    %198 = vector.load %arg6[%c0_71, %c0_72, %c113] : memref<2x2x435xf32, #tpu.memory_space<vmem>>, vector<1x2x256xf32>
    %199 = vector.shape_cast %198 : vector<1x2x256xf32> to vector<2x256xf32>
    %cst_73 = arith.constant 0.000000e+00 : f32
    %200 = vector.shape_cast %17 : vector<1x256xi1> to vector<1x256xi1>
    %201 = vector.broadcast %200 : vector<1x256xi1> to vector<2x256xi1>
    %202 = vector.broadcast %cst_73 : f32 to vector<2x256xf32>
    %203 = arith.select %201, %199, %202 : vector<2x256xi1>, vector<2x256xf32>
    %204 = vector.broadcast %197 : f32 to vector<2x256xf32>
    %205 = arith.mulf %204, %203 : vector<2x256xf32>
    %206 = arith.addf %196, %205 : vector<2x256xf32>
    %c19 = arith.constant 19 : index
    %207 = memref.load %arg1[%c19] : memref<98xf32, #tpu.memory_space<smem>>
    %c0_74 = arith.constant 0 : index
    %c0_75 = arith.constant 0 : index
    %c114 = arith.constant 114 : index
    %208 = vector.load %arg6[%c0_74, %c0_75, %c114] : memref<2x2x435xf32, #tpu.memory_space<vmem>>, vector<1x2x256xf32>
    %209 = vector.shape_cast %208 : vector<1x2x256xf32> to vector<2x256xf32>
    %cst_76 = arith.constant 0.000000e+00 : f32
    %210 = vector.shape_cast %21 : vector<1x256xi1> to vector<1x256xi1>
    %211 = vector.broadcast %210 : vector<1x256xi1> to vector<2x256xi1>
    %212 = vector.broadcast %cst_76 : f32 to vector<2x256xf32>
    %213 = arith.select %211, %209, %212 : vector<2x256xi1>, vector<2x256xf32>
    %214 = vector.broadcast %207 : f32 to vector<2x256xf32>
    %215 = arith.mulf %214, %213 : vector<2x256xf32>
    %216 = arith.addf %206, %215 : vector<2x256xf32>
    %c20 = arith.constant 20 : index
    %217 = memref.load %arg1[%c20] : memref<98xf32, #tpu.memory_space<smem>>
    %c0_77 = arith.constant 0 : index
    %c0_78 = arith.constant 0 : index
    %c115 = arith.constant 115 : index
    %218 = vector.load %arg6[%c0_77, %c0_78, %c115] : memref<2x2x435xf32, #tpu.memory_space<vmem>>, vector<1x2x256xf32>
    %219 = vector.shape_cast %218 : vector<1x2x256xf32> to vector<2x256xf32>
    %cst_79 = arith.constant 0.000000e+00 : f32
    %220 = vector.shape_cast %25 : vector<1x256xi1> to vector<1x256xi1>
    %221 = vector.broadcast %220 : vector<1x256xi1> to vector<2x256xi1>
    %222 = vector.broadcast %cst_79 : f32 to vector<2x256xf32>
    %223 = arith.select %221, %219, %222 : vector<2x256xi1>, vector<2x256xf32>
    %224 = vector.broadcast %217 : f32 to vector<2x256xf32>
    %225 = arith.mulf %224, %223 : vector<2x256xf32>
    %226 = arith.addf %216, %225 : vector<2x256xf32>
    %c21 = arith.constant 21 : index
    %227 = memref.load %arg1[%c21] : memref<98xf32, #tpu.memory_space<smem>>
    %c0_80 = arith.constant 0 : index
    %c0_81 = arith.constant 0 : index
    %c125 = arith.constant 125 : index
    %228 = vector.load %arg6[%c0_80, %c0_81, %c125] : memref<2x2x435xf32, #tpu.memory_space<vmem>>, vector<1x2x256xf32>
    %229 = vector.shape_cast %228 : vector<1x2x256xf32> to vector<2x256xf32>
    %cst_82 = arith.constant 0.000000e+00 : f32
    %230 = vector.shape_cast %27 : vector<1x256xi1> to vector<1x256xi1>
    %231 = vector.broadcast %230 : vector<1x256xi1> to vector<2x256xi1>
    %232 = vector.broadcast %cst_82 : f32 to vector<2x256xf32>
    %233 = arith.select %231, %229, %232 : vector<2x256xi1>, vector<2x256xf32>
    %234 = vector.broadcast %227 : f32 to vector<2x256xf32>
    %235 = arith.mulf %234, %233 : vector<2x256xf32>
    %236 = arith.addf %226, %235 : vector<2x256xf32>
    %c22 = arith.constant 22 : index
    %237 = memref.load %arg1[%c22] : memref<98xf32, #tpu.memory_space<smem>>
    %c0_83 = arith.constant 0 : index
    %c0_84 = arith.constant 0 : index
    %c126 = arith.constant 126 : index
    %238 = vector.load %arg6[%c0_83, %c0_84, %c126] : memref<2x2x435xf32, #tpu.memory_space<vmem>>, vector<1x2x256xf32>
    %239 = vector.shape_cast %238 : vector<1x2x256xf32> to vector<2x256xf32>
    %cst_85 = arith.constant 0.000000e+00 : f32
    %240 = vector.shape_cast %23 : vector<1x256xi1> to vector<1x256xi1>
    %241 = vector.broadcast %240 : vector<1x256xi1> to vector<2x256xi1>
    %242 = vector.broadcast %cst_85 : f32 to vector<2x256xf32>
    %243 = arith.select %241, %239, %242 : vector<2x256xi1>, vector<2x256xf32>
    %244 = vector.broadcast %237 : f32 to vector<2x256xf32>
    %245 = arith.mulf %244, %243 : vector<2x256xf32>
    %246 = arith.addf %236, %245 : vector<2x256xf32>
    %c23 = arith.constant 23 : index
    %247 = memref.load %arg1[%c23] : memref<98xf32, #tpu.memory_space<smem>>
    %c0_86 = arith.constant 0 : index
    %c0_87 = arith.constant 0 : index
    %c127 = arith.constant 127 : index
    %248 = vector.load %arg6[%c0_86, %c0_87, %c127] : memref<2x2x435xf32, #tpu.memory_space<vmem>>, vector<1x2x256xf32>
    %249 = vector.shape_cast %248 : vector<1x2x256xf32> to vector<2x256xf32>
    %cst_88 = arith.constant 0.000000e+00 : f32
    %250 = vector.shape_cast %19 : vector<1x256xi1> to vector<1x256xi1>
    %251 = vector.broadcast %250 : vector<1x256xi1> to vector<2x256xi1>
    %252 = vector.broadcast %cst_88 : f32 to vector<2x256xf32>
    %253 = arith.select %251, %249, %252 : vector<2x256xi1>, vector<2x256xf32>
    %254 = vector.broadcast %247 : f32 to vector<2x256xf32>
    %255 = arith.mulf %254, %253 : vector<2x256xf32>
    %256 = arith.addf %246, %255 : vector<2x256xf32>
    %c24 = arith.constant 24 : index
    %257 = memref.load %arg1[%c24] : memref<98xf32, #tpu.memory_space<smem>>
    %c0_89 = arith.constant 0 : index
    %c0_90 = arith.constant 0 : index
    %c128_91 = arith.constant 128 : index
    %258 = vector.load %arg6[%c0_89, %c0_90, %c128_91] : memref<2x2x435xf32, #tpu.memory_space<vmem>>, vector<1x2x256xf32>
    %259 = vector.shape_cast %258 : vector<1x2x256xf32> to vector<2x256xf32>
    %260 = vector.broadcast %257 : f32 to vector<2x256xf32>
    %261 = arith.mulf %260, %259 : vector<2x256xf32>
    %262 = arith.addf %256, %261 : vector<2x256xf32>
    %c25 = arith.constant 25 : index
    %263 = memref.load %arg1[%c25] : memref<98xf32, #tpu.memory_space<smem>>
    %c0_92 = arith.constant 0 : index
    %c0_93 = arith.constant 0 : index
    %c129 = arith.constant 129 : index
    %264 = vector.load %arg6[%c0_92, %c0_93, %c129] : memref<2x2x435xf32, #tpu.memory_space<vmem>>, vector<1x2x256xf32>
    %265 = vector.shape_cast %264 : vector<1x2x256xf32> to vector<2x256xf32>
    %cst_94 = arith.constant 0.000000e+00 : f32
    %266 = vector.shape_cast %17 : vector<1x256xi1> to vector<1x256xi1>
    %267 = vector.broadcast %266 : vector<1x256xi1> to vector<2x256xi1>
    %268 = vector.broadcast %cst_94 : f32 to vector<2x256xf32>
    %269 = arith.select %267, %265, %268 : vector<2x256xi1>, vector<2x256xf32>
    %270 = vector.broadcast %263 : f32 to vector<2x256xf32>
    %271 = arith.mulf %270, %269 : vector<2x256xf32>
    %272 = arith.addf %262, %271 : vector<2x256xf32>
    %c26 = arith.constant 26 : index
    %273 = memref.load %arg1[%c26] : memref<98xf32, #tpu.memory_space<smem>>
    %c0_95 = arith.constant 0 : index
    %c0_96 = arith.constant 0 : index
    %c130 = arith.constant 130 : index
    %274 = vector.load %arg6[%c0_95, %c0_96, %c130] : memref<2x2x435xf32, #tpu.memory_space<vmem>>, vector<1x2x256xf32>
    %275 = vector.shape_cast %274 : vector<1x2x256xf32> to vector<2x256xf32>
    %cst_97 = arith.constant 0.000000e+00 : f32
    %276 = vector.shape_cast %21 : vector<1x256xi1> to vector<1x256xi1>
    %277 = vector.broadcast %276 : vector<1x256xi1> to vector<2x256xi1>
    %278 = vector.broadcast %cst_97 : f32 to vector<2x256xf32>
    %279 = arith.select %277, %275, %278 : vector<2x256xi1>, vector<2x256xf32>
    %280 = vector.broadcast %273 : f32 to vector<2x256xf32>
    %281 = arith.mulf %280, %279 : vector<2x256xf32>
    %282 = arith.addf %272, %281 : vector<2x256xf32>
    %c27 = arith.constant 27 : index
    %283 = memref.load %arg1[%c27] : memref<98xf32, #tpu.memory_space<smem>>
    %c0_98 = arith.constant 0 : index
    %c0_99 = arith.constant 0 : index
    %c131 = arith.constant 131 : index
    %284 = vector.load %arg6[%c0_98, %c0_99, %c131] : memref<2x2x435xf32, #tpu.memory_space<vmem>>, vector<1x2x256xf32>
    %285 = vector.shape_cast %284 : vector<1x2x256xf32> to vector<2x256xf32>
    %cst_100 = arith.constant 0.000000e+00 : f32
    %286 = vector.shape_cast %25 : vector<1x256xi1> to vector<1x256xi1>
    %287 = vector.broadcast %286 : vector<1x256xi1> to vector<2x256xi1>
    %288 = vector.broadcast %cst_100 : f32 to vector<2x256xf32>
    %289 = arith.select %287, %285, %288 : vector<2x256xi1>, vector<2x256xf32>
    %290 = vector.broadcast %283 : f32 to vector<2x256xf32>
    %291 = arith.mulf %290, %289 : vector<2x256xf32>
    %292 = arith.addf %282, %291 : vector<2x256xf32>
    %c28 = arith.constant 28 : index
    %293 = memref.load %arg1[%c28] : memref<98xf32, #tpu.memory_space<smem>>
    %c0_101 = arith.constant 0 : index
    %c0_102 = arith.constant 0 : index
    %c141 = arith.constant 141 : index
    %294 = vector.load %arg6[%c0_101, %c0_102, %c141] : memref<2x2x435xf32, #tpu.memory_space<vmem>>, vector<1x2x256xf32>
    %295 = vector.shape_cast %294 : vector<1x2x256xf32> to vector<2x256xf32>
    %cst_103 = arith.constant 0.000000e+00 : f32
    %296 = vector.shape_cast %27 : vector<1x256xi1> to vector<1x256xi1>
    %297 = vector.broadcast %296 : vector<1x256xi1> to vector<2x256xi1>
    %298 = vector.broadcast %cst_103 : f32 to vector<2x256xf32>
    %299 = arith.select %297, %295, %298 : vector<2x256xi1>, vector<2x256xf32>
    %300 = vector.broadcast %293 : f32 to vector<2x256xf32>
    %301 = arith.mulf %300, %299 : vector<2x256xf32>
    %302 = arith.addf %292, %301 : vector<2x256xf32>
    %c29 = arith.constant 29 : index
    %303 = memref.load %arg1[%c29] : memref<98xf32, #tpu.memory_space<smem>>
    %c0_104 = arith.constant 0 : index
    %c0_105 = arith.constant 0 : index
    %c142 = arith.constant 142 : index
    %304 = vector.load %arg6[%c0_104, %c0_105, %c142] : memref<2x2x435xf32, #tpu.memory_space<vmem>>, vector<1x2x256xf32>
    %305 = vector.shape_cast %304 : vector<1x2x256xf32> to vector<2x256xf32>
    %cst_106 = arith.constant 0.000000e+00 : f32
    %306 = vector.shape_cast %23 : vector<1x256xi1> to vector<1x256xi1>
    %307 = vector.broadcast %306 : vector<1x256xi1> to vector<2x256xi1>
    %308 = vector.broadcast %cst_106 : f32 to vector<2x256xf32>
    %309 = arith.select %307, %305, %308 : vector<2x256xi1>, vector<2x256xf32>
    %310 = vector.broadcast %303 : f32 to vector<2x256xf32>
    %311 = arith.mulf %310, %309 : vector<2x256xf32>
    %312 = arith.addf %302, %311 : vector<2x256xf32>
    %c30 = arith.constant 30 : index
    %313 = memref.load %arg1[%c30] : memref<98xf32, #tpu.memory_space<smem>>
    %c0_107 = arith.constant 0 : index
    %c0_108 = arith.constant 0 : index
    %c143 = arith.constant 143 : index
    %314 = vector.load %arg6[%c0_107, %c0_108, %c143] : memref<2x2x435xf32, #tpu.memory_space<vmem>>, vector<1x2x256xf32>
    %315 = vector.shape_cast %314 : vector<1x2x256xf32> to vector<2x256xf32>
    %cst_109 = arith.constant 0.000000e+00 : f32
    %316 = vector.shape_cast %19 : vector<1x256xi1> to vector<1x256xi1>
    %317 = vector.broadcast %316 : vector<1x256xi1> to vector<2x256xi1>
    %318 = vector.broadcast %cst_109 : f32 to vector<2x256xf32>
    %319 = arith.select %317, %315, %318 : vector<2x256xi1>, vector<2x256xf32>
    %320 = vector.broadcast %313 : f32 to vector<2x256xf32>
    %321 = arith.mulf %320, %319 : vector<2x256xf32>
    %322 = arith.addf %312, %321 : vector<2x256xf32>
    %c31 = arith.constant 31 : index
    %323 = memref.load %arg1[%c31] : memref<98xf32, #tpu.memory_space<smem>>
    %c0_110 = arith.constant 0 : index
    %c0_111 = arith.constant 0 : index
    %c144 = arith.constant 144 : index
    %324 = vector.load %arg6[%c0_110, %c0_111, %c144] : memref<2x2x435xf32, #tpu.memory_space<vmem>>, vector<1x2x256xf32>
    %325 = vector.shape_cast %324 : vector<1x2x256xf32> to vector<2x256xf32>
    %326 = vector.broadcast %323 : f32 to vector<2x256xf32>
    %327 = arith.mulf %326, %325 : vector<2x256xf32>
    %328 = arith.addf %322, %327 : vector<2x256xf32>
    %c32 = arith.constant 32 : index
    %329 = memref.load %arg1[%c32] : memref<98xf32, #tpu.memory_space<smem>>
    %c0_112 = arith.constant 0 : index
    %c0_113 = arith.constant 0 : index
    %c145 = arith.constant 145 : index
    %330 = vector.load %arg6[%c0_112, %c0_113, %c145] : memref<2x2x435xf32, #tpu.memory_space<vmem>>, vector<1x2x256xf32>
    %331 = vector.shape_cast %330 : vector<1x2x256xf32> to vector<2x256xf32>
    %cst_114 = arith.constant 0.000000e+00 : f32
    %332 = vector.shape_cast %17 : vector<1x256xi1> to vector<1x256xi1>
    %333 = vector.broadcast %332 : vector<1x256xi1> to vector<2x256xi1>
    %334 = vector.broadcast %cst_114 : f32 to vector<2x256xf32>
    %335 = arith.select %333, %331, %334 : vector<2x256xi1>, vector<2x256xf32>
    %336 = vector.broadcast %329 : f32 to vector<2x256xf32>
    %337 = arith.mulf %336, %335 : vector<2x256xf32>
    %338 = arith.addf %328, %337 : vector<2x256xf32>
    %c33 = arith.constant 33 : index
    %339 = memref.load %arg1[%c33] : memref<98xf32, #tpu.memory_space<smem>>
    %c0_115 = arith.constant 0 : index
    %c0_116 = arith.constant 0 : index
    %c146 = arith.constant 146 : index
    %340 = vector.load %arg6[%c0_115, %c0_116, %c146] : memref<2x2x435xf32, #tpu.memory_space<vmem>>, vector<1x2x256xf32>
    %341 = vector.shape_cast %340 : vector<1x2x256xf32> to vector<2x256xf32>
    %cst_117 = arith.constant 0.000000e+00 : f32
    %342 = vector.shape_cast %21 : vector<1x256xi1> to vector<1x256xi1>
    %343 = vector.broadcast %342 : vector<1x256xi1> to vector<2x256xi1>
    %344 = vector.broadcast %cst_117 : f32 to vector<2x256xf32>
    %345 = arith.select %343, %341, %344 : vector<2x256xi1>, vector<2x256xf32>
    %346 = vector.broadcast %339 : f32 to vector<2x256xf32>
    %347 = arith.mulf %346, %345 : vector<2x256xf32>
    %348 = arith.addf %338, %347 : vector<2x256xf32>
    %c34 = arith.constant 34 : index
    %349 = memref.load %arg1[%c34] : memref<98xf32, #tpu.memory_space<smem>>
    %c0_118 = arith.constant 0 : index
    %c0_119 = arith.constant 0 : index
    %c147 = arith.constant 147 : index
    %350 = vector.load %arg6[%c0_118, %c0_119, %c147] : memref<2x2x435xf32, #tpu.memory_space<vmem>>, vector<1x2x256xf32>
    %351 = vector.shape_cast %350 : vector<1x2x256xf32> to vector<2x256xf32>
    %cst_120 = arith.constant 0.000000e+00 : f32
    %352 = vector.shape_cast %25 : vector<1x256xi1> to vector<1x256xi1>
    %353 = vector.broadcast %352 : vector<1x256xi1> to vector<2x256xi1>
    %354 = vector.broadcast %cst_120 : f32 to vector<2x256xf32>
    %355 = arith.select %353, %351, %354 : vector<2x256xi1>, vector<2x256xf32>
    %356 = vector.broadcast %349 : f32 to vector<2x256xf32>
    %357 = arith.mulf %356, %355 : vector<2x256xf32>
    %358 = arith.addf %348, %357 : vector<2x256xf32>
    %c35 = arith.constant 35 : index
    %359 = memref.load %arg1[%c35] : memref<98xf32, #tpu.memory_space<smem>>
    %c0_121 = arith.constant 0 : index
    %c0_122 = arith.constant 0 : index
    %c157 = arith.constant 157 : index
    %360 = vector.load %arg6[%c0_121, %c0_122, %c157] : memref<2x2x435xf32, #tpu.memory_space<vmem>>, vector<1x2x256xf32>
    %361 = vector.shape_cast %360 : vector<1x2x256xf32> to vector<2x256xf32>
    %cst_123 = arith.constant 0.000000e+00 : f32
    %362 = vector.shape_cast %27 : vector<1x256xi1> to vector<1x256xi1>
    %363 = vector.broadcast %362 : vector<1x256xi1> to vector<2x256xi1>
    %364 = vector.broadcast %cst_123 : f32 to vector<2x256xf32>
    %365 = arith.select %363, %361, %364 : vector<2x256xi1>, vector<2x256xf32>
    %366 = vector.broadcast %359 : f32 to vector<2x256xf32>
    %367 = arith.mulf %366, %365 : vector<2x256xf32>
    %368 = arith.addf %358, %367 : vector<2x256xf32>
    %c36 = arith.constant 36 : index
    %369 = memref.load %arg1[%c36] : memref<98xf32, #tpu.memory_space<smem>>
    %c0_124 = arith.constant 0 : index
    %c0_125 = arith.constant 0 : index
    %c158 = arith.constant 158 : index
    %370 = vector.load %arg6[%c0_124, %c0_125, %c158] : memref<2x2x435xf32, #tpu.memory_space<vmem>>, vector<1x2x256xf32>
    %371 = vector.shape_cast %370 : vector<1x2x256xf32> to vector<2x256xf32>
    %cst_126 = arith.constant 0.000000e+00 : f32
    %372 = vector.shape_cast %23 : vector<1x256xi1> to vector<1x256xi1>
    %373 = vector.broadcast %372 : vector<1x256xi1> to vector<2x256xi1>
    %374 = vector.broadcast %cst_126 : f32 to vector<2x256xf32>
    %375 = arith.select %373, %371, %374 : vector<2x256xi1>, vector<2x256xf32>
    %376 = vector.broadcast %369 : f32 to vector<2x256xf32>
    %377 = arith.mulf %376, %375 : vector<2x256xf32>
    %378 = arith.addf %368, %377 : vector<2x256xf32>
    %c37 = arith.constant 37 : index
    %379 = memref.load %arg1[%c37] : memref<98xf32, #tpu.memory_space<smem>>
    %c0_127 = arith.constant 0 : index
    %c0_128 = arith.constant 0 : index
    %c159 = arith.constant 159 : index
    %380 = vector.load %arg6[%c0_127, %c0_128, %c159] : memref<2x2x435xf32, #tpu.memory_space<vmem>>, vector<1x2x256xf32>
    %381 = vector.shape_cast %380 : vector<1x2x256xf32> to vector<2x256xf32>
    %cst_129 = arith.constant 0.000000e+00 : f32
    %382 = vector.shape_cast %19 : vector<1x256xi1> to vector<1x256xi1>
    %383 = vector.broadcast %382 : vector<1x256xi1> to vector<2x256xi1>
    %384 = vector.broadcast %cst_129 : f32 to vector<2x256xf32>
    %385 = arith.select %383, %381, %384 : vector<2x256xi1>, vector<2x256xf32>
    %386 = vector.broadcast %379 : f32 to vector<2x256xf32>
    %387 = arith.mulf %386, %385 : vector<2x256xf32>
    %388 = arith.addf %378, %387 : vector<2x256xf32>
    %c38 = arith.constant 38 : index
    %389 = memref.load %arg1[%c38] : memref<98xf32, #tpu.memory_space<smem>>
    %c0_130 = arith.constant 0 : index
    %c0_131 = arith.constant 0 : index
    %c160 = arith.constant 160 : index
    %390 = vector.load %arg6[%c0_130, %c0_131, %c160] : memref<2x2x435xf32, #tpu.memory_space<vmem>>, vector<1x2x256xf32>
    %391 = vector.shape_cast %390 : vector<1x2x256xf32> to vector<2x256xf32>
    %392 = vector.broadcast %389 : f32 to vector<2x256xf32>
    %393 = arith.mulf %392, %391 : vector<2x256xf32>
    %394 = arith.addf %388, %393 : vector<2x256xf32>
    %c39 = arith.constant 39 : index
    %395 = memref.load %arg1[%c39] : memref<98xf32, #tpu.memory_space<smem>>
    %c0_132 = arith.constant 0 : index
    %c0_133 = arith.constant 0 : index
    %c161 = arith.constant 161 : index
    %396 = vector.load %arg6[%c0_132, %c0_133, %c161] : memref<2x2x435xf32, #tpu.memory_space<vmem>>, vector<1x2x256xf32>
    %397 = vector.shape_cast %396 : vector<1x2x256xf32> to vector<2x256xf32>
    %cst_134 = arith.constant 0.000000e+00 : f32
    %398 = vector.shape_cast %17 : vector<1x256xi1> to vector<1x256xi1>
    %399 = vector.broadcast %398 : vector<1x256xi1> to vector<2x256xi1>
    %400 = vector.broadcast %cst_134 : f32 to vector<2x256xf32>
    %401 = arith.select %399, %397, %400 : vector<2x256xi1>, vector<2x256xf32>
    %402 = vector.broadcast %395 : f32 to vector<2x256xf32>
    %403 = arith.mulf %402, %401 : vector<2x256xf32>
    %404 = arith.addf %394, %403 : vector<2x256xf32>
    %c40 = arith.constant 40 : index
    %405 = memref.load %arg1[%c40] : memref<98xf32, #tpu.memory_space<smem>>
    %c0_135 = arith.constant 0 : index
    %c0_136 = arith.constant 0 : index
    %c162 = arith.constant 162 : index
    %406 = vector.load %arg6[%c0_135, %c0_136, %c162] : memref<2x2x435xf32, #tpu.memory_space<vmem>>, vector<1x2x256xf32>
    %407 = vector.shape_cast %406 : vector<1x2x256xf32> to vector<2x256xf32>
    %cst_137 = arith.constant 0.000000e+00 : f32
    %408 = vector.shape_cast %21 : vector<1x256xi1> to vector<1x256xi1>
    %409 = vector.broadcast %408 : vector<1x256xi1> to vector<2x256xi1>
    %410 = vector.broadcast %cst_137 : f32 to vector<2x256xf32>
    %411 = arith.select %409, %407, %410 : vector<2x256xi1>, vector<2x256xf32>
    %412 = vector.broadcast %405 : f32 to vector<2x256xf32>
    %413 = arith.mulf %412, %411 : vector<2x256xf32>
    %414 = arith.addf %404, %413 : vector<2x256xf32>
    %c41 = arith.constant 41 : index
    %415 = memref.load %arg1[%c41] : memref<98xf32, #tpu.memory_space<smem>>
    %c0_138 = arith.constant 0 : index
    %c0_139 = arith.constant 0 : index
    %c163 = arith.constant 163 : index
    %416 = vector.load %arg6[%c0_138, %c0_139, %c163] : memref<2x2x435xf32, #tpu.memory_space<vmem>>, vector<1x2x256xf32>
    %417 = vector.shape_cast %416 : vector<1x2x256xf32> to vector<2x256xf32>
    %cst_140 = arith.constant 0.000000e+00 : f32
    %418 = vector.shape_cast %25 : vector<1x256xi1> to vector<1x256xi1>
    %419 = vector.broadcast %418 : vector<1x256xi1> to vector<2x256xi1>
    %420 = vector.broadcast %cst_140 : f32 to vector<2x256xf32>
    %421 = arith.select %419, %417, %420 : vector<2x256xi1>, vector<2x256xf32>
    %422 = vector.broadcast %415 : f32 to vector<2x256xf32>
    %423 = arith.mulf %422, %421 : vector<2x256xf32>
    %424 = arith.addf %414, %423 : vector<2x256xf32>
    %c42 = arith.constant 42 : index
    %425 = memref.load %arg1[%c42] : memref<98xf32, #tpu.memory_space<smem>>
    %c0_141 = arith.constant 0 : index
    %c0_142 = arith.constant 0 : index
    %c173 = arith.constant 173 : index
    %426 = vector.load %arg6[%c0_141, %c0_142, %c173] : memref<2x2x435xf32, #tpu.memory_space<vmem>>, vector<1x2x256xf32>
    %427 = vector.shape_cast %426 : vector<1x2x256xf32> to vector<2x256xf32>
    %cst_143 = arith.constant 0.000000e+00 : f32
    %428 = vector.shape_cast %27 : vector<1x256xi1> to vector<1x256xi1>
    %429 = vector.broadcast %428 : vector<1x256xi1> to vector<2x256xi1>
    %430 = vector.broadcast %cst_143 : f32 to vector<2x256xf32>
    %431 = arith.select %429, %427, %430 : vector<2x256xi1>, vector<2x256xf32>
    %432 = vector.broadcast %425 : f32 to vector<2x256xf32>
    %433 = arith.mulf %432, %431 : vector<2x256xf32>
    %434 = arith.addf %424, %433 : vector<2x256xf32>
    %c43 = arith.constant 43 : index
    %435 = memref.load %arg1[%c43] : memref<98xf32, #tpu.memory_space<smem>>
    %c0_144 = arith.constant 0 : index
    %c0_145 = arith.constant 0 : index
    %c174 = arith.constant 174 : index
    %436 = vector.load %arg6[%c0_144, %c0_145, %c174] : memref<2x2x435xf32, #tpu.memory_space<vmem>>, vector<1x2x256xf32>
    %437 = vector.shape_cast %436 : vector<1x2x256xf32> to vector<2x256xf32>
    %cst_146 = arith.constant 0.000000e+00 : f32
    %438 = vector.shape_cast %23 : vector<1x256xi1> to vector<1x256xi1>
    %439 = vector.broadcast %438 : vector<1x256xi1> to vector<2x256xi1>
    %440 = vector.broadcast %cst_146 : f32 to vector<2x256xf32>
    %441 = arith.select %439, %437, %440 : vector<2x256xi1>, vector<2x256xf32>
    %442 = vector.broadcast %435 : f32 to vector<2x256xf32>
    %443 = arith.mulf %442, %441 : vector<2x256xf32>
    %444 = arith.addf %434, %443 : vector<2x256xf32>
    %c44 = arith.constant 44 : index
    %445 = memref.load %arg1[%c44] : memref<98xf32, #tpu.memory_space<smem>>
    %c0_147 = arith.constant 0 : index
    %c0_148 = arith.constant 0 : index
    %c175 = arith.constant 175 : index
    %446 = vector.load %arg6[%c0_147, %c0_148, %c175] : memref<2x2x435xf32, #tpu.memory_space<vmem>>, vector<1x2x256xf32>
    %447 = vector.shape_cast %446 : vector<1x2x256xf32> to vector<2x256xf32>
    %cst_149 = arith.constant 0.000000e+00 : f32
    %448 = vector.shape_cast %19 : vector<1x256xi1> to vector<1x256xi1>
    %449 = vector.broadcast %448 : vector<1x256xi1> to vector<2x256xi1>
    %450 = vector.broadcast %cst_149 : f32 to vector<2x256xf32>
    %451 = arith.select %449, %447, %450 : vector<2x256xi1>, vector<2x256xf32>
    %452 = vector.broadcast %445 : f32 to vector<2x256xf32>
    %453 = arith.mulf %452, %451 : vector<2x256xf32>
    %454 = arith.addf %444, %453 : vector<2x256xf32>
    %c45 = arith.constant 45 : index
    %455 = memref.load %arg1[%c45] : memref<98xf32, #tpu.memory_space<smem>>
    %c0_150 = arith.constant 0 : index
    %c0_151 = arith.constant 0 : index
    %c176 = arith.constant 176 : index
    %456 = vector.load %arg6[%c0_150, %c0_151, %c176] : memref<2x2x435xf32, #tpu.memory_space<vmem>>, vector<1x2x256xf32>
    %457 = vector.shape_cast %456 : vector<1x2x256xf32> to vector<2x256xf32>
    %458 = vector.broadcast %455 : f32 to vector<2x256xf32>
    %459 = arith.mulf %458, %457 : vector<2x256xf32>
    %460 = arith.addf %454, %459 : vector<2x256xf32>
    %c46 = arith.constant 46 : index
    %461 = memref.load %arg1[%c46] : memref<98xf32, #tpu.memory_space<smem>>
    %c0_152 = arith.constant 0 : index
    %c0_153 = arith.constant 0 : index
    %c177 = arith.constant 177 : index
    %462 = vector.load %arg6[%c0_152, %c0_153, %c177] : memref<2x2x435xf32, #tpu.memory_space<vmem>>, vector<1x2x256xf32>
    %463 = vector.shape_cast %462 : vector<1x2x256xf32> to vector<2x256xf32>
    %cst_154 = arith.constant 0.000000e+00 : f32
    %464 = vector.shape_cast %17 : vector<1x256xi1> to vector<1x256xi1>
    %465 = vector.broadcast %464 : vector<1x256xi1> to vector<2x256xi1>
    %466 = vector.broadcast %cst_154 : f32 to vector<2x256xf32>
    %467 = arith.select %465, %463, %466 : vector<2x256xi1>, vector<2x256xf32>
    %468 = vector.broadcast %461 : f32 to vector<2x256xf32>
    %469 = arith.mulf %468, %467 : vector<2x256xf32>
    %470 = arith.addf %460, %469 : vector<2x256xf32>
    %c47 = arith.constant 47 : index
    %471 = memref.load %arg1[%c47] : memref<98xf32, #tpu.memory_space<smem>>
    %c0_155 = arith.constant 0 : index
    %c0_156 = arith.constant 0 : index
    %c178 = arith.constant 178 : index
    %472 = vector.load %arg6[%c0_155, %c0_156, %c178] : memref<2x2x435xf32, #tpu.memory_space<vmem>>, vector<1x2x256xf32>
    %473 = vector.shape_cast %472 : vector<1x2x256xf32> to vector<2x256xf32>
    %cst_157 = arith.constant 0.000000e+00 : f32
    %474 = vector.shape_cast %21 : vector<1x256xi1> to vector<1x256xi1>
    %475 = vector.broadcast %474 : vector<1x256xi1> to vector<2x256xi1>
    %476 = vector.broadcast %cst_157 : f32 to vector<2x256xf32>
    %477 = arith.select %475, %473, %476 : vector<2x256xi1>, vector<2x256xf32>
    %478 = vector.broadcast %471 : f32 to vector<2x256xf32>
    %479 = arith.mulf %478, %477 : vector<2x256xf32>
    %480 = arith.addf %470, %479 : vector<2x256xf32>
    %c48 = arith.constant 48 : index
    %481 = memref.load %arg1[%c48] : memref<98xf32, #tpu.memory_space<smem>>
    %c0_158 = arith.constant 0 : index
    %c0_159 = arith.constant 0 : index
    %c179 = arith.constant 179 : index
    %482 = vector.load %arg6[%c0_158, %c0_159, %c179] : memref<2x2x435xf32, #tpu.memory_space<vmem>>, vector<1x2x256xf32>
    %483 = vector.shape_cast %482 : vector<1x2x256xf32> to vector<2x256xf32>
    %cst_160 = arith.constant 0.000000e+00 : f32
    %484 = vector.shape_cast %25 : vector<1x256xi1> to vector<1x256xi1>
    %485 = vector.broadcast %484 : vector<1x256xi1> to vector<2x256xi1>
    %486 = vector.broadcast %cst_160 : f32 to vector<2x256xf32>
    %487 = arith.select %485, %483, %486 : vector<2x256xi1>, vector<2x256xf32>
    %488 = vector.broadcast %481 : f32 to vector<2x256xf32>
    %489 = arith.mulf %488, %487 : vector<2x256xf32>
    %490 = arith.addf %480, %489 : vector<2x256xf32>
    %c49 = arith.constant 49 : index
    %491 = memref.load %arg1[%c49] : memref<98xf32, #tpu.memory_space<smem>>
    %c1_161 = arith.constant 1 : index
    %c0_162 = arith.constant 0 : index
    %c77_163 = arith.constant 77 : index
    %492 = vector.load %arg6[%c1_161, %c0_162, %c77_163] : memref<2x2x435xf32, #tpu.memory_space<vmem>>, vector<1x2x256xf32>
    %493 = vector.shape_cast %492 : vector<1x2x256xf32> to vector<2x256xf32>
    %cst_164 = arith.constant 0.000000e+00 : f32
    %494 = vector.shape_cast %27 : vector<1x256xi1> to vector<1x256xi1>
    %495 = vector.broadcast %494 : vector<1x256xi1> to vector<2x256xi1>
    %496 = vector.broadcast %cst_164 : f32 to vector<2x256xf32>
    %497 = arith.select %495, %493, %496 : vector<2x256xi1>, vector<2x256xf32>
    %498 = vector.broadcast %491 : f32 to vector<2x256xf32>
    %499 = arith.mulf %498, %497 : vector<2x256xf32>
    %500 = arith.addf %490, %499 : vector<2x256xf32>
    %c50 = arith.constant 50 : index
    %501 = memref.load %arg1[%c50] : memref<98xf32, #tpu.memory_space<smem>>
    %c1_165 = arith.constant 1 : index
    %c0_166 = arith.constant 0 : index
    %c78_167 = arith.constant 78 : index
    %502 = vector.load %arg6[%c1_165, %c0_166, %c78_167] : memref<2x2x435xf32, #tpu.memory_space<vmem>>, vector<1x2x256xf32>
    %503 = vector.shape_cast %502 : vector<1x2x256xf32> to vector<2x256xf32>
    %cst_168 = arith.constant 0.000000e+00 : f32
    %504 = vector.shape_cast %23 : vector<1x256xi1> to vector<1x256xi1>
    %505 = vector.broadcast %504 : vector<1x256xi1> to vector<2x256xi1>
    %506 = vector.broadcast %cst_168 : f32 to vector<2x256xf32>
    %507 = arith.select %505, %503, %506 : vector<2x256xi1>, vector<2x256xf32>
    %508 = vector.broadcast %501 : f32 to vector<2x256xf32>
    %509 = arith.mulf %508, %507 : vector<2x256xf32>
    %510 = arith.addf %500, %509 : vector<2x256xf32>
    %c51 = arith.constant 51 : index
    %511 = memref.load %arg1[%c51] : memref<98xf32, #tpu.memory_space<smem>>
    %c1_169 = arith.constant 1 : index
    %c0_170 = arith.constant 0 : index
    %c79_171 = arith.constant 79 : index
    %512 = vector.load %arg6[%c1_169, %c0_170, %c79_171] : memref<2x2x435xf32, #tpu.memory_space<vmem>>, vector<1x2x256xf32>
    %513 = vector.shape_cast %512 : vector<1x2x256xf32> to vector<2x256xf32>
    %cst_172 = arith.constant 0.000000e+00 : f32
    %514 = vector.shape_cast %19 : vector<1x256xi1> to vector<1x256xi1>
    %515 = vector.broadcast %514 : vector<1x256xi1> to vector<2x256xi1>
    %516 = vector.broadcast %cst_172 : f32 to vector<2x256xf32>
    %517 = arith.select %515, %513, %516 : vector<2x256xi1>, vector<2x256xf32>
    %518 = vector.broadcast %511 : f32 to vector<2x256xf32>
    %519 = arith.mulf %518, %517 : vector<2x256xf32>
    %520 = arith.addf %510, %519 : vector<2x256xf32>
    %c52 = arith.constant 52 : index
    %521 = memref.load %arg1[%c52] : memref<98xf32, #tpu.memory_space<smem>>
    %c1_173 = arith.constant 1 : index
    %c0_174 = arith.constant 0 : index
    %c80_175 = arith.constant 80 : index
    %522 = vector.load %arg6[%c1_173, %c0_174, %c80_175] : memref<2x2x435xf32, #tpu.memory_space<vmem>>, vector<1x2x256xf32>
    %523 = vector.shape_cast %522 : vector<1x2x256xf32> to vector<2x256xf32>
    %524 = vector.broadcast %521 : f32 to vector<2x256xf32>
    %525 = arith.mulf %524, %523 : vector<2x256xf32>
    %526 = arith.addf %520, %525 : vector<2x256xf32>
    %c53 = arith.constant 53 : index
    %527 = memref.load %arg1[%c53] : memref<98xf32, #tpu.memory_space<smem>>
    %c1_176 = arith.constant 1 : index
    %c0_177 = arith.constant 0 : index
    %c81_178 = arith.constant 81 : index
    %528 = vector.load %arg6[%c1_176, %c0_177, %c81_178] : memref<2x2x435xf32, #tpu.memory_space<vmem>>, vector<1x2x256xf32>
    %529 = vector.shape_cast %528 : vector<1x2x256xf32> to vector<2x256xf32>
    %cst_179 = arith.constant 0.000000e+00 : f32
    %530 = vector.shape_cast %17 : vector<1x256xi1> to vector<1x256xi1>
    %531 = vector.broadcast %530 : vector<1x256xi1> to vector<2x256xi1>
    %532 = vector.broadcast %cst_179 : f32 to vector<2x256xf32>
    %533 = arith.select %531, %529, %532 : vector<2x256xi1>, vector<2x256xf32>
    %534 = vector.broadcast %527 : f32 to vector<2x256xf32>
    %535 = arith.mulf %534, %533 : vector<2x256xf32>
    %536 = arith.addf %526, %535 : vector<2x256xf32>
    %c54 = arith.constant 54 : index
    %537 = memref.load %arg1[%c54] : memref<98xf32, #tpu.memory_space<smem>>
    %c1_180 = arith.constant 1 : index
    %c0_181 = arith.constant 0 : index
    %c82_182 = arith.constant 82 : index
    %538 = vector.load %arg6[%c1_180, %c0_181, %c82_182] : memref<2x2x435xf32, #tpu.memory_space<vmem>>, vector<1x2x256xf32>
    %539 = vector.shape_cast %538 : vector<1x2x256xf32> to vector<2x256xf32>
    %cst_183 = arith.constant 0.000000e+00 : f32
    %540 = vector.shape_cast %21 : vector<1x256xi1> to vector<1x256xi1>
    %541 = vector.broadcast %540 : vector<1x256xi1> to vector<2x256xi1>
    %542 = vector.broadcast %cst_183 : f32 to vector<2x256xf32>
    %543 = arith.select %541, %539, %542 : vector<2x256xi1>, vector<2x256xf32>
    %544 = vector.broadcast %537 : f32 to vector<2x256xf32>
    %545 = arith.mulf %544, %543 : vector<2x256xf32>
    %546 = arith.addf %536, %545 : vector<2x256xf32>
    %c55 = arith.constant 55 : index
    %547 = memref.load %arg1[%c55] : memref<98xf32, #tpu.memory_space<smem>>
    %c1_184 = arith.constant 1 : index
    %c0_185 = arith.constant 0 : index
    %c83_186 = arith.constant 83 : index
    %548 = vector.load %arg6[%c1_184, %c0_185, %c83_186] : memref<2x2x435xf32, #tpu.memory_space<vmem>>, vector<1x2x256xf32>
    %549 = vector.shape_cast %548 : vector<1x2x256xf32> to vector<2x256xf32>
    %cst_187 = arith.constant 0.000000e+00 : f32
    %550 = vector.shape_cast %25 : vector<1x256xi1> to vector<1x256xi1>
    %551 = vector.broadcast %550 : vector<1x256xi1> to vector<2x256xi1>
    %552 = vector.broadcast %cst_187 : f32 to vector<2x256xf32>
    %553 = arith.select %551, %549, %552 : vector<2x256xi1>, vector<2x256xf32>
    %554 = vector.broadcast %547 : f32 to vector<2x256xf32>
    %555 = arith.mulf %554, %553 : vector<2x256xf32>
    %556 = arith.addf %546, %555 : vector<2x256xf32>
    %c56 = arith.constant 56 : index
    %557 = memref.load %arg1[%c56] : memref<98xf32, #tpu.memory_space<smem>>
    %c1_188 = arith.constant 1 : index
    %c0_189 = arith.constant 0 : index
    %c93_190 = arith.constant 93 : index
    %558 = vector.load %arg6[%c1_188, %c0_189, %c93_190] : memref<2x2x435xf32, #tpu.memory_space<vmem>>, vector<1x2x256xf32>
    %559 = vector.shape_cast %558 : vector<1x2x256xf32> to vector<2x256xf32>
    %cst_191 = arith.constant 0.000000e+00 : f32
    %560 = vector.shape_cast %27 : vector<1x256xi1> to vector<1x256xi1>
    %561 = vector.broadcast %560 : vector<1x256xi1> to vector<2x256xi1>
    %562 = vector.broadcast %cst_191 : f32 to vector<2x256xf32>
    %563 = arith.select %561, %559, %562 : vector<2x256xi1>, vector<2x256xf32>
    %564 = vector.broadcast %557 : f32 to vector<2x256xf32>
    %565 = arith.mulf %564, %563 : vector<2x256xf32>
    %566 = arith.addf %556, %565 : vector<2x256xf32>
    %c57 = arith.constant 57 : index
    %567 = memref.load %arg1[%c57] : memref<98xf32, #tpu.memory_space<smem>>
    %c1_192 = arith.constant 1 : index
    %c0_193 = arith.constant 0 : index
    %c94_194 = arith.constant 94 : index
    %568 = vector.load %arg6[%c1_192, %c0_193, %c94_194] : memref<2x2x435xf32, #tpu.memory_space<vmem>>, vector<1x2x256xf32>
    %569 = vector.shape_cast %568 : vector<1x2x256xf32> to vector<2x256xf32>
    %cst_195 = arith.constant 0.000000e+00 : f32
    %570 = vector.shape_cast %23 : vector<1x256xi1> to vector<1x256xi1>
    %571 = vector.broadcast %570 : vector<1x256xi1> to vector<2x256xi1>
    %572 = vector.broadcast %cst_195 : f32 to vector<2x256xf32>
    %573 = arith.select %571, %569, %572 : vector<2x256xi1>, vector<2x256xf32>
    %574 = vector.broadcast %567 : f32 to vector<2x256xf32>
    %575 = arith.mulf %574, %573 : vector<2x256xf32>
    %576 = arith.addf %566, %575 : vector<2x256xf32>
    %c58 = arith.constant 58 : index
    %577 = memref.load %arg1[%c58] : memref<98xf32, #tpu.memory_space<smem>>
    %c1_196 = arith.constant 1 : index
    %c0_197 = arith.constant 0 : index
    %c95_198 = arith.constant 95 : index
    %578 = vector.load %arg6[%c1_196, %c0_197, %c95_198] : memref<2x2x435xf32, #tpu.memory_space<vmem>>, vector<1x2x256xf32>
    %579 = vector.shape_cast %578 : vector<1x2x256xf32> to vector<2x256xf32>
    %cst_199 = arith.constant 0.000000e+00 : f32
    %580 = vector.shape_cast %19 : vector<1x256xi1> to vector<1x256xi1>
    %581 = vector.broadcast %580 : vector<1x256xi1> to vector<2x256xi1>
    %582 = vector.broadcast %cst_199 : f32 to vector<2x256xf32>
    %583 = arith.select %581, %579, %582 : vector<2x256xi1>, vector<2x256xf32>
    %584 = vector.broadcast %577 : f32 to vector<2x256xf32>
    %585 = arith.mulf %584, %583 : vector<2x256xf32>
    %586 = arith.addf %576, %585 : vector<2x256xf32>
    %c59 = arith.constant 59 : index
    %587 = memref.load %arg1[%c59] : memref<98xf32, #tpu.memory_space<smem>>
    %c1_200 = arith.constant 1 : index
    %c0_201 = arith.constant 0 : index
    %c96_202 = arith.constant 96 : index
    %588 = vector.load %arg6[%c1_200, %c0_201, %c96_202] : memref<2x2x435xf32, #tpu.memory_space<vmem>>, vector<1x2x256xf32>
    %589 = vector.shape_cast %588 : vector<1x2x256xf32> to vector<2x256xf32>
    %590 = vector.broadcast %587 : f32 to vector<2x256xf32>
    %591 = arith.mulf %590, %589 : vector<2x256xf32>
    %592 = arith.addf %586, %591 : vector<2x256xf32>
    %c60 = arith.constant 60 : index
    %593 = memref.load %arg1[%c60] : memref<98xf32, #tpu.memory_space<smem>>
    %c1_203 = arith.constant 1 : index
    %c0_204 = arith.constant 0 : index
    %c97_205 = arith.constant 97 : index
    %594 = vector.load %arg6[%c1_203, %c0_204, %c97_205] : memref<2x2x435xf32, #tpu.memory_space<vmem>>, vector<1x2x256xf32>
    %595 = vector.shape_cast %594 : vector<1x2x256xf32> to vector<2x256xf32>
    %cst_206 = arith.constant 0.000000e+00 : f32
    %596 = vector.shape_cast %17 : vector<1x256xi1> to vector<1x256xi1>
    %597 = vector.broadcast %596 : vector<1x256xi1> to vector<2x256xi1>
    %598 = vector.broadcast %cst_206 : f32 to vector<2x256xf32>
    %599 = arith.select %597, %595, %598 : vector<2x256xi1>, vector<2x256xf32>
    %600 = vector.broadcast %593 : f32 to vector<2x256xf32>
    %601 = arith.mulf %600, %599 : vector<2x256xf32>
    %602 = arith.addf %592, %601 : vector<2x256xf32>
    %c61 = arith.constant 61 : index
    %603 = memref.load %arg1[%c61] : memref<98xf32, #tpu.memory_space<smem>>
    %c1_207 = arith.constant 1 : index
    %c0_208 = arith.constant 0 : index
    %c98_209 = arith.constant 98 : index
    %604 = vector.load %arg6[%c1_207, %c0_208, %c98_209] : memref<2x2x435xf32, #tpu.memory_space<vmem>>, vector<1x2x256xf32>
    %605 = vector.shape_cast %604 : vector<1x2x256xf32> to vector<2x256xf32>
    %cst_210 = arith.constant 0.000000e+00 : f32
    %606 = vector.shape_cast %21 : vector<1x256xi1> to vector<1x256xi1>
    %607 = vector.broadcast %606 : vector<1x256xi1> to vector<2x256xi1>
    %608 = vector.broadcast %cst_210 : f32 to vector<2x256xf32>
    %609 = arith.select %607, %605, %608 : vector<2x256xi1>, vector<2x256xf32>
    %610 = vector.broadcast %603 : f32 to vector<2x256xf32>
    %611 = arith.mulf %610, %609 : vector<2x256xf32>
    %612 = arith.addf %602, %611 : vector<2x256xf32>
    %c62 = arith.constant 62 : index
    %613 = memref.load %arg1[%c62] : memref<98xf32, #tpu.memory_space<smem>>
    %c1_211 = arith.constant 1 : index
    %c0_212 = arith.constant 0 : index
    %c99_213 = arith.constant 99 : index
    %614 = vector.load %arg6[%c1_211, %c0_212, %c99_213] : memref<2x2x435xf32, #tpu.memory_space<vmem>>, vector<1x2x256xf32>
    %615 = vector.shape_cast %614 : vector<1x2x256xf32> to vector<2x256xf32>
    %cst_214 = arith.constant 0.000000e+00 : f32
    %616 = vector.shape_cast %25 : vector<1x256xi1> to vector<1x256xi1>
    %617 = vector.broadcast %616 : vector<1x256xi1> to vector<2x256xi1>
    %618 = vector.broadcast %cst_214 : f32 to vector<2x256xf32>
    %619 = arith.select %617, %615, %618 : vector<2x256xi1>, vector<2x256xf32>
    %620 = vector.broadcast %613 : f32 to vector<2x256xf32>
    %621 = arith.mulf %620, %619 : vector<2x256xf32>
    %622 = arith.addf %612, %621 : vector<2x256xf32>
    %c63 = arith.constant 63 : index
    %623 = memref.load %arg1[%c63] : memref<98xf32, #tpu.memory_space<smem>>
    %c1_215 = arith.constant 1 : index
    %c0_216 = arith.constant 0 : index
    %c109_217 = arith.constant 109 : index
    %624 = vector.load %arg6[%c1_215, %c0_216, %c109_217] : memref<2x2x435xf32, #tpu.memory_space<vmem>>, vector<1x2x256xf32>
    %625 = vector.shape_cast %624 : vector<1x2x256xf32> to vector<2x256xf32>
    %cst_218 = arith.constant 0.000000e+00 : f32
    %626 = vector.shape_cast %27 : vector<1x256xi1> to vector<1x256xi1>
    %627 = vector.broadcast %626 : vector<1x256xi1> to vector<2x256xi1>
    %628 = vector.broadcast %cst_218 : f32 to vector<2x256xf32>
    %629 = arith.select %627, %625, %628 : vector<2x256xi1>, vector<2x256xf32>
    %630 = vector.broadcast %623 : f32 to vector<2x256xf32>
    %631 = arith.mulf %630, %629 : vector<2x256xf32>
    %632 = arith.addf %622, %631 : vector<2x256xf32>
    %c64 = arith.constant 64 : index
    %633 = memref.load %arg1[%c64] : memref<98xf32, #tpu.memory_space<smem>>
    %c1_219 = arith.constant 1 : index
    %c0_220 = arith.constant 0 : index
    %c110_221 = arith.constant 110 : index
    %634 = vector.load %arg6[%c1_219, %c0_220, %c110_221] : memref<2x2x435xf32, #tpu.memory_space<vmem>>, vector<1x2x256xf32>
    %635 = vector.shape_cast %634 : vector<1x2x256xf32> to vector<2x256xf32>
    %cst_222 = arith.constant 0.000000e+00 : f32
    %636 = vector.shape_cast %23 : vector<1x256xi1> to vector<1x256xi1>
    %637 = vector.broadcast %636 : vector<1x256xi1> to vector<2x256xi1>
    %638 = vector.broadcast %cst_222 : f32 to vector<2x256xf32>
    %639 = arith.select %637, %635, %638 : vector<2x256xi1>, vector<2x256xf32>
    %640 = vector.broadcast %633 : f32 to vector<2x256xf32>
    %641 = arith.mulf %640, %639 : vector<2x256xf32>
    %642 = arith.addf %632, %641 : vector<2x256xf32>
    %c65 = arith.constant 65 : index
    %643 = memref.load %arg1[%c65] : memref<98xf32, #tpu.memory_space<smem>>
    %c1_223 = arith.constant 1 : index
    %c0_224 = arith.constant 0 : index
    %c111_225 = arith.constant 111 : index
    %644 = vector.load %arg6[%c1_223, %c0_224, %c111_225] : memref<2x2x435xf32, #tpu.memory_space<vmem>>, vector<1x2x256xf32>
    %645 = vector.shape_cast %644 : vector<1x2x256xf32> to vector<2x256xf32>
    %cst_226 = arith.constant 0.000000e+00 : f32
    %646 = vector.shape_cast %19 : vector<1x256xi1> to vector<1x256xi1>
    %647 = vector.broadcast %646 : vector<1x256xi1> to vector<2x256xi1>
    %648 = vector.broadcast %cst_226 : f32 to vector<2x256xf32>
    %649 = arith.select %647, %645, %648 : vector<2x256xi1>, vector<2x256xf32>
    %650 = vector.broadcast %643 : f32 to vector<2x256xf32>
    %651 = arith.mulf %650, %649 : vector<2x256xf32>
    %652 = arith.addf %642, %651 : vector<2x256xf32>
    %c66 = arith.constant 66 : index
    %653 = memref.load %arg1[%c66] : memref<98xf32, #tpu.memory_space<smem>>
    %c1_227 = arith.constant 1 : index
    %c0_228 = arith.constant 0 : index
    %c112_229 = arith.constant 112 : index
    %654 = vector.load %arg6[%c1_227, %c0_228, %c112_229] : memref<2x2x435xf32, #tpu.memory_space<vmem>>, vector<1x2x256xf32>
    %655 = vector.shape_cast %654 : vector<1x2x256xf32> to vector<2x256xf32>
    %656 = vector.broadcast %653 : f32 to vector<2x256xf32>
    %657 = arith.mulf %656, %655 : vector<2x256xf32>
    %658 = arith.addf %652, %657 : vector<2x256xf32>
    %c67 = arith.constant 67 : index
    %659 = memref.load %arg1[%c67] : memref<98xf32, #tpu.memory_space<smem>>
    %c1_230 = arith.constant 1 : index
    %c0_231 = arith.constant 0 : index
    %c113_232 = arith.constant 113 : index
    %660 = vector.load %arg6[%c1_230, %c0_231, %c113_232] : memref<2x2x435xf32, #tpu.memory_space<vmem>>, vector<1x2x256xf32>
    %661 = vector.shape_cast %660 : vector<1x2x256xf32> to vector<2x256xf32>
    %cst_233 = arith.constant 0.000000e+00 : f32
    %662 = vector.shape_cast %17 : vector<1x256xi1> to vector<1x256xi1>
    %663 = vector.broadcast %662 : vector<1x256xi1> to vector<2x256xi1>
    %664 = vector.broadcast %cst_233 : f32 to vector<2x256xf32>
    %665 = arith.select %663, %661, %664 : vector<2x256xi1>, vector<2x256xf32>
    %666 = vector.broadcast %659 : f32 to vector<2x256xf32>
    %667 = arith.mulf %666, %665 : vector<2x256xf32>
    %668 = arith.addf %658, %667 : vector<2x256xf32>
    %c68 = arith.constant 68 : index
    %669 = memref.load %arg1[%c68] : memref<98xf32, #tpu.memory_space<smem>>
    %c1_234 = arith.constant 1 : index
    %c0_235 = arith.constant 0 : index
    %c114_236 = arith.constant 114 : index
    %670 = vector.load %arg6[%c1_234, %c0_235, %c114_236] : memref<2x2x435xf32, #tpu.memory_space<vmem>>, vector<1x2x256xf32>
    %671 = vector.shape_cast %670 : vector<1x2x256xf32> to vector<2x256xf32>
    %cst_237 = arith.constant 0.000000e+00 : f32
    %672 = vector.shape_cast %21 : vector<1x256xi1> to vector<1x256xi1>
    %673 = vector.broadcast %672 : vector<1x256xi1> to vector<2x256xi1>
    %674 = vector.broadcast %cst_237 : f32 to vector<2x256xf32>
    %675 = arith.select %673, %671, %674 : vector<2x256xi1>, vector<2x256xf32>
    %676 = vector.broadcast %669 : f32 to vector<2x256xf32>
    %677 = arith.mulf %676, %675 : vector<2x256xf32>
    %678 = arith.addf %668, %677 : vector<2x256xf32>
    %c69 = arith.constant 69 : index
    %679 = memref.load %arg1[%c69] : memref<98xf32, #tpu.memory_space<smem>>
    %c1_238 = arith.constant 1 : index
    %c0_239 = arith.constant 0 : index
    %c115_240 = arith.constant 115 : index
    %680 = vector.load %arg6[%c1_238, %c0_239, %c115_240] : memref<2x2x435xf32, #tpu.memory_space<vmem>>, vector<1x2x256xf32>
    %681 = vector.shape_cast %680 : vector<1x2x256xf32> to vector<2x256xf32>
    %cst_241 = arith.constant 0.000000e+00 : f32
    %682 = vector.shape_cast %25 : vector<1x256xi1> to vector<1x256xi1>
    %683 = vector.broadcast %682 : vector<1x256xi1> to vector<2x256xi1>
    %684 = vector.broadcast %cst_241 : f32 to vector<2x256xf32>
    %685 = arith.select %683, %681, %684 : vector<2x256xi1>, vector<2x256xf32>
    %686 = vector.broadcast %679 : f32 to vector<2x256xf32>
    %687 = arith.mulf %686, %685 : vector<2x256xf32>
    %688 = arith.addf %678, %687 : vector<2x256xf32>
    %c70 = arith.constant 70 : index
    %689 = memref.load %arg1[%c70] : memref<98xf32, #tpu.memory_space<smem>>
    %c1_242 = arith.constant 1 : index
    %c0_243 = arith.constant 0 : index
    %c125_244 = arith.constant 125 : index
    %690 = vector.load %arg6[%c1_242, %c0_243, %c125_244] : memref<2x2x435xf32, #tpu.memory_space<vmem>>, vector<1x2x256xf32>
    %691 = vector.shape_cast %690 : vector<1x2x256xf32> to vector<2x256xf32>
    %cst_245 = arith.constant 0.000000e+00 : f32
    %692 = vector.shape_cast %27 : vector<1x256xi1> to vector<1x256xi1>
    %693 = vector.broadcast %692 : vector<1x256xi1> to vector<2x256xi1>
    %694 = vector.broadcast %cst_245 : f32 to vector<2x256xf32>
    %695 = arith.select %693, %691, %694 : vector<2x256xi1>, vector<2x256xf32>
    %696 = vector.broadcast %689 : f32 to vector<2x256xf32>
    %697 = arith.mulf %696, %695 : vector<2x256xf32>
    %698 = arith.addf %688, %697 : vector<2x256xf32>
    %c71 = arith.constant 71 : index
    %699 = memref.load %arg1[%c71] : memref<98xf32, #tpu.memory_space<smem>>
    %c1_246 = arith.constant 1 : index
    %c0_247 = arith.constant 0 : index
    %c126_248 = arith.constant 126 : index
    %700 = vector.load %arg6[%c1_246, %c0_247, %c126_248] : memref<2x2x435xf32, #tpu.memory_space<vmem>>, vector<1x2x256xf32>
    %701 = vector.shape_cast %700 : vector<1x2x256xf32> to vector<2x256xf32>
    %cst_249 = arith.constant 0.000000e+00 : f32
    %702 = vector.shape_cast %23 : vector<1x256xi1> to vector<1x256xi1>
    %703 = vector.broadcast %702 : vector<1x256xi1> to vector<2x256xi1>
    %704 = vector.broadcast %cst_249 : f32 to vector<2x256xf32>
    %705 = arith.select %703, %701, %704 : vector<2x256xi1>, vector<2x256xf32>
    %706 = vector.broadcast %699 : f32 to vector<2x256xf32>
    %707 = arith.mulf %706, %705 : vector<2x256xf32>
    %708 = arith.addf %698, %707 : vector<2x256xf32>
    %c72 = arith.constant 72 : index
    %709 = memref.load %arg1[%c72] : memref<98xf32, #tpu.memory_space<smem>>
    %c1_250 = arith.constant 1 : index
    %c0_251 = arith.constant 0 : index
    %c127_252 = arith.constant 127 : index
    %710 = vector.load %arg6[%c1_250, %c0_251, %c127_252] : memref<2x2x435xf32, #tpu.memory_space<vmem>>, vector<1x2x256xf32>
    %711 = vector.shape_cast %710 : vector<1x2x256xf32> to vector<2x256xf32>
    %cst_253 = arith.constant 0.000000e+00 : f32
    %712 = vector.shape_cast %19 : vector<1x256xi1> to vector<1x256xi1>
    %713 = vector.broadcast %712 : vector<1x256xi1> to vector<2x256xi1>
    %714 = vector.broadcast %cst_253 : f32 to vector<2x256xf32>
    %715 = arith.select %713, %711, %714 : vector<2x256xi1>, vector<2x256xf32>
    %716 = vector.broadcast %709 : f32 to vector<2x256xf32>
    %717 = arith.mulf %716, %715 : vector<2x256xf32>
    %718 = arith.addf %708, %717 : vector<2x256xf32>
    %c73 = arith.constant 73 : index
    %719 = memref.load %arg1[%c73] : memref<98xf32, #tpu.memory_space<smem>>
    %c1_254 = arith.constant 1 : index
    %c0_255 = arith.constant 0 : index
    %c128_256 = arith.constant 128 : index
    %720 = vector.load %arg6[%c1_254, %c0_255, %c128_256] : memref<2x2x435xf32, #tpu.memory_space<vmem>>, vector<1x2x256xf32>
    %721 = vector.shape_cast %720 : vector<1x2x256xf32> to vector<2x256xf32>
    %722 = vector.broadcast %719 : f32 to vector<2x256xf32>
    %723 = arith.mulf %722, %721 : vector<2x256xf32>
    %724 = arith.addf %718, %723 : vector<2x256xf32>
    %c74 = arith.constant 74 : index
    %725 = memref.load %arg1[%c74] : memref<98xf32, #tpu.memory_space<smem>>
    %c1_257 = arith.constant 1 : index
    %c0_258 = arith.constant 0 : index
    %c129_259 = arith.constant 129 : index
    %726 = vector.load %arg6[%c1_257, %c0_258, %c129_259] : memref<2x2x435xf32, #tpu.memory_space<vmem>>, vector<1x2x256xf32>
    %727 = vector.shape_cast %726 : vector<1x2x256xf32> to vector<2x256xf32>
    %cst_260 = arith.constant 0.000000e+00 : f32
    %728 = vector.shape_cast %17 : vector<1x256xi1> to vector<1x256xi1>
    %729 = vector.broadcast %728 : vector<1x256xi1> to vector<2x256xi1>
    %730 = vector.broadcast %cst_260 : f32 to vector<2x256xf32>
    %731 = arith.select %729, %727, %730 : vector<2x256xi1>, vector<2x256xf32>
    %732 = vector.broadcast %725 : f32 to vector<2x256xf32>
    %733 = arith.mulf %732, %731 : vector<2x256xf32>
    %734 = arith.addf %724, %733 : vector<2x256xf32>
    %c75 = arith.constant 75 : index
    %735 = memref.load %arg1[%c75] : memref<98xf32, #tpu.memory_space<smem>>
    %c1_261 = arith.constant 1 : index
    %c0_262 = arith.constant 0 : index
    %c130_263 = arith.constant 130 : index
    %736 = vector.load %arg6[%c1_261, %c0_262, %c130_263] : memref<2x2x435xf32, #tpu.memory_space<vmem>>, vector<1x2x256xf32>
    %737 = vector.shape_cast %736 : vector<1x2x256xf32> to vector<2x256xf32>
    %cst_264 = arith.constant 0.000000e+00 : f32
    %738 = vector.shape_cast %21 : vector<1x256xi1> to vector<1x256xi1>
    %739 = vector.broadcast %738 : vector<1x256xi1> to vector<2x256xi1>
    %740 = vector.broadcast %cst_264 : f32 to vector<2x256xf32>
    %741 = arith.select %739, %737, %740 : vector<2x256xi1>, vector<2x256xf32>
    %742 = vector.broadcast %735 : f32 to vector<2x256xf32>
    %743 = arith.mulf %742, %741 : vector<2x256xf32>
    %744 = arith.addf %734, %743 : vector<2x256xf32>
    %c76 = arith.constant 76 : index
    %745 = memref.load %arg1[%c76] : memref<98xf32, #tpu.memory_space<smem>>
    %c1_265 = arith.constant 1 : index
    %c0_266 = arith.constant 0 : index
    %c131_267 = arith.constant 131 : index
    %746 = vector.load %arg6[%c1_265, %c0_266, %c131_267] : memref<2x2x435xf32, #tpu.memory_space<vmem>>, vector<1x2x256xf32>
    %747 = vector.shape_cast %746 : vector<1x2x256xf32> to vector<2x256xf32>
    %cst_268 = arith.constant 0.000000e+00 : f32
    %748 = vector.shape_cast %25 : vector<1x256xi1> to vector<1x256xi1>
    %749 = vector.broadcast %748 : vector<1x256xi1> to vector<2x256xi1>
    %750 = vector.broadcast %cst_268 : f32 to vector<2x256xf32>
    %751 = arith.select %749, %747, %750 : vector<2x256xi1>, vector<2x256xf32>
    %752 = vector.broadcast %745 : f32 to vector<2x256xf32>
    %753 = arith.mulf %752, %751 : vector<2x256xf32>
    %754 = arith.addf %744, %753 : vector<2x256xf32>
    %c77_269 = arith.constant 77 : index
    %755 = memref.load %arg1[%c77_269] : memref<98xf32, #tpu.memory_space<smem>>
    %c1_270 = arith.constant 1 : index
    %c0_271 = arith.constant 0 : index
    %c141_272 = arith.constant 141 : index
    %756 = vector.load %arg6[%c1_270, %c0_271, %c141_272] : memref<2x2x435xf32, #tpu.memory_space<vmem>>, vector<1x2x256xf32>
    %757 = vector.shape_cast %756 : vector<1x2x256xf32> to vector<2x256xf32>
    %cst_273 = arith.constant 0.000000e+00 : f32
    %758 = vector.shape_cast %27 : vector<1x256xi1> to vector<1x256xi1>
    %759 = vector.broadcast %758 : vector<1x256xi1> to vector<2x256xi1>
    %760 = vector.broadcast %cst_273 : f32 to vector<2x256xf32>
    %761 = arith.select %759, %757, %760 : vector<2x256xi1>, vector<2x256xf32>
    %762 = vector.broadcast %755 : f32 to vector<2x256xf32>
    %763 = arith.mulf %762, %761 : vector<2x256xf32>
    %764 = arith.addf %754, %763 : vector<2x256xf32>
    %c78_274 = arith.constant 78 : index
    %765 = memref.load %arg1[%c78_274] : memref<98xf32, #tpu.memory_space<smem>>
    %c1_275 = arith.constant 1 : index
    %c0_276 = arith.constant 0 : index
    %c142_277 = arith.constant 142 : index
    %766 = vector.load %arg6[%c1_275, %c0_276, %c142_277] : memref<2x2x435xf32, #tpu.memory_space<vmem>>, vector<1x2x256xf32>
    %767 = vector.shape_cast %766 : vector<1x2x256xf32> to vector<2x256xf32>
    %cst_278 = arith.constant 0.000000e+00 : f32
    %768 = vector.shape_cast %23 : vector<1x256xi1> to vector<1x256xi1>
    %769 = vector.broadcast %768 : vector<1x256xi1> to vector<2x256xi1>
    %770 = vector.broadcast %cst_278 : f32 to vector<2x256xf32>
    %771 = arith.select %769, %767, %770 : vector<2x256xi1>, vector<2x256xf32>
    %772 = vector.broadcast %765 : f32 to vector<2x256xf32>
    %773 = arith.mulf %772, %771 : vector<2x256xf32>
    %774 = arith.addf %764, %773 : vector<2x256xf32>
    %c79_279 = arith.constant 79 : index
    %775 = memref.load %arg1[%c79_279] : memref<98xf32, #tpu.memory_space<smem>>
    %c1_280 = arith.constant 1 : index
    %c0_281 = arith.constant 0 : index
    %c143_282 = arith.constant 143 : index
    %776 = vector.load %arg6[%c1_280, %c0_281, %c143_282] : memref<2x2x435xf32, #tpu.memory_space<vmem>>, vector<1x2x256xf32>
    %777 = vector.shape_cast %776 : vector<1x2x256xf32> to vector<2x256xf32>
    %cst_283 = arith.constant 0.000000e+00 : f32
    %778 = vector.shape_cast %19 : vector<1x256xi1> to vector<1x256xi1>
    %779 = vector.broadcast %778 : vector<1x256xi1> to vector<2x256xi1>
    %780 = vector.broadcast %cst_283 : f32 to vector<2x256xf32>
    %781 = arith.select %779, %777, %780 : vector<2x256xi1>, vector<2x256xf32>
    %782 = vector.broadcast %775 : f32 to vector<2x256xf32>
    %783 = arith.mulf %782, %781 : vector<2x256xf32>
    %784 = arith.addf %774, %783 : vector<2x256xf32>
    %c80_284 = arith.constant 80 : index
    %785 = memref.load %arg1[%c80_284] : memref<98xf32, #tpu.memory_space<smem>>
    %c1_285 = arith.constant 1 : index
    %c0_286 = arith.constant 0 : index
    %c144_287 = arith.constant 144 : index
    %786 = vector.load %arg6[%c1_285, %c0_286, %c144_287] : memref<2x2x435xf32, #tpu.memory_space<vmem>>, vector<1x2x256xf32>
    %787 = vector.shape_cast %786 : vector<1x2x256xf32> to vector<2x256xf32>
    %788 = vector.broadcast %785 : f32 to vector<2x256xf32>
    %789 = arith.mulf %788, %787 : vector<2x256xf32>
    %790 = arith.addf %784, %789 : vector<2x256xf32>
    %c81_288 = arith.constant 81 : index
    %791 = memref.load %arg1[%c81_288] : memref<98xf32, #tpu.memory_space<smem>>
    %c1_289 = arith.constant 1 : index
    %c0_290 = arith.constant 0 : index
    %c145_291 = arith.constant 145 : index
    %792 = vector.load %arg6[%c1_289, %c0_290, %c145_291] : memref<2x2x435xf32, #tpu.memory_space<vmem>>, vector<1x2x256xf32>
    %793 = vector.shape_cast %792 : vector<1x2x256xf32> to vector<2x256xf32>
    %cst_292 = arith.constant 0.000000e+00 : f32
    %794 = vector.shape_cast %17 : vector<1x256xi1> to vector<1x256xi1>
    %795 = vector.broadcast %794 : vector<1x256xi1> to vector<2x256xi1>
    %796 = vector.broadcast %cst_292 : f32 to vector<2x256xf32>
    %797 = arith.select %795, %793, %796 : vector<2x256xi1>, vector<2x256xf32>
    %798 = vector.broadcast %791 : f32 to vector<2x256xf32>
    %799 = arith.mulf %798, %797 : vector<2x256xf32>
    %800 = arith.addf %790, %799 : vector<2x256xf32>
    %c82_293 = arith.constant 82 : index
    %801 = memref.load %arg1[%c82_293] : memref<98xf32, #tpu.memory_space<smem>>
    %c1_294 = arith.constant 1 : index
    %c0_295 = arith.constant 0 : index
    %c146_296 = arith.constant 146 : index
    %802 = vector.load %arg6[%c1_294, %c0_295, %c146_296] : memref<2x2x435xf32, #tpu.memory_space<vmem>>, vector<1x2x256xf32>
    %803 = vector.shape_cast %802 : vector<1x2x256xf32> to vector<2x256xf32>
    %cst_297 = arith.constant 0.000000e+00 : f32
    %804 = vector.shape_cast %21 : vector<1x256xi1> to vector<1x256xi1>
    %805 = vector.broadcast %804 : vector<1x256xi1> to vector<2x256xi1>
    %806 = vector.broadcast %cst_297 : f32 to vector<2x256xf32>
    %807 = arith.select %805, %803, %806 : vector<2x256xi1>, vector<2x256xf32>
    %808 = vector.broadcast %801 : f32 to vector<2x256xf32>
    %809 = arith.mulf %808, %807 : vector<2x256xf32>
    %810 = arith.addf %800, %809 : vector<2x256xf32>
    %c83_298 = arith.constant 83 : index
    %811 = memref.load %arg1[%c83_298] : memref<98xf32, #tpu.memory_space<smem>>
    %c1_299 = arith.constant 1 : index
    %c0_300 = arith.constant 0 : index
    %c147_301 = arith.constant 147 : index
    %812 = vector.load %arg6[%c1_299, %c0_300, %c147_301] : memref<2x2x435xf32, #tpu.memory_space<vmem>>, vector<1x2x256xf32>
    %813 = vector.shape_cast %812 : vector<1x2x256xf32> to vector<2x256xf32>
    %cst_302 = arith.constant 0.000000e+00 : f32
    %814 = vector.shape_cast %25 : vector<1x256xi1> to vector<1x256xi1>
    %815 = vector.broadcast %814 : vector<1x256xi1> to vector<2x256xi1>
    %816 = vector.broadcast %cst_302 : f32 to vector<2x256xf32>
    %817 = arith.select %815, %813, %816 : vector<2x256xi1>, vector<2x256xf32>
    %818 = vector.broadcast %811 : f32 to vector<2x256xf32>
    %819 = arith.mulf %818, %817 : vector<2x256xf32>
    %820 = arith.addf %810, %819 : vector<2x256xf32>
    %c84 = arith.constant 84 : index
    %821 = memref.load %arg1[%c84] : memref<98xf32, #tpu.memory_space<smem>>
    %c1_303 = arith.constant 1 : index
    %c0_304 = arith.constant 0 : index
    %c157_305 = arith.constant 157 : index
    %822 = vector.load %arg6[%c1_303, %c0_304, %c157_305] : memref<2x2x435xf32, #tpu.memory_space<vmem>>, vector<1x2x256xf32>
    %823 = vector.shape_cast %822 : vector<1x2x256xf32> to vector<2x256xf32>
    %cst_306 = arith.constant 0.000000e+00 : f32
    %824 = vector.shape_cast %27 : vector<1x256xi1> to vector<1x256xi1>
    %825 = vector.broadcast %824 : vector<1x256xi1> to vector<2x256xi1>
    %826 = vector.broadcast %cst_306 : f32 to vector<2x256xf32>
    %827 = arith.select %825, %823, %826 : vector<2x256xi1>, vector<2x256xf32>
    %828 = vector.broadcast %821 : f32 to vector<2x256xf32>
    %829 = arith.mulf %828, %827 : vector<2x256xf32>
    %830 = arith.addf %820, %829 : vector<2x256xf32>
    %c85 = arith.constant 85 : index
    %831 = memref.load %arg1[%c85] : memref<98xf32, #tpu.memory_space<smem>>
    %c1_307 = arith.constant 1 : index
    %c0_308 = arith.constant 0 : index
    %c158_309 = arith.constant 158 : index
    %832 = vector.load %arg6[%c1_307, %c0_308, %c158_309] : memref<2x2x435xf32, #tpu.memory_space<vmem>>, vector<1x2x256xf32>
    %833 = vector.shape_cast %832 : vector<1x2x256xf32> to vector<2x256xf32>
    %cst_310 = arith.constant 0.000000e+00 : f32
    %834 = vector.shape_cast %23 : vector<1x256xi1> to vector<1x256xi1>
    %835 = vector.broadcast %834 : vector<1x256xi1> to vector<2x256xi1>
    %836 = vector.broadcast %cst_310 : f32 to vector<2x256xf32>
    %837 = arith.select %835, %833, %836 : vector<2x256xi1>, vector<2x256xf32>
    %838 = vector.broadcast %831 : f32 to vector<2x256xf32>
    %839 = arith.mulf %838, %837 : vector<2x256xf32>
    %840 = arith.addf %830, %839 : vector<2x256xf32>
    %c86 = arith.constant 86 : index
    %841 = memref.load %arg1[%c86] : memref<98xf32, #tpu.memory_space<smem>>
    %c1_311 = arith.constant 1 : index
    %c0_312 = arith.constant 0 : index
    %c159_313 = arith.constant 159 : index
    %842 = vector.load %arg6[%c1_311, %c0_312, %c159_313] : memref<2x2x435xf32, #tpu.memory_space<vmem>>, vector<1x2x256xf32>
    %843 = vector.shape_cast %842 : vector<1x2x256xf32> to vector<2x256xf32>
    %cst_314 = arith.constant 0.000000e+00 : f32
    %844 = vector.shape_cast %19 : vector<1x256xi1> to vector<1x256xi1>
    %845 = vector.broadcast %844 : vector<1x256xi1> to vector<2x256xi1>
    %846 = vector.broadcast %cst_314 : f32 to vector<2x256xf32>
    %847 = arith.select %845, %843, %846 : vector<2x256xi1>, vector<2x256xf32>
    %848 = vector.broadcast %841 : f32 to vector<2x256xf32>
    %849 = arith.mulf %848, %847 : vector<2x256xf32>
    %850 = arith.addf %840, %849 : vector<2x256xf32>
    %c87 = arith.constant 87 : index
    %851 = memref.load %arg1[%c87] : memref<98xf32, #tpu.memory_space<smem>>
    %c1_315 = arith.constant 1 : index
    %c0_316 = arith.constant 0 : index
    %c160_317 = arith.constant 160 : index
    %852 = vector.load %arg6[%c1_315, %c0_316, %c160_317] : memref<2x2x435xf32, #tpu.memory_space<vmem>>, vector<1x2x256xf32>
    %853 = vector.shape_cast %852 : vector<1x2x256xf32> to vector<2x256xf32>
    %854 = vector.broadcast %851 : f32 to vector<2x256xf32>
    %855 = arith.mulf %854, %853 : vector<2x256xf32>
    %856 = arith.addf %850, %855 : vector<2x256xf32>
    %c88 = arith.constant 88 : index
    %857 = memref.load %arg1[%c88] : memref<98xf32, #tpu.memory_space<smem>>
    %c1_318 = arith.constant 1 : index
    %c0_319 = arith.constant 0 : index
    %c161_320 = arith.constant 161 : index
    %858 = vector.load %arg6[%c1_318, %c0_319, %c161_320] : memref<2x2x435xf32, #tpu.memory_space<vmem>>, vector<1x2x256xf32>
    %859 = vector.shape_cast %858 : vector<1x2x256xf32> to vector<2x256xf32>
    %cst_321 = arith.constant 0.000000e+00 : f32
    %860 = vector.shape_cast %17 : vector<1x256xi1> to vector<1x256xi1>
    %861 = vector.broadcast %860 : vector<1x256xi1> to vector<2x256xi1>
    %862 = vector.broadcast %cst_321 : f32 to vector<2x256xf32>
    %863 = arith.select %861, %859, %862 : vector<2x256xi1>, vector<2x256xf32>
    %864 = vector.broadcast %857 : f32 to vector<2x256xf32>
    %865 = arith.mulf %864, %863 : vector<2x256xf32>
    %866 = arith.addf %856, %865 : vector<2x256xf32>
    %c89 = arith.constant 89 : index
    %867 = memref.load %arg1[%c89] : memref<98xf32, #tpu.memory_space<smem>>
    %c1_322 = arith.constant 1 : index
    %c0_323 = arith.constant 0 : index
    %c162_324 = arith.constant 162 : index
    %868 = vector.load %arg6[%c1_322, %c0_323, %c162_324] : memref<2x2x435xf32, #tpu.memory_space<vmem>>, vector<1x2x256xf32>
    %869 = vector.shape_cast %868 : vector<1x2x256xf32> to vector<2x256xf32>
    %cst_325 = arith.constant 0.000000e+00 : f32
    %870 = vector.shape_cast %21 : vector<1x256xi1> to vector<1x256xi1>
    %871 = vector.broadcast %870 : vector<1x256xi1> to vector<2x256xi1>
    %872 = vector.broadcast %cst_325 : f32 to vector<2x256xf32>
    %873 = arith.select %871, %869, %872 : vector<2x256xi1>, vector<2x256xf32>
    %874 = vector.broadcast %867 : f32 to vector<2x256xf32>
    %875 = arith.mulf %874, %873 : vector<2x256xf32>
    %876 = arith.addf %866, %875 : vector<2x256xf32>
    %c90 = arith.constant 90 : index
    %877 = memref.load %arg1[%c90] : memref<98xf32, #tpu.memory_space<smem>>
    %c1_326 = arith.constant 1 : index
    %c0_327 = arith.constant 0 : index
    %c163_328 = arith.constant 163 : index
    %878 = vector.load %arg6[%c1_326, %c0_327, %c163_328] : memref<2x2x435xf32, #tpu.memory_space<vmem>>, vector<1x2x256xf32>
    %879 = vector.shape_cast %878 : vector<1x2x256xf32> to vector<2x256xf32>
    %cst_329 = arith.constant 0.000000e+00 : f32
    %880 = vector.shape_cast %25 : vector<1x256xi1> to vector<1x256xi1>
    %881 = vector.broadcast %880 : vector<1x256xi1> to vector<2x256xi1>
    %882 = vector.broadcast %cst_329 : f32 to vector<2x256xf32>
    %883 = arith.select %881, %879, %882 : vector<2x256xi1>, vector<2x256xf32>
    %884 = vector.broadcast %877 : f32 to vector<2x256xf32>
    %885 = arith.mulf %884, %883 : vector<2x256xf32>
    %886 = arith.addf %876, %885 : vector<2x256xf32>
    %c91 = arith.constant 91 : index
    %887 = memref.load %arg1[%c91] : memref<98xf32, #tpu.memory_space<smem>>
    %c1_330 = arith.constant 1 : index
    %c0_331 = arith.constant 0 : index
    %c173_332 = arith.constant 173 : index
    %888 = vector.load %arg6[%c1_330, %c0_331, %c173_332] : memref<2x2x435xf32, #tpu.memory_space<vmem>>, vector<1x2x256xf32>
    %889 = vector.shape_cast %888 : vector<1x2x256xf32> to vector<2x256xf32>
    %cst_333 = arith.constant 0.000000e+00 : f32
    %890 = vector.shape_cast %27 : vector<1x256xi1> to vector<1x256xi1>
    %891 = vector.broadcast %890 : vector<1x256xi1> to vector<2x256xi1>
    %892 = vector.broadcast %cst_333 : f32 to vector<2x256xf32>
    %893 = arith.select %891, %889, %892 : vector<2x256xi1>, vector<2x256xf32>
    %894 = vector.broadcast %887 : f32 to vector<2x256xf32>
    %895 = arith.mulf %894, %893 : vector<2x256xf32>
    %896 = arith.addf %886, %895 : vector<2x256xf32>
    %c92 = arith.constant 92 : index
    %897 = memref.load %arg1[%c92] : memref<98xf32, #tpu.memory_space<smem>>
    %c1_334 = arith.constant 1 : index
    %c0_335 = arith.constant 0 : index
    %c174_336 = arith.constant 174 : index
    %898 = vector.load %arg6[%c1_334, %c0_335, %c174_336] : memref<2x2x435xf32, #tpu.memory_space<vmem>>, vector<1x2x256xf32>
    %899 = vector.shape_cast %898 : vector<1x2x256xf32> to vector<2x256xf32>
    %cst_337 = arith.constant 0.000000e+00 : f32
    %900 = vector.shape_cast %23 : vector<1x256xi1> to vector<1x256xi1>
    %901 = vector.broadcast %900 : vector<1x256xi1> to vector<2x256xi1>
    %902 = vector.broadcast %cst_337 : f32 to vector<2x256xf32>
    %903 = arith.select %901, %899, %902 : vector<2x256xi1>, vector<2x256xf32>
    %904 = vector.broadcast %897 : f32 to vector<2x256xf32>
    %905 = arith.mulf %904, %903 : vector<2x256xf32>
    %906 = arith.addf %896, %905 : vector<2x256xf32>
    %c93_338 = arith.constant 93 : index
    %907 = memref.load %arg1[%c93_338] : memref<98xf32, #tpu.memory_space<smem>>
    %c1_339 = arith.constant 1 : index
    %c0_340 = arith.constant 0 : index
    %c175_341 = arith.constant 175 : index
    %908 = vector.load %arg6[%c1_339, %c0_340, %c175_341] : memref<2x2x435xf32, #tpu.memory_space<vmem>>, vector<1x2x256xf32>
    %909 = vector.shape_cast %908 : vector<1x2x256xf32> to vector<2x256xf32>
    %cst_342 = arith.constant 0.000000e+00 : f32
    %910 = vector.shape_cast %19 : vector<1x256xi1> to vector<1x256xi1>
    %911 = vector.broadcast %910 : vector<1x256xi1> to vector<2x256xi1>
    %912 = vector.broadcast %cst_342 : f32 to vector<2x256xf32>
    %913 = arith.select %911, %909, %912 : vector<2x256xi1>, vector<2x256xf32>
    %914 = vector.broadcast %907 : f32 to vector<2x256xf32>
    %915 = arith.mulf %914, %913 : vector<2x256xf32>
    %916 = arith.addf %906, %915 : vector<2x256xf32>
    %c94_343 = arith.constant 94 : index
    %917 = memref.load %arg1[%c94_343] : memref<98xf32, #tpu.memory_space<smem>>
    %c1_344 = arith.constant 1 : index
    %c0_345 = arith.constant 0 : index
    %c176_346 = arith.constant 176 : index
    %918 = vector.load %arg6[%c1_344, %c0_345, %c176_346] : memref<2x2x435xf32, #tpu.memory_space<vmem>>, vector<1x2x256xf32>
    %919 = vector.shape_cast %918 : vector<1x2x256xf32> to vector<2x256xf32>
    %920 = vector.broadcast %917 : f32 to vector<2x256xf32>
    %921 = arith.mulf %920, %919 : vector<2x256xf32>
    %922 = arith.addf %916, %921 : vector<2x256xf32>
    %c95_347 = arith.constant 95 : index
    %923 = memref.load %arg1[%c95_347] : memref<98xf32, #tpu.memory_space<smem>>
    %c1_348 = arith.constant 1 : index
    %c0_349 = arith.constant 0 : index
    %c177_350 = arith.constant 177 : index
    %924 = vector.load %arg6[%c1_348, %c0_349, %c177_350] : memref<2x2x435xf32, #tpu.memory_space<vmem>>, vector<1x2x256xf32>
    %925 = vector.shape_cast %924 : vector<1x2x256xf32> to vector<2x256xf32>
    %cst_351 = arith.constant 0.000000e+00 : f32
    %926 = vector.shape_cast %17 : vector<1x256xi1> to vector<1x256xi1>
    %927 = vector.broadcast %926 : vector<1x256xi1> to vector<2x256xi1>
    %928 = vector.broadcast %cst_351 : f32 to vector<2x256xf32>
    %929 = arith.select %927, %925, %928 : vector<2x256xi1>, vector<2x256xf32>
    %930 = vector.broadcast %923 : f32 to vector<2x256xf32>
    %931 = arith.mulf %930, %929 : vector<2x256xf32>
    %932 = arith.addf %922, %931 : vector<2x256xf32>
    %c96_352 = arith.constant 96 : index
    %933 = memref.load %arg1[%c96_352] : memref<98xf32, #tpu.memory_space<smem>>
    %c1_353 = arith.constant 1 : index
    %c0_354 = arith.constant 0 : index
    %c178_355 = arith.constant 178 : index
    %934 = vector.load %arg6[%c1_353, %c0_354, %c178_355] : memref<2x2x435xf32, #tpu.memory_space<vmem>>, vector<1x2x256xf32>
    %935 = vector.shape_cast %934 : vector<1x2x256xf32> to vector<2x256xf32>
    %cst_356 = arith.constant 0.000000e+00 : f32
    %936 = vector.shape_cast %21 : vector<1x256xi1> to vector<1x256xi1>
    %937 = vector.broadcast %936 : vector<1x256xi1> to vector<2x256xi1>
    %938 = vector.broadcast %cst_356 : f32 to vector<2x256xf32>
    %939 = arith.select %937, %935, %938 : vector<2x256xi1>, vector<2x256xf32>
    %940 = vector.broadcast %933 : f32 to vector<2x256xf32>
    %941 = arith.mulf %940, %939 : vector<2x256xf32>
    %942 = arith.addf %932, %941 : vector<2x256xf32>
    %c97_357 = arith.constant 97 : index
    %943 = memref.load %arg1[%c97_357] : memref<98xf32, #tpu.memory_space<smem>>
    %c1_358 = arith.constant 1 : index
    %c0_359 = arith.constant 0 : index
    %c179_360 = arith.constant 179 : index
    %944 = vector.load %arg6[%c1_358, %c0_359, %c179_360] : memref<2x2x435xf32, #tpu.memory_space<vmem>>, vector<1x2x256xf32>
    %945 = vector.shape_cast %944 : vector<1x2x256xf32> to vector<2x256xf32>
    %cst_361 = arith.constant 0.000000e+00 : f32
    %946 = vector.shape_cast %25 : vector<1x256xi1> to vector<1x256xi1>
    %947 = vector.broadcast %946 : vector<1x256xi1> to vector<2x256xi1>
    %948 = vector.broadcast %cst_361 : f32 to vector<2x256xf32>
    %949 = arith.select %947, %945, %948 : vector<2x256xi1>, vector<2x256xf32>
    %950 = vector.broadcast %943 : f32 to vector<2x256xf32>
    %951 = arith.mulf %950, %949 : vector<2x256xf32>
    %952 = arith.addf %942, %951 : vector<2x256xf32>
    %c0_362 = arith.constant 0 : index
    %953 = memref.load %arg2[%c0_362] : memref<1xf32, #tpu.memory_space<smem>>
    %954 = vector.broadcast %953 : f32 to vector<2x256xf32>
    %955 = arith.addf %952, %954 : vector<2x256xf32>
    %956 = arith.negf %955 : vector<2x256xf32>
    %957 = math.exp %956 : vector<2x256xf32>
    %cst_363 = arith.constant 1.000000e+00 : f32
    %958 = vector.broadcast %cst_363 : f32 to vector<2x256xf32>
    %959 = arith.addf %958, %957 : vector<2x256xf32>
    %960 = arith.divf %958, %959 : vector<2x256xf32>
    %961 = vector.shape_cast %960 : vector<2x256xf32> to vector<2x1x256xf32>
    %962 = vector.broadcast %961 : vector<2x1x256xf32> to vector<2x4x256xf32>
    %963 = arith.mulf %0, %962 : vector<2x4x256xf32>
    %c0_364 = arith.constant 0 : index
    %c0_365 = arith.constant 0 : index
    %c0_366 = arith.constant 0 : index
    %964 = vector.load %arg5[%c0_364, %c0_365, %c0_366] : memref<2x4x256xf32, #tpu.memory_space<vmem>>, vector<2x4x256xf32>
    tpu.vector_store %arg5[%c0_364, %c0_365, %c0_366], %963 {strides = array<i32>} : memref<2x4x256xf32, #tpu.memory_space<vmem>>, vector<2x4x256xf32>,
    return
  }
  func.func @transform_0(%arg0: i32) -> i32 {
    %c0_i32 = arith.constant 0 : i32
    %c0_i32_0 = arith.constant 0 : i32
    return %c0_i32 : i32
  }
  func.func @transform_1(%arg0: i32) -> i32 {
    %c0_i32 = arith.constant 0 : i32
    %c0_i32_0 = arith.constant 0 : i32
    return %c0_i32 : i32
  }
  func.func @transform_2(%arg0: i32) -> (i32, i32) {
    %c0_i32 = arith.constant 0 : i32
    %c0_i32_0 = arith.constant 0 : i32
    %c0_i32_1 = arith.constant 0 : i32
    return %c0_i32, %c0_i32_0 : i32, i32
  }
  func.func @transform_3(%arg0: i32) -> (i32, i32, i32) {
    %c0_i32 = arith.constant 0 : i32
    %c0_i32_0 = arith.constant 0 : i32
    %c0_i32_1 = arith.constant 0 : i32
    return %arg0, %c0_i32, %c0_i32_0 : i32, i32, i32
  }
  func.func @transform_4(%arg0: i32) -> (i32, i32, i32) {
    %c0_i32 = arith.constant 0 : i32
    %c0_i32_0 = arith.constant 0 : i32
    %c0_i32_1 = arith.constant 0 : i32
    return %arg0, %c0_i32, %c0_i32_0 : i32, i32, i32
  }
}

</mosaic_0001>

<llo_original>
// kernel: tpu_custom_call.1
$region0: #{tpu_custom_call.1}
  #allocation0 [shape = 'u32[]', space=smem, size = 0x4, offset = 0x4, fixed_abs, tag = 'smem constant byte address 0x4 - core index']
  #allocation1 [shape = 'u32[144,128]{1,0:T(1,128)}', space=vmem, size = 0x12000, scoped, tag = 'internal scratch']
  #allocation2 [shape = 'f32[2,2,435]{2,1,0:T(2,128)}', space=vmem, size = 0x2000, scoped, tag = 'scratch operand']
  #allocation3 [shape = 'f32[1]{0:T(128)S(6)}', space=smem, size = 0x200, scoped, tag = 'scoped memory for tpu_custom_call.1']
  %s0 = inlined_call_operand.vmem [shape: f32[98], index: 0, kind: input, shape index: {}]
  %s1 = inlined_call_operand.<no memory space> [shape: f32[1], index: 1, kind: input, shape index: {}]
  %s2 = inlined_call_operand.vmem [shape: s32[1,256], index: 2, kind: input, shape index: {}]
  %s3 = inlined_call_operand.hbm [shape: f32[2,4,256], index: 3, kind: input, shape index: {}]
  %s4 = inlined_call_operand.hbm [shape: f32[2,4,256], index: 4, kind: output, shape index: {}]
  %s5 = sld [smem:[#allocation0]]
  $region34: #{tpu_custom_call.1} parent=0
    _
  %s7 = ssub.s32 1, %s5
  %s8 = scalar_select 0, %s7, %s5
  %9 = sst [smem:[#allocation3]] %s1
  $region1: #{tpu_custom_call.1} parent=0
    #allocation4 [shape = 'u8[512]{0}', space=smem, size = 0x200, scoped, tag = 'input window, operand 0, single buffered']
    #allocation5 [shape = 's32[1]{0}', space=sflag, size = 0x4, scoped, tag = 'scoped memory for tpu_custom_call.1']
    #allocation6 [shape = 's32[1]{0}', space=sflag, size = 0x4, scoped, tag = 'scoped memory for tpu_custom_call.1']
    #allocation7 [shape = 's32[1]{0}', space=sflag, size = 0x4, scoped, tag = 'scoped memory for tpu_custom_call.1']
    #allocation8 [shape = 'u8[8192]{0}', space=vmem, size = 0x2000, scoped, tag = 'input window, operand 3, single buffered']
    #allocation9 [shape = 'u8[8192]{0}', space=vmem, size = 0x2000, scoped, tag = 'output window, operand 0, single buffered']
    %10 = vsyncpa [#allocation7], 0
    %11 = vsyncpa [#allocation5], 0
    %12 = vsyncpa [#allocation6], 0
    // Predicated region
    $region2: #{tpu_custom_call.1} parent=1 // pred_check
      _
    $region3: #{tpu_custom_call.1} parent=1 // pred_check_branch
      %14 = sbr.rel (0) target = $region5
    $region4: #{tpu_custom_call.1} parent=1 // pred_region
      %s16 = ssub.s32 16, 16
      %17 = vsyncadd [#allocation7], %s16
      %s19 = sshll.u32 %s0, 4
      %s20 = int_to_ptr.vmem [resolvable:$true] %s19
      %22 = dma.vmem_to_smem %s20, 16, [#allocation4], [#allocation7]
    $region5: #{tpu_custom_call.1} parent=1 // pred_fallthru
      _
    // Predicated region
    $region6: #{tpu_custom_call.1} parent=1 // pred_check
      _
    $region7: #{tpu_custom_call.1} parent=1 // pred_check_branch
      %24 = sbr.rel (0) target = $region9
    $region8: #{tpu_custom_call.1} parent=1 // pred_region
      _
    $region9: #{tpu_custom_call.1} parent=1 // pred_fallthru
      _
    // Predicated region
    $region10: #{tpu_custom_call.1} parent=1 // pred_check
      _
    $region11: #{tpu_custom_call.1} parent=1 // pred_check_branch
      %26 = sbr.rel (0) target = $region13
    $region12: #{tpu_custom_call.1} parent=1 // pred_region
      _
    $region13: #{tpu_custom_call.1} parent=1 // pred_fallthru
      _
    // Predicated region
    $region14: #{tpu_custom_call.1} parent=1 // pred_check
      _
    $region15: #{tpu_custom_call.1} parent=1 // pred_check_branch
      %28 = sbr.rel (0) target = $region17
    $region16: #{tpu_custom_call.1} parent=1 // pred_region
      %s30 = ssub.s32 256, 256
      %31 = vsyncadd [#allocation5], %s30
      %s32 = sshll.u32 [#allocation8], 4
      %s33 = int_to_ptr.vmem [resolvable:$true] %s32
      %38 = dma.hbm_to_vmem [thread:$0]  %s3, 256, %s33, [#allocation5], 128, 128, 8
    $region17: #{tpu_custom_call.1} parent=1 // pred_fallthru
      _
    // Predicated region
    $region18: #{tpu_custom_call.1} parent=1 // pred_check
      _
    $region19: #{tpu_custom_call.1} parent=1 // pred_check_branch
      %40 = sbr.rel (0) target = $region21
    $region20: #{tpu_custom_call.1} parent=1 // pred_region
      %41 = dma.done [#allocation7], 16
    $region21: #{tpu_custom_call.1} parent=1 // pred_fallthru
      _
    // Predicated region
    $region22: #{tpu_custom_call.1} parent=1 // pred_check
      _
    $region23: #{tpu_custom_call.1} parent=1 // pred_check_branch
      %43 = sbr.rel (0) target = $region25
    $region24: #{tpu_custom_call.1} parent=1 // pred_region
      %44 = dma.done [#allocation5], 256
    $region25: #{tpu_custom_call.1} parent=1 // pred_fallthru
      _
    %45 = sfence
    %v46 = vld [vmem:[#allocation8] sm:$0xff]
    %v47 = vld [vmem:[#allocation8 + $0x8] sm:$0xff]
    %v50 = vcombine.high %v46, %v46
    %v51 = vcombine.high %v47, %v47
    %vm54 = vcmask 1043456
    %v55 = vsel %vm54, %v46, -inf
    %v56 = vrot.slane %v55, 4
    %v57 = vmax.f32 %v55, %v56
    %v58 = vrot.slane %v57, 2
    %v59 = vmax.f32 %v57, %v58
    %v60 = vrot.slane %v59, 1
    %v61 = vmax.f32 %v59, %v60
    %v62 = vsel %vm54, %v50, -inf
    %v63 = vrot.slane %v62, 4
    %v64 = vmax.f32 %v62, %v63
    %v65 = vrot.slane %v64, 2
    %v66 = vmax.f32 %v64, %v65
    %v67 = vrot.slane %v66, 1
    %v68 = vmax.f32 %v66, %v67
    %v69 = vsel %vm54, %v47, -inf
    %v70 = vrot.slane %v69, 4
    %v71 = vmax.f32 %v69, %v70
    %v72 = vrot.slane %v71, 2
    %v73 = vmax.f32 %v71, %v72
    %v74 = vrot.slane %v73, 1
    %v75 = vmax.f32 %v73, %v74
    %v76 = vsel %vm54, %v51, -inf
    %v77 = vrot.slane %v76, 4
    %v78 = vmax.f32 %v76, %v77
    %v79 = vrot.slane %v78, 2
    %v80 = vmax.f32 %v78, %v79
    %v81 = vrot.slane %v80, 1
    %v82 = vmax.f32 %v80, %v81
    %v83 = vsel %vm54, %v46, 0.0
    %v84 = vrot.slane %v83, 4
    %v85 = vadd.f32 %v83, %v84
    %v86 = vrot.slane %v85, 2
    %v87 = vadd.f32 %v85, %v86
    %v88 = vrot.slane %v87, 1
    %v89 = vadd.f32 %v87, %v88
    %v90 = vsel %vm54, %v50, 0.0
    %v91 = vrot.slane %v90, 4
    %v92 = vadd.f32 %v90, %v91
    %v93 = vrot.slane %v92, 2
    %v94 = vadd.f32 %v92, %v93
    %v95 = vrot.slane %v94, 1
    %v96 = vadd.f32 %v94, %v95
    %v97 = vsel %vm54, %v47, 0.0
    %v98 = vrot.slane %v97, 4
    %v99 = vadd.f32 %v97, %v98
    %v100 = vrot.slane %v99, 2
    %v101 = vadd.f32 %v99, %v100
    %v102 = vrot.slane %v101, 1
    %v103 = vadd.f32 %v101, %v102
    %v104 = vsel %vm54, %v51, 0.0
    %v105 = vrot.slane %v104, 4
    %v106 = vadd.f32 %v104, %v105
    %v107 = vrot.slane %v106, 2
    %v108 = vadd.f32 %v106, %v107
    %v109 = vrot.slane %v108, 1
    %v110 = vadd.f32 %v108, %v109
    %v111 = vmul.f32 %v89, 0.25
    %v112 = vmul.f32 %v96, 0.25
    %v113 = vmul.f32 %v103, 0.25
    %v114 = vmul.f32 %v110, 0.25
    %115 = vst [vmem:[#allocation2] sm:$0x3] 0.0
    %116 = vst [vmem:[#allocation2 + $0x8] sm:$0x3] 0.0
    %vm117 = vcmask 410624
    %118 = vst.msk [vmem:[#allocation2 + $0x6] sm:$0x3] %vm117, 0.0
    %119 = vst.msk [vmem:[#allocation2 + $0xe] sm:$0x3] %vm117, 0.0
    %v124 = vcombine.low %v61, %v68
    %v126 = vunpack.c.l.s4 1983009808
    %v127 = vunpack.c.0.s8 %v126
    %v128 = vlaneseq
    %v129 = vshrl.u32 %v128, 7
    %v130 = vsub.s32 %v127, %v129
    %v131 = vrot.slane %v124, %v130
    %v132 = vcombine.low %v75, %v82
    %v134 = vunpack.c.l.s4 1983009808
    %v135 = vunpack.c.0.s8 %v134
    %v136 = vlaneseq
    %v137 = vshrl.u32 %v136, 7
    %v138 = vsub.s32 %v135, %v137
    %v139 = vrot.slane %v132, %v138
    %vm140 = vcmask 1044484
    %v141 = vsel %vm140, %v131, %v131
    %vm142 = vcmask 1046534
    %v143 = vsel %vm142, %v131, %v141
    %v144 = vrot.slane %v139, 7
    %vm145 = vcmask 1041409
    %v146 = vsel %vm145, %v144, %v143
    %vm147 = vcmask 1043459
    %v148 = vsel %vm147, %v144, %v146
    %vm149 = vcmask 1045509
    %v150 = vsel %vm149, %v144, %v148
    %vm151 = vcmask 1047559
    %v152 = vsel %vm151, %v144, %v150
    %154 = vst [vmem:[#allocation2 + $0x2] sm:$0xf] %v152
    %v159 = vcombine.low %v111, %v112
    %v161 = vunpack.c.l.s4 1983009808
    %v162 = vunpack.c.0.s8 %v161
    %v163 = vlaneseq
    %v164 = vshrl.u32 %v163, 7
    %v165 = vsub.s32 %v162, %v164
    %v166 = vrot.slane %v159, %v165
    %v167 = vcombine.low %v113, %v114
    %v169 = vunpack.c.l.s4 1983009808
    %v170 = vunpack.c.0.s8 %v169
    %v171 = vlaneseq
    %v172 = vshrl.u32 %v171, 7
    %v173 = vsub.s32 %v170, %v172
    %v174 = vrot.slane %v167, %v173
    %v175 = vsel %vm140, %v166, %v166
    %v176 = vsel %vm142, %v166, %v175
    %v177 = vrot.slane %v174, 7
    %v178 = vsel %vm145, %v177, %v176
    %v179 = vsel %vm147, %v177, %v178
    %v180 = vsel %vm149, %v177, %v179
    %v181 = vsel %vm151, %v177, %v180
    %s183 = scalar_lea.vmem [#allocation2], 8
    %184 = vst [vmem:[%s183 + $0x2] sm:$0xf] %v181
    %v185 = vld [vmem:[%s2] sm:$0x3]
    %vm186 = vcmp.lt.s32.totalorder %v185, 15
    %vm187 = vcmp.ge.s32.totalorder %v185, 1
    %vm188 = vcmp.lt.s32.totalorder %v185, 14
    %vm189 = vcmp.ge.s32.totalorder %v185, 2
    %vm190 = vcmp.lt.s32.totalorder %v185, 13
    %vm191 = vcmp.ge.s32.totalorder %v185, 3
    %s192 = sld [smem:[#allocation4]]
    %v193 = vld [vmem:[#allocation2] sm:$0x3f]
    %v194 = vsel %vm191, 1, 0
    %v195 = vlaneseq
    %v196 = vshrl.u32 %v195, 7
    %v197 = vsub.s32 0, %v196
    %v198 = vrot.slane %v194, %v197
    %v199 = vlaneseq
    %v200 = vshrl.u32 %v199, 7
    %v201 = vsub.s32 1, %v200
    %v202 = vrot.slane %v194, %v201
    %vm203 = vcmp.eq.s32.totalorder %v198, 1
    %vm204 = vcmp.eq.s32.totalorder %v202, 1
    %v206 = vcombine.high %v193, %v193
    %v208 = vunpack.c.l.s4 1983009808
    %v209 = vunpack.c.0.s8 %v208
    %v210 = vlaneseq
    %v211 = vshrl.u32 %v210, 7
    %v212 = vsub.s32 %v209, %v211
    %v213 = vrot.slane %v193, %v212
    %v215 = vunpack.c.l.s4 1983009808
    %v216 = vunpack.c.0.s8 %v215
    %v217 = vlaneseq
    %v218 = vshrl.u32 %v217, 7
    %v219 = vsub.s32 %v216, %v218
    %v220 = vrot.slane %v206, %v219
    %v221 = vcombine.high %v213, %v213
    %222 = vrot.lane.b32.xlu0 %v213, 51
    %v223 = vpop.permute.xlu0 %222
    %224 = vrot.lane.b32.xlu0 %v221, 51
    %v225 = vpop.permute.xlu0 %224
    %226 = vrot.lane.b32.xlu0 %v220, 51
    %v227 = vpop.permute.xlu0 %226
    %vm228 = vcmask 416768
    %v229 = vsel %vm228, %v223, %v225
    %v230 = vsel %vm228, %v225, %v227
    %v233 = vsel %vm203, %v229, 0.0
    %v234 = vsel %vm204, %v230, 0.0
    %v235 = vstv %s192
    %v236 = vmul.f32 %v235, %v233
    %v237 = vmul.f32 %v235, %v234
    %v238 = vadd.f32 %v236, 0.0
    %v239 = vadd.f32 %v237, 0.0
    %s240 = sld [smem:[#allocation4 + $0x1]]
    %v241 = vld [vmem:[#allocation2] sm:$0x3f]
    %v242 = vsel %vm189, 1, 0
    %v243 = vlaneseq
    %v244 = vshrl.u32 %v243, 7
    %v245 = vsub.s32 0, %v244
    %v246 = vrot.slane %v242, %v245
    %v247 = vlaneseq
    %v248 = vshrl.u32 %v247, 7
    %v249 = vsub.s32 1, %v248
    %v250 = vrot.slane %v242, %v249
    %vm251 = vcmp.eq.s32.totalorder %v246, 1
    %vm252 = vcmp.eq.s32.totalorder %v250, 1
    %v254 = vcombine.high %v241, %v241
    %v256 = vunpack.c.l.s4 1983009808
    %v257 = vunpack.c.0.s8 %v256
    %v258 = vlaneseq
    %v259 = vshrl.u32 %v258, 7
    %v260 = vsub.s32 %v257, %v259
    %v261 = vrot.slane %v241, %v260
    %v263 = vunpack.c.l.s4 1983009808
    %v264 = vunpack.c.0.s8 %v263
    %v265 = vlaneseq
    %v266 = vshrl.u32 %v265, 7
    %v267 = vsub.s32 %v264, %v266
    %v268 = vrot.slane %v254, %v267
    %v269 = vcombine.high %v261, %v261
    %270 = vrot.lane.b32.xlu0 %v261, 50
    %v271 = vpop.permute.xlu0 %270
    %272 = vrot.lane.b32.xlu0 %v269, 50
    %v273 = vpop.permute.xlu0 %272
    %274 = vrot.lane.b32.xlu0 %v268, 50
    %v275 = vpop.permute.xlu0 %274
    %vm276 = vcmask 408576
    %v277 = vsel %vm276, %v271, %v273
    %v278 = vsel %vm276, %v273, %v275
    %v281 = vsel %vm251, %v277, 0.0
    %v282 = vsel %vm252, %v278, 0.0
    %v283 = vstv %s240
    %v284 = vmul.f32 %v283, %v281
    %v285 = vmul.f32 %v283, %v282
    %v286 = vadd.f32 %v238, %v284
    %v287 = vadd.f32 %v239, %v285
    %s288 = sld [smem:[#allocation4 + $0x2]]
    %v289 = vld [vmem:[#allocation2] sm:$0x3f]
    %v290 = vsel %vm187, 1, 0
    %v291 = vlaneseq
    %v292 = vshrl.u32 %v291, 7
    %v293 = vsub.s32 0, %v292
    %v294 = vrot.slane %v290, %v293
    %v295 = vlaneseq
    %v296 = vshrl.u32 %v295, 7
    %v297 = vsub.s32 1, %v296
    %v298 = vrot.slane %v290, %v297
    %vm299 = vcmp.eq.s32.totalorder %v294, 1
    %vm300 = vcmp.eq.s32.totalorder %v298, 1
    %v302 = vcombine.high %v289, %v289
    %v304 = vunpack.c.l.s4 1983009808
    %v305 = vunpack.c.0.s8 %v304
    %v306 = vlaneseq
    %v307 = vshrl.u32 %v306, 7
    %v308 = vsub.s32 %v305, %v307
    %v309 = vrot.slane %v289, %v308
    %v311 = vunpack.c.l.s4 1983009808
    %v312 = vunpack.c.0.s8 %v311
    %v313 = vlaneseq
    %v314 = vshrl.u32 %v313, 7
    %v315 = vsub.s32 %v312, %v314
    %v316 = vrot.slane %v302, %v315
    %v317 = vcombine.high %v309, %v309
    %318 = vrot.lane.b32.xlu0 %v309, 49
    %v319 = vpop.permute.xlu0 %318
    %320 = vrot.lane.b32.xlu0 %v317, 49
    %v321 = vpop.permute.xlu0 %320
    %322 = vrot.lane.b32.xlu0 %v316, 49
    %v323 = vpop.permute.xlu0 %322
    %vm324 = vcmask 400384
    %v325 = vsel %vm324, %v319, %v321
    %v326 = vsel %vm324, %v321, %v323
    %v329 = vsel %vm299, %v325, 0.0
    %v330 = vsel %vm300, %v326, 0.0
    %v331 = vstv %s288
    %v332 = vmul.f32 %v331, %v329
    %v333 = vmul.f32 %v331, %v330
    %v334 = vadd.f32 %v286, %v332
    %v335 = vadd.f32 %v287, %v333
    %s336 = sld [smem:[#allocation4 + $0x3]]
    %v337 = vld [vmem:[#allocation2] sm:$0x3f]
    %v338 = vstv %s336
    %v339 = vmul.f32 %v338, %v337
    %v341 = vcombine.high %v339, %v339
    %v343 = vunpack.c.l.s4 1983009808
    %v344 = vunpack.c.0.s8 %v343
    %v345 = vlaneseq
    %v346 = vshrl.u32 %v345, 7
    %v347 = vsub.s32 %v344, %v346
    %v348 = vrot.slane %v339, %v347
    %v350 = vunpack.c.l.s4 1983009808
    %v351 = vunpack.c.0.s8 %v350
    %v352 = vlaneseq
    %v353 = vshrl.u32 %v352, 7
    %v354 = vsub.s32 %v351, %v353
    %v355 = vrot.slane %v341, %v354
    %v356 = vcombine.high %v348, %v348
    %357 = vrot.lane.b32.xlu0 %v348, 48
    %v358 = vpop.permute.xlu0 %357
    %359 = vrot.lane.b32.xlu0 %v356, 48
    %v360 = vpop.permute.xlu0 %359
    %361 = vrot.lane.b32.xlu0 %v355, 48
    %v362 = vpop.permute.xlu0 %361
    %vm363 = vcmask 392192
    %v364 = vsel %vm363, %v358, %v360
    %v365 = vsel %vm363, %v360, %v362
    %v368 = vadd.f32 %v334, %v364
    %v369 = vadd.f32 %v335, %v365
    %s370 = sld [smem:[#allocation4 + $0x4]]
    %v371 = vld [vmem:[#allocation2] sm:$0x3f]
    %v372 = vsel %vm186, 1, 0
    %v373 = vlaneseq
    %v374 = vshrl.u32 %v373, 7
    %v375 = vsub.s32 0, %v374
    %v376 = vrot.slane %v372, %v375
    %v377 = vlaneseq
    %v378 = vshrl.u32 %v377, 7
    %v379 = vsub.s32 1, %v378
    %v380 = vrot.slane %v372, %v379
    %vm381 = vcmp.eq.s32.totalorder %v376, 1
    %vm382 = vcmp.eq.s32.totalorder %v380, 1
    %v384 = vcombine.high %v371, %v371
    %v386 = vunpack.c.l.s4 1983009808
    %v387 = vunpack.c.0.s8 %v386
    %v388 = vlaneseq
    %v389 = vshrl.u32 %v388, 7
    %v390 = vsub.s32 %v387, %v389
    %v391 = vrot.slane %v371, %v390
    %v393 = vunpack.c.l.s4 1983009808
    %v394 = vunpack.c.0.s8 %v393
    %v395 = vlaneseq
    %v396 = vshrl.u32 %v395, 7
    %v397 = vsub.s32 %v394, %v396
    %v398 = vrot.slane %v384, %v397
    %v399 = vcombine.high %v391, %v391
    %400 = vrot.lane.b32.xlu0 %v391, 47
    %v401 = vpop.permute.xlu0 %400
    %402 = vrot.lane.b32.xlu0 %v399, 47
    %v403 = vpop.permute.xlu0 %402
    %404 = vrot.lane.b32.xlu0 %v398, 47
    %v405 = vpop.permute.xlu0 %404
    %vm406 = vcmask 384000
    %v407 = vsel %vm406, %v401, %v403
    %v408 = vsel %vm406, %v403, %v405
    %v411 = vsel %vm381, %v407, 0.0
    %v412 = vsel %vm382, %v408, 0.0
    %v413 = vstv %s370
    %v414 = vmul.f32 %v413, %v411
    %v415 = vmul.f32 %v413, %v412
    %v416 = vadd.f32 %v368, %v414
    %v417 = vadd.f32 %v369, %v415
    %s418 = sld [smem:[#allocation4 + $0x5]]
    %v419 = vld [vmem:[#allocation2] sm:$0x3f]
    %v420 = vsel %vm188, 1, 0
    %v421 = vlaneseq
    %v422 = vshrl.u32 %v421, 7
    %v423 = vsub.s32 0, %v422
    %v424 = vrot.slane %v420, %v423
    %v425 = vlaneseq
    %v426 = vshrl.u32 %v425, 7
    %v427 = vsub.s32 1, %v426
    %v428 = vrot.slane %v420, %v427
    %vm429 = vcmp.eq.s32.totalorder %v424, 1
    %vm430 = vcmp.eq.s32.totalorder %v428, 1
    %v432 = vcombine.high %v419, %v419
    %v434 = vunpack.c.l.s4 1983009808
    %v435 = vunpack.c.0.s8 %v434
    %v436 = vlaneseq
    %v437 = vshrl.u32 %v436, 7
    %v438 = vsub.s32 %v435, %v437
    %v439 = vrot.slane %v419, %v438
    %v441 = vunpack.c.l.s4 1983009808
    %v442 = vunpack.c.0.s8 %v441
    %v443 = vlaneseq
    %v444 = vshrl.u32 %v443, 7
    %v445 = vsub.s32 %v442, %v444
    %v446 = vrot.slane %v432, %v445
    %v447 = vcombine.high %v439, %v439
    %448 = vrot.lane.b32.xlu0 %v439, 46
    %v449 = vpop.permute.xlu0 %448
    %450 = vrot.lane.b32.xlu0 %v447, 46
    %v451 = vpop.permute.xlu0 %450
    %452 = vrot.lane.b32.xlu0 %v446, 46
    %v453 = vpop.permute.xlu0 %452
    %vm454 = vcmask 375808
    %v455 = vsel %vm454, %v449, %v451
    %v456 = vsel %vm454, %v451, %v453
    %v459 = vsel %vm429, %v455, 0.0
    %v460 = vsel %vm430, %v456, 0.0
    %v461 = vstv %s418
    %v462 = vmul.f32 %v461, %v459
    %v463 = vmul.f32 %v461, %v460
    %v464 = vadd.f32 %v416, %v462
    %v465 = vadd.f32 %v417, %v463
    %s466 = sld [smem:[#allocation4 + $0x6]]
    %v467 = vld [vmem:[#allocation2] sm:$0x3f]
    %v468 = vsel %vm190, 1, 0
    %v469 = vlaneseq
    %v470 = vshrl.u32 %v469, 7
    %v471 = vsub.s32 0, %v470
    %v472 = vrot.slane %v468, %v471
    %v473 = vlaneseq
    %v474 = vshrl.u32 %v473, 7
    %v475 = vsub.s32 1, %v474
    %v476 = vrot.slane %v468, %v475
    %vm477 = vcmp.eq.s32.totalorder %v472, 1
    %vm478 = vcmp.eq.s32.totalorder %v476, 1
    %v480 = vcombine.high %v467, %v467
    %v482 = vunpack.c.l.s4 1983009808
    %v483 = vunpack.c.0.s8 %v482
    %v484 = vlaneseq
    %v485 = vshrl.u32 %v484, 7
    %v486 = vsub.s32 %v483, %v485
    %v487 = vrot.slane %v467, %v486
    %v489 = vunpack.c.l.s4 1983009808
    %v490 = vunpack.c.0.s8 %v489
    %v491 = vlaneseq
    %v492 = vshrl.u32 %v491, 7
    %v493 = vsub.s32 %v490, %v492
    %v494 = vrot.slane %v480, %v493
    %v495 = vcombine.high %v487, %v487
    %496 = vrot.lane.b32.xlu0 %v487, 45
    %v497 = vpop.permute.xlu0 %496
    %498 = vrot.lane.b32.xlu0 %v495, 45
    %v499 = vpop.permute.xlu0 %498
    %500 = vrot.lane.b32.xlu0 %v494, 45
    %v501 = vpop.permute.xlu0 %500
    %vm502 = vcmask 367616
    %v503 = vsel %vm502, %v497, %v499
    %v504 = vsel %vm502, %v499, %v501
    %v507 = vsel %vm477, %v503, 0.0
    %v508 = vsel %vm478, %v504, 0.0
    %v509 = vstv %s466
    %v510 = vmul.f32 %v509, %v507
    %v511 = vmul.f32 %v509, %v508
    %v512 = vadd.f32 %v464, %v510
    %v513 = vadd.f32 %v465, %v511
    %s514 = sld [smem:[#allocation4 + $0x7]]
    %v515 = vld [vmem:[#allocation2] sm:$0x3f]
    %v517 = vcombine.high %v515, %v515
    %v519 = vunpack.c.l.s4 1983009808
    %v520 = vunpack.c.0.s8 %v519
    %v521 = vlaneseq
    %v522 = vshrl.u32 %v521, 7
    %v523 = vsub.s32 %v520, %v522
    %v524 = vrot.slane %v515, %v523
    %v526 = vunpack.c.l.s4 1983009808
    %v527 = vunpack.c.0.s8 %v526
    %v528 = vlaneseq
    %v529 = vshrl.u32 %v528, 7
    %v530 = vsub.s32 %v527, %v529
    %v531 = vrot.slane %v517, %v530
    %v532 = vcombine.high %v524, %v524
    %533 = vrot.lane.b32.xlu0 %v524, 35
    %v534 = vpop.permute.xlu0 %533
    %535 = vrot.lane.b32.xlu0 %v532, 35
    %v536 = vpop.permute.xlu0 %535
    %537 = vrot.lane.b32.xlu0 %v531, 35
    %v538 = vpop.permute.xlu0 %537
    %vm539 = vcmask 285696
    %v540 = vsel %vm539, %v534, %v536
    %v541 = vsel %vm539, %v536, %v538
    %v544 = vsel %vm203, %v540, 0.0
    %v545 = vsel %vm204, %v541, 0.0
    %v546 = vstv %s514
    %v547 = vmul.f32 %v546, %v544
    %v548 = vmul.f32 %v546, %v545
    %v549 = vadd.f32 %v512, %v547
    %v550 = vadd.f32 %v513, %v548
    %s551 = sld [smem:[#allocation4 + $0x8]]
    %v552 = vld [vmem:[#allocation2] sm:$0x3f]
    %v554 = vcombine.high %v552, %v552
    %v556 = vunpack.c.l.s4 1983009808
    %v557 = vunpack.c.0.s8 %v556
    %v558 = vlaneseq
    %v559 = vshrl.u32 %v558, 7
    %v560 = vsub.s32 %v557, %v559
    %v561 = vrot.slane %v552, %v560
    %v563 = vunpack.c.l.s4 1983009808
    %v564 = vunpack.c.0.s8 %v563
    %v565 = vlaneseq
    %v566 = vshrl.u32 %v565, 7
    %v567 = vsub.s32 %v564, %v566
    %v568 = vrot.slane %v554, %v567
    %v569 = vcombine.high %v561, %v561
    %570 = vrot.lane.b32.xlu0 %v561, 34
    %v571 = vpop.permute.xlu0 %570
    %572 = vrot.lane.b32.xlu0 %v569, 34
    %v573 = vpop.permute.xlu0 %572
    %574 = vrot.lane.b32.xlu0 %v568, 34
    %v575 = vpop.permute.xlu0 %574
    %vm576 = vcmask 277504
    %v577 = vsel %vm576, %v571, %v573
    %v578 = vsel %vm576, %v573, %v575
    %v581 = vsel %vm251, %v577, 0.0
    %v582 = vsel %vm252, %v578, 0.0
    %v583 = vstv %s551
    %v584 = vmul.f32 %v583, %v581
    %v585 = vmul.f32 %v583, %v582
    %v586 = vadd.f32 %v549, %v584
    %v587 = vadd.f32 %v550, %v585
    %s588 = sld [smem:[#allocation4 + $0x9]]
    %v589 = vld [vmem:[#allocation2] sm:$0x3f]
    %v591 = vcombine.high %v589, %v589
    %v593 = vunpack.c.l.s4 1983009808
    %v594 = vunpack.c.0.s8 %v593
    %v595 = vlaneseq
    %v596 = vshrl.u32 %v595, 7
    %v597 = vsub.s32 %v594, %v596
    %v598 = vrot.slane %v589, %v597
    %v600 = vunpack.c.l.s4 1983009808
    %v601 = vunpack.c.0.s8 %v600
    %v602 = vlaneseq
    %v603 = vshrl.u32 %v602, 7
    %v604 = vsub.s32 %v601, %v603
    %v605 = vrot.slane %v591, %v604
    %v606 = vcombine.high %v598, %v598
    %607 = vrot.lane.b32.xlu0 %v598, 33
    %v608 = vpop.permute.xlu0 %607
    %609 = vrot.lane.b32.xlu0 %v606, 33
    %v610 = vpop.permute.xlu0 %609
    %611 = vrot.lane.b32.xlu0 %v605, 33
    %v612 = vpop.permute.xlu0 %611
    %vm613 = vcmask 269312
    %v614 = vsel %vm613, %v608, %v610
    %v615 = vsel %vm613, %v610, %v612
    %v618 = vsel %vm299, %v614, 0.0
    %v619 = vsel %vm300, %v615, 0.0
    %v620 = vstv %s588
    %v621 = vmul.f32 %v620, %v618
    %v622 = vmul.f32 %v620, %v619
    %v623 = vadd.f32 %v586, %v621
    %v624 = vadd.f32 %v587, %v622
    %s625 = sld [smem:[#allocation4 + $0xa]]
    %v626 = vld [vmem:[#allocation2] sm:$0x3f]
    %v627 = vstv %s625
    %v628 = vmul.f32 %v627, %v626
    %v630 = vcombine.high %v628, %v628
    %v632 = vunpack.c.l.s4 1983009808
    %v633 = vunpack.c.0.s8 %v632
    %v634 = vlaneseq
    %v635 = vshrl.u32 %v634, 7
    %v636 = vsub.s32 %v633, %v635
    %v637 = vrot.slane %v628, %v636
    %v639 = vunpack.c.l.s4 1983009808
    %v640 = vunpack.c.0.s8 %v639
    %v641 = vlaneseq
    %v642 = vshrl.u32 %v641, 7
    %v643 = vsub.s32 %v640, %v642
    %v644 = vrot.slane %v630, %v643
    %v645 = vcombine.high %v637, %v637
    %646 = vrot.lane.b32.xlu0 %v637, 32
    %v647 = vpop.permute.xlu0 %646
    %648 = vrot.lane.b32.xlu0 %v645, 32
    %v649 = vpop.permute.xlu0 %648
    %650 = vrot.lane.b32.xlu0 %v644, 32
    %v651 = vpop.permute.xlu0 %650
    %vm652 = vcmask 261120
    %v653 = vsel %vm652, %v647, %v649
    %v654 = vsel %vm652, %v649, %v651
    %v657 = vadd.f32 %v623, %v653
    %v658 = vadd.f32 %v624, %v654
    %s659 = sld [smem:[#allocation4 + $0xb]]
    %v660 = vld [vmem:[#allocation2] sm:$0x3f]
    %v662 = vcombine.high %v660, %v660
    %v664 = vunpack.c.l.s4 1983009808
    %v665 = vunpack.c.0.s8 %v664
    %v666 = vlaneseq
    %v667 = vshrl.u32 %v666, 7
    %v668 = vsub.s32 %v665, %v667
    %v669 = vrot.slane %v660, %v668
    %v671 = vunpack.c.l.s4 1983009808
    %v672 = vunpack.c.0.s8 %v671
    %v673 = vlaneseq
    %v674 = vshrl.u32 %v673, 7
    %v675 = vsub.s32 %v672, %v674
    %v676 = vrot.slane %v662, %v675
    %v677 = vcombine.high %v669, %v669
    %678 = vrot.lane.b32.xlu0 %v669, 31
    %v679 = vpop.permute.xlu0 %678
    %680 = vrot.lane.b32.xlu0 %v677, 31
    %v681 = vpop.permute.xlu0 %680
    %682 = vrot.lane.b32.xlu0 %v676, 31
    %v683 = vpop.permute.xlu0 %682
    %vm684 = vcmask 252928
    %v685 = vsel %vm684, %v679, %v681
    %v686 = vsel %vm684, %v681, %v683
    %v689 = vsel %vm381, %v685, 0.0
    %v690 = vsel %vm382, %v686, 0.0
    %v691 = vstv %s659
    %v692 = vmul.f32 %v691, %v689
    %v693 = vmul.f32 %v691, %v690
    %v694 = vadd.f32 %v657, %v692
    %v695 = vadd.f32 %v658, %v693
    %s696 = sld [smem:[#allocation4 + $0xc]]
    %v697 = vld [vmem:[#allocation2] sm:$0x3f]
    %v699 = vcombine.high %v697, %v697
    %v701 = vunpack.c.l.s4 1983009808
    %v702 = vunpack.c.0.s8 %v701
    %v703 = vlaneseq
    %v704 = vshrl.u32 %v703, 7
    %v705 = vsub.s32 %v702, %v704
    %v706 = vrot.slane %v697, %v705
    %v708 = vunpack.c.l.s4 1983009808
    %v709 = vunpack.c.0.s8 %v708
    %v710 = vlaneseq
    %v711 = vshrl.u32 %v710, 7
    %v712 = vsub.s32 %v709, %v711
    %v713 = vrot.slane %v699, %v712
    %v714 = vcombine.high %v706, %v706
    %715 = vrot.lane.b32.xlu0 %v706, 30
    %v716 = vpop.permute.xlu0 %715
    %717 = vrot.lane.b32.xlu0 %v714, 30
    %v718 = vpop.permute.xlu0 %717
    %719 = vrot.lane.b32.xlu0 %v713, 30
    %v720 = vpop.permute.xlu0 %719
    %vm721 = vcmask 244736
    %v722 = vsel %vm721, %v716, %v718
    %v723 = vsel %vm721, %v718, %v720
    %v726 = vsel %vm429, %v722, 0.0
    %v727 = vsel %vm430, %v723, 0.0
    %v728 = vstv %s696
    %v729 = vmul.f32 %v728, %v726
    %v730 = vmul.f32 %v728, %v727
    %v731 = vadd.f32 %v694, %v729
    %v732 = vadd.f32 %v695, %v730
    %s733 = sld [smem:[#allocation4 + $0xd]]
    %v734 = vld [vmem:[#allocation2] sm:$0x3f]
    %v736 = vcombine.high %v734, %v734
    %v738 = vunpack.c.l.s4 1983009808
    %v739 = vunpack.c.0.s8 %v738
    %v740 = vlaneseq
    %v741 = vshrl.u32 %v740, 7
    %v742 = vsub.s32 %v739, %v741
    %v743 = vrot.slane %v734, %v742
    %v745 = vunpack.c.l.s4 1983009808
    %v746 = vunpack.c.0.s8 %v745
    %v747 = vlaneseq
    %v748 = vshrl.u32 %v747, 7
    %v749 = vsub.s32 %v746, %v748
    %v750 = vrot.slane %v736, %v749
    %v751 = vcombine.high %v743, %v743
    %752 = vrot.lane.b32.xlu0 %v743, 29
    %v753 = vpop.permute.xlu0 %752
    %754 = vrot.lane.b32.xlu0 %v751, 29
    %v755 = vpop.permute.xlu0 %754
    %756 = vrot.lane.b32.xlu0 %v750, 29
    %v757 = vpop.permute.xlu0 %756
    %vm758 = vcmask 236544
    %v759 = vsel %vm758, %v753, %v755
    %v760 = vsel %vm758, %v755, %v757
    %v763 = vsel %vm477, %v759, 0.0
    %v764 = vsel %vm478, %v760, 0.0
    %v765 = vstv %s733
    %v766 = vmul.f32 %v765, %v763
    %v767 = vmul.f32 %v765, %v764
    %v768 = vadd.f32 %v731, %v766
    %v769 = vadd.f32 %v732, %v767
    %s770 = sld [smem:[#allocation4 + $0xe]]
    %v771 = vld [vmem:[#allocation2] sm:$0x3f]
    %v773 = vcombine.high %v771, %v771
    %v775 = vunpack.c.l.s4 1983009808
    %v776 = vunpack.c.0.s8 %v775
    %v777 = vlaneseq
    %v778 = vshrl.u32 %v777, 7
    %v779 = vsub.s32 %v776, %v778
    %v780 = vrot.slane %v771, %v779
    %v782 = vunpack.c.l.s4 1983009808
    %v783 = vunpack.c.0.s8 %v782
    %v784 = vlaneseq
    %v785 = vshrl.u32 %v784, 7
    %v786 = vsub.s32 %v783, %v785
    %v787 = vrot.slane %v773, %v786
    %v788 = vcombine.high %v780, %v780
    %789 = vrot.lane.b32.xlu0 %v780, 19
    %v790 = vpop.permute.xlu0 %789
    %791 = vrot.lane.b32.xlu0 %v788, 19
    %v792 = vpop.permute.xlu0 %791
    %793 = vrot.lane.b32.xlu0 %v787, 19
    %v794 = vpop.permute.xlu0 %793
    %vm795 = vcmask 154624
    %v796 = vsel %vm795, %v790, %v792
    %v797 = vsel %vm795, %v792, %v794
    %v800 = vsel %vm203, %v796, 0.0
    %v801 = vsel %vm204, %v797, 0.0
    %v802 = vstv %s770
    %v803 = vmul.f32 %v802, %v800
    %v804 = vmul.f32 %v802, %v801
    %v805 = vadd.f32 %v768, %v803
    %v806 = vadd.f32 %v769, %v804
    %s807 = sld [smem:[#allocation4 + $0xf]]
    %v808 = vld [vmem:[#allocation2] sm:$0x3f]
    %v810 = vcombine.high %v808, %v808
    %v812 = vunpack.c.l.s4 1983009808
    %v813 = vunpack.c.0.s8 %v812
    %v814 = vlaneseq
    %v815 = vshrl.u32 %v814, 7
    %v816 = vsub.s32 %v813, %v815
    %v817 = vrot.slane %v808, %v816
    %v819 = vunpack.c.l.s4 1983009808
    %v820 = vunpack.c.0.s8 %v819
    %v821 = vlaneseq
    %v822 = vshrl.u32 %v821, 7
    %v823 = vsub.s32 %v820, %v822
    %v824 = vrot.slane %v810, %v823
    %v825 = vcombine.high %v817, %v817
    %826 = vrot.lane.b32.xlu0 %v817, 18
    %v827 = vpop.permute.xlu0 %826
    %828 = vrot.lane.b32.xlu0 %v825, 18
    %v829 = vpop.permute.xlu0 %828
    %830 = vrot.lane.b32.xlu0 %v824, 18
    %v831 = vpop.permute.xlu0 %830
    %vm832 = vcmask 146432
    %v833 = vsel %vm832, %v827, %v829
    %v834 = vsel %vm832, %v829, %v831
    %v837 = vsel %vm251, %v833, 0.0
    %v838 = vsel %vm252, %v834, 0.0
    %v839 = vstv %s807
    %v840 = vmul.f32 %v839, %v837
    %v841 = vmul.f32 %v839, %v838
    %v842 = vadd.f32 %v805, %v840
    %v843 = vadd.f32 %v806, %v841
    %s844 = sld [smem:[#allocation4 + $0x10]]
    %v845 = vld [vmem:[#allocation2] sm:$0x3f]
    %v847 = vcombine.high %v845, %v845
    %v849 = vunpack.c.l.s4 1983009808
    %v850 = vunpack.c.0.s8 %v849
    %v851 = vlaneseq
    %v852 = vshrl.u32 %v851, 7
    %v853 = vsub.s32 %v850, %v852
    %v854 = vrot.slane %v845, %v853
    %v856 = vunpack.c.l.s4 1983009808
    %v857 = vunpack.c.0.s8 %v856
    %v858 = vlaneseq
    %v859 = vshrl.u32 %v858, 7
    %v860 = vsub.s32 %v857, %v859
    %v861 = vrot.slane %v847, %v860
    %v862 = vcombine.high %v854, %v854
    %863 = vrot.lane.b32.xlu0 %v854, 17
    %v864 = vpop.permute.xlu0 %863
    %865 = vrot.lane.b32.xlu0 %v862, 17
    %v866 = vpop.permute.xlu0 %865
    %867 = vrot.lane.b32.xlu0 %v861, 17
    %v868 = vpop.permute.xlu0 %867
    %vm869 = vcmask 138240
    %v870 = vsel %vm869, %v864, %v866
    %v871 = vsel %vm869, %v866, %v868
    %v874 = vsel %vm299, %v870, 0.0
    %v875 = vsel %vm300, %v871, 0.0
    %v876 = vstv %s844
    %v877 = vmul.f32 %v876, %v874
    %v878 = vmul.f32 %v876, %v875
    %v879 = vadd.f32 %v842, %v877
    %v880 = vadd.f32 %v843, %v878
    %s881 = sld [smem:[#allocation4 + $0x11]]
    %v882 = vld [vmem:[#allocation2] sm:$0x3f]
    %v883 = vstv %s881
    %v884 = vmul.f32 %v883, %v882
    %v886 = vcombine.high %v884, %v884
    %v888 = vunpack.c.l.s4 1983009808
    %v889 = vunpack.c.0.s8 %v888
    %v890 = vlaneseq
    %v891 = vshrl.u32 %v890, 7
    %v892 = vsub.s32 %v889, %v891
    %v893 = vrot.slane %v884, %v892
    %v895 = vunpack.c.l.s4 1983009808
    %v896 = vunpack.c.0.s8 %v895
    %v897 = vlaneseq
    %v898 = vshrl.u32 %v897, 7
    %v899 = vsub.s32 %v896, %v898
    %v900 = vrot.slane %v886, %v899
    %v901 = vcombine.high %v893, %v893
    %902 = vrot.lane.b32.xlu0 %v893, 16
    %v903 = vpop.permute.xlu0 %902
    %904 = vrot.lane.b32.xlu0 %v901, 16
    %v905 = vpop.permute.xlu0 %904
    %906 = vrot.lane.b32.xlu0 %v900, 16
    %v907 = vpop.permute.xlu0 %906
    %vm908 = vcmask 130048
    %v909 = vsel %vm908, %v903, %v905
    %v910 = vsel %vm908, %v905, %v907
    %v913 = vadd.f32 %v879, %v909
    %v914 = vadd.f32 %v880, %v910
    %s915 = sld [smem:[#allocation4 + $0x12]]
    %v916 = vld [vmem:[#allocation2] sm:$0x3f]
    %v918 = vcombine.high %v916, %v916
    %v920 = vunpack.c.l.s4 1983009808
    %v921 = vunpack.c.0.s8 %v920
    %v922 = vlaneseq
    %v923 = vshrl.u32 %v922, 7
    %v924 = vsub.s32 %v921, %v923
    %v925 = vrot.slane %v916, %v924
    %v927 = vunpack.c.l.s4 1983009808
    %v928 = vunpack.c.0.s8 %v927
    %v929 = vlaneseq
    %v930 = vshrl.u32 %v929, 7
    %v931 = vsub.s32 %v928, %v930
    %v932 = vrot.slane %v918, %v931
    %v933 = vcombine.high %v925, %v925
    %934 = vrot.lane.b32.xlu0 %v925, 15
    %v935 = vpop.permute.xlu0 %934
    %936 = vrot.lane.b32.xlu0 %v933, 15
    %v937 = vpop.permute.xlu0 %936
    %938 = vrot.lane.b32.xlu0 %v932, 15
    %v939 = vpop.permute.xlu0 %938
    %vm940 = vcmask 121856
    %v941 = vsel %vm940, %v935, %v937
    %v942 = vsel %vm940, %v937, %v939
    %v945 = vsel %vm381, %v941, 0.0
    %v946 = vsel %vm382, %v942, 0.0
    %v947 = vstv %s915
    %v948 = vmul.f32 %v947, %v945
    %v949 = vmul.f32 %v947, %v946
    %v950 = vadd.f32 %v913, %v948
    %v951 = vadd.f32 %v914, %v949
    %s952 = sld [smem:[#allocation4 + $0x13]]
    %v953 = vld [vmem:[#allocation2] sm:$0x3f]
    %v955 = vcombine.high %v953, %v953
    %v957 = vunpack.c.l.s4 1983009808
    %v958 = vunpack.c.0.s8 %v957
    %v959 = vlaneseq
    %v960 = vshrl.u32 %v959, 7
    %v961 = vsub.s32 %v958, %v960
    %v962 = vrot.slane %v953, %v961
    %v964 = vunpack.c.l.s4 1983009808
    %v965 = vunpack.c.0.s8 %v964
    %v966 = vlaneseq
    %v967 = vshrl.u32 %v966, 7
    %v968 = vsub.s32 %v965, %v967
    %v969 = vrot.slane %v955, %v968
    %v970 = vcombine.high %v962, %v962
    %971 = vrot.lane.b32.xlu0 %v962, 14
    %v972 = vpop.permute.xlu0 %971
    %973 = vrot.lane.b32.xlu0 %v970, 14
    %v974 = vpop.permute.xlu0 %973
    %975 = vrot.lane.b32.xlu0 %v969, 14
    %v976 = vpop.permute.xlu0 %975
    %vm977 = vcmask 113664
    %v978 = vsel %vm977, %v972, %v974
    %v979 = vsel %vm977, %v974, %v976
    %v982 = vsel %vm429, %v978, 0.0
    %v983 = vsel %vm430, %v979, 0.0
    %v984 = vstv %s952
    %v985 = vmul.f32 %v984, %v982
    %v986 = vmul.f32 %v984, %v983
    %v987 = vadd.f32 %v950, %v985
    %v988 = vadd.f32 %v951, %v986
    %s989 = sld [smem:[#allocation4 + $0x14]]
    %v990 = vld [vmem:[#allocation2] sm:$0x3f]
    %v992 = vcombine.high %v990, %v990
    %v994 = vunpack.c.l.s4 1983009808
    %v995 = vunpack.c.0.s8 %v994
    %v996 = vlaneseq
    %v997 = vshrl.u32 %v996, 7
    %v998 = vsub.s32 %v995, %v997
    %v999 = vrot.slane %v990, %v998
    %v1001 = vunpack.c.l.s4 1983009808
    %v1002 = vunpack.c.0.s8 %v1001
    %v1003 = vlaneseq
    %v1004 = vshrl.u32 %v1003, 7
    %v1005 = vsub.s32 %v1002, %v1004
    %v1006 = vrot.slane %v992, %v1005
    %v1007 = vcombine.high %v999, %v999
    %1008 = vrot.lane.b32.xlu0 %v999, 13
    %v1009 = vpop.permute.xlu0 %1008
    %1010 = vrot.lane.b32.xlu0 %v1007, 13
    %v1011 = vpop.permute.xlu0 %1010
    %1012 = vrot.lane.b32.xlu0 %v1006, 13
    %v1013 = vpop.permute.xlu0 %1012
    %vm1014 = vcmask 105472
    %v1015 = vsel %vm1014, %v1009, %v1011
    %v1016 = vsel %vm1014, %v1011, %v1013
    %v1019 = vsel %vm477, %v1015, 0.0
    %v1020 = vsel %vm478, %v1016, 0.0
    %v1021 = vstv %s989
    %v1022 = vmul.f32 %v1021, %v1019
    %v1023 = vmul.f32 %v1021, %v1020
    %v1024 = vadd.f32 %v987, %v1022
    %v1025 = vadd.f32 %v988, %v1023
    %s1026 = sld [smem:[#allocation4 + $0x15]]
    %v1027 = vld [vmem:[#allocation2] sm:$0x3f]
    %v1029 = vcombine.high %v1027, %v1027
    %v1031 = vunpack.c.l.s4 1983009808
    %v1032 = vunpack.c.0.s8 %v1031
    %v1033 = vlaneseq
    %v1034 = vshrl.u32 %v1033, 7
    %v1035 = vsub.s32 %v1032, %v1034
    %v1036 = vrot.slane %v1027, %v1035
    %v1038 = vunpack.c.l.s4 1983009808
    %v1039 = vunpack.c.0.s8 %v1038
    %v1040 = vlaneseq
    %v1041 = vshrl.u32 %v1040, 7
    %v1042 = vsub.s32 %v1039, %v1041
    %v1043 = vrot.slane %v1029, %v1042
    %v1044 = vcombine.high %v1036, %v1036
    %1045 = vrot.lane.b32.xlu0 %v1036, 3
    %v1046 = vpop.permute.xlu0 %1045
    %1047 = vrot.lane.b32.xlu0 %v1044, 3
    %v1048 = vpop.permute.xlu0 %1047
    %1049 = vrot.lane.b32.xlu0 %v1043, 3
    %v1050 = vpop.permute.xlu0 %1049
    %vm1051 = vcmask 23552
    %v1052 = vsel %vm1051, %v1046, %v1048
    %v1053 = vsel %vm1051, %v1048, %v1050
    %v1056 = vsel %vm203, %v1052, 0.0
    %v1057 = vsel %vm204, %v1053, 0.0
    %v1058 = vstv %s1026
    %v1059 = vmul.f32 %v1058, %v1056
    %v1060 = vmul.f32 %v1058, %v1057
    %v1061 = vadd.f32 %v1024, %v1059
    %v1062 = vadd.f32 %v1025, %v1060
    %s1063 = sld [smem:[#allocation4 + $0x16]]
    %v1064 = vld [vmem:[#allocation2] sm:$0x3f]
    %v1066 = vcombine.high %v1064, %v1064
    %v1068 = vunpack.c.l.s4 1983009808
    %v1069 = vunpack.c.0.s8 %v1068
    %v1070 = vlaneseq
    %v1071 = vshrl.u32 %v1070, 7
    %v1072 = vsub.s32 %v1069, %v1071
    %v1073 = vrot.slane %v1064, %v1072
    %v1075 = vunpack.c.l.s4 1983009808
    %v1076 = vunpack.c.0.s8 %v1075
    %v1077 = vlaneseq
    %v1078 = vshrl.u32 %v1077, 7
    %v1079 = vsub.s32 %v1076, %v1078
    %v1080 = vrot.slane %v1066, %v1079
    %v1081 = vcombine.high %v1073, %v1073
    %1082 = vrot.lane.b32.xlu0 %v1073, 2
    %v1083 = vpop.permute.xlu0 %1082
    %1084 = vrot.lane.b32.xlu0 %v1081, 2
    %v1085 = vpop.permute.xlu0 %1084
    %1086 = vrot.lane.b32.xlu0 %v1080, 2
    %v1087 = vpop.permute.xlu0 %1086
    %vm1088 = vcmask 15360
    %v1089 = vsel %vm1088, %v1083, %v1085
    %v1090 = vsel %vm1088, %v1085, %v1087
    %v1093 = vsel %vm251, %v1089, 0.0
    %v1094 = vsel %vm252, %v1090, 0.0
    %v1095 = vstv %s1063
    %v1096 = vmul.f32 %v1095, %v1093
    %v1097 = vmul.f32 %v1095, %v1094
    %v1098 = vadd.f32 %v1061, %v1096
    %v1099 = vadd.f32 %v1062, %v1097
    %s1100 = sld [smem:[#allocation4 + $0x17]]
    %v1101 = vld [vmem:[#allocation2] sm:$0x3f]
    %v1103 = vcombine.high %v1101, %v1101
    %v1105 = vunpack.c.l.s4 1983009808
    %v1106 = vunpack.c.0.s8 %v1105
    %v1107 = vlaneseq
    %v1108 = vshrl.u32 %v1107, 7
    %v1109 = vsub.s32 %v1106, %v1108
    %v1110 = vrot.slane %v1101, %v1109
    %v1112 = vunpack.c.l.s4 1983009808
    %v1113 = vunpack.c.0.s8 %v1112
    %v1114 = vlaneseq
    %v1115 = vshrl.u32 %v1114, 7
    %v1116 = vsub.s32 %v1113, %v1115
    %v1117 = vrot.slane %v1103, %v1116
    %v1118 = vcombine.high %v1110, %v1110
    %1119 = vrot.lane.b32.xlu0 %v1110, 1
    %v1120 = vpop.permute.xlu0 %1119
    %1121 = vrot.lane.b32.xlu0 %v1118, 1
    %v1122 = vpop.permute.xlu0 %1121
    %1123 = vrot.lane.b32.xlu0 %v1117, 1
    %v1124 = vpop.permute.xlu0 %1123
    %vm1125 = vcmask 7168
    %v1126 = vsel %vm1125, %v1120, %v1122
    %v1127 = vsel %vm1125, %v1122, %v1124
    %v1130 = vsel %vm299, %v1126, 0.0
    %v1131 = vsel %vm300, %v1127, 0.0
    %v1132 = vstv %s1100
    %v1133 = vmul.f32 %v1132, %v1130
    %v1134 = vmul.f32 %v1132, %v1131
    %v1135 = vadd.f32 %v1098, %v1133
    %v1136 = vadd.f32 %v1099, %v1134
    %s1137 = sld [smem:[#allocation4 + $0x18]]
    %v1138 = vld [vmem:[#allocation2 + $0x2] sm:$0xf]
    %v1139 = vstv %s1137
    %v1140 = vmul.f32 %v1139, %v1138
    %v1143 = vunpack.c.l.s4 1983009808
    %v1144 = vunpack.c.0.s8 %v1143
    %v1145 = vlaneseq
    %v1146 = vshrl.u32 %v1145, 7
    %v1147 = vsub.s32 %v1144, %v1146
    %v1148 = vrot.slane %v1140, %v1147
    %v1149 = vcombine.high %v1148, %v1148
    %v1152 = vadd.f32 %v1135, %v1148
    %v1153 = vadd.f32 %v1136, %v1149
    %s1154 = sld [smem:[#allocation4 + $0x19]]
    %v1155 = vld [vmem:[#allocation2 + $0x2] sm:$0x3f]
    %v1157 = vcombine.high %v1155, %v1155
    %v1159 = vunpack.c.l.s4 1983009808
    %v1160 = vunpack.c.0.s8 %v1159
    %v1161 = vlaneseq
    %v1162 = vshrl.u32 %v1161, 7
    %v1163 = vsub.s32 %v1160, %v1162
    %v1164 = vrot.slane %v1155, %v1163
    %v1166 = vunpack.c.l.s4 1983009808
    %v1167 = vunpack.c.0.s8 %v1166
    %v1168 = vlaneseq
    %v1169 = vshrl.u32 %v1168, 7
    %v1170 = vsub.s32 %v1167, %v1169
    %v1171 = vrot.slane %v1157, %v1170
    %v1172 = vcombine.high %v1164, %v1164
    %1173 = vrot.lane.b32.xlu0 %v1164, 127
    %v1174 = vpop.permute.xlu0 %1173
    %1175 = vrot.lane.b32.xlu0 %v1172, 127
    %v1176 = vpop.permute.xlu0 %1175
    %1177 = vrot.lane.b32.xlu0 %v1171, 127
    %v1178 = vpop.permute.xlu0 %1177
    %vm1179 = vcmask 1039360
    %v1180 = vsel %vm1179, %v1174, %v1176
    %v1181 = vsel %vm1179, %v1176, %v1178
    %v1184 = vsel %vm381, %v1180, 0.0
    %v1185 = vsel %vm382, %v1181, 0.0
    %v1186 = vstv %s1154
    %v1187 = vmul.f32 %v1186, %v1184
    %v1188 = vmul.f32 %v1186, %v1185
    %v1189 = vadd.f32 %v1152, %v1187
    %v1190 = vadd.f32 %v1153, %v1188
    %s1191 = sld [smem:[#allocation4 + $0x1a]]
    %v1192 = vld [vmem:[#allocation2 + $0x2] sm:$0x3f]
    %v1194 = vcombine.high %v1192, %v1192
    %v1196 = vunpack.c.l.s4 1983009808
    %v1197 = vunpack.c.0.s8 %v1196
    %v1198 = vlaneseq
    %v1199 = vshrl.u32 %v1198, 7
    %v1200 = vsub.s32 %v1197, %v1199
    %v1201 = vrot.slane %v1192, %v1200
    %v1203 = vunpack.c.l.s4 1983009808
    %v1204 = vunpack.c.0.s8 %v1203
    %v1205 = vlaneseq
    %v1206 = vshrl.u32 %v1205, 7
    %v1207 = vsub.s32 %v1204, %v1206
    %v1208 = vrot.slane %v1194, %v1207
    %v1209 = vcombine.high %v1201, %v1201
    %1210 = vrot.lane.b32.xlu0 %v1201, 126
    %v1211 = vpop.permute.xlu0 %1210
    %1212 = vrot.lane.b32.xlu0 %v1209, 126
    %v1213 = vpop.permute.xlu0 %1212
    %1214 = vrot.lane.b32.xlu0 %v1208, 126
    %v1215 = vpop.permute.xlu0 %1214
    %vm1216 = vcmask 1031168
    %v1217 = vsel %vm1216, %v1211, %v1213
    %v1218 = vsel %vm1216, %v1213, %v1215
    %v1221 = vsel %vm429, %v1217, 0.0
    %v1222 = vsel %vm430, %v1218, 0.0
    %v1223 = vstv %s1191
    %v1224 = vmul.f32 %v1223, %v1221
    %v1225 = vmul.f32 %v1223, %v1222
    %v1226 = vadd.f32 %v1189, %v1224
    %v1227 = vadd.f32 %v1190, %v1225
    %s1228 = sld [smem:[#allocation4 + $0x1b]]
    %v1229 = vld [vmem:[#allocation2 + $0x2] sm:$0x3f]
    %v1231 = vcombine.high %v1229, %v1229
    %v1233 = vunpack.c.l.s4 1983009808
    %v1234 = vunpack.c.0.s8 %v1233
    %v1235 = vlaneseq
    %v1236 = vshrl.u32 %v1235, 7
    %v1237 = vsub.s32 %v1234, %v1236
    %v1238 = vrot.slane %v1229, %v1237
    %v1240 = vunpack.c.l.s4 1983009808
    %v1241 = vunpack.c.0.s8 %v1240
    %v1242 = vlaneseq
    %v1243 = vshrl.u32 %v1242, 7
    %v1244 = vsub.s32 %v1241, %v1243
    %v1245 = vrot.slane %v1231, %v1244
    %v1246 = vcombine.high %v1238, %v1238
    %1247 = vrot.lane.b32.xlu0 %v1238, 125
    %v1248 = vpop.permute.xlu0 %1247
    %1249 = vrot.lane.b32.xlu0 %v1246, 125
    %v1250 = vpop.permute.xlu0 %1249
    %1251 = vrot.lane.b32.xlu0 %v1245, 125
    %v1252 = vpop.permute.xlu0 %1251
    %vm1253 = vcmask 1022976
    %v1254 = vsel %vm1253, %v1248, %v1250
    %v1255 = vsel %vm1253, %v1250, %v1252
    %v1258 = vsel %vm477, %v1254, 0.0
    %v1259 = vsel %vm478, %v1255, 0.0
    %v1260 = vstv %s1228
    %v1261 = vmul.f32 %v1260, %v1258
    %v1262 = vmul.f32 %v1260, %v1259
    %v1263 = vadd.f32 %v1226, %v1261
    %v1264 = vadd.f32 %v1227, %v1262
    %s1265 = sld [smem:[#allocation4 + $0x1c]]
    %v1266 = vld [vmem:[#allocation2 + $0x2] sm:$0x3f]
    %v1268 = vcombine.high %v1266, %v1266
    %v1270 = vunpack.c.l.s4 1983009808
    %v1271 = vunpack.c.0.s8 %v1270
    %v1272 = vlaneseq
    %v1273 = vshrl.u32 %v1272, 7
    %v1274 = vsub.s32 %v1271, %v1273
    %v1275 = vrot.slane %v1266, %v1274
    %v1277 = vunpack.c.l.s4 1983009808
    %v1278 = vunpack.c.0.s8 %v1277
    %v1279 = vlaneseq
    %v1280 = vshrl.u32 %v1279, 7
    %v1281 = vsub.s32 %v1278, %v1280
    %v1282 = vrot.slane %v1268, %v1281
    %v1283 = vcombine.high %v1275, %v1275
    %1284 = vrot.lane.b32.xlu0 %v1275, 115
    %v1285 = vpop.permute.xlu0 %1284
    %1286 = vrot.lane.b32.xlu0 %v1283, 115
    %v1287 = vpop.permute.xlu0 %1286
    %1288 = vrot.lane.b32.xlu0 %v1282, 115
    %v1289 = vpop.permute.xlu0 %1288
    %vm1290 = vcmask 941056
    %v1291 = vsel %vm1290, %v1285, %v1287
    %v1292 = vsel %vm1290, %v1287, %v1289
    %v1295 = vsel %vm203, %v1291, 0.0
    %v1296 = vsel %vm204, %v1292, 0.0
    %v1297 = vstv %s1265
    %v1298 = vmul.f32 %v1297, %v1295
    %v1299 = vmul.f32 %v1297, %v1296
    %v1300 = vadd.f32 %v1263, %v1298
    %v1301 = vadd.f32 %v1264, %v1299
    %s1302 = sld [smem:[#allocation4 + $0x1d]]
    %v1303 = vld [vmem:[#allocation2 + $0x2] sm:$0x3f]
    %v1305 = vcombine.high %v1303, %v1303
    %v1307 = vunpack.c.l.s4 1983009808
    %v1308 = vunpack.c.0.s8 %v1307
    %v1309 = vlaneseq
    %v1310 = vshrl.u32 %v1309, 7
    %v1311 = vsub.s32 %v1308, %v1310
    %v1312 = vrot.slane %v1303, %v1311
    %v1314 = vunpack.c.l.s4 1983009808
    %v1315 = vunpack.c.0.s8 %v1314
    %v1316 = vlaneseq
    %v1317 = vshrl.u32 %v1316, 7
    %v1318 = vsub.s32 %v1315, %v1317
    %v1319 = vrot.slane %v1305, %v1318
    %v1320 = vcombine.high %v1312, %v1312
    %1321 = vrot.lane.b32.xlu0 %v1312, 114
    %v1322 = vpop.permute.xlu0 %1321
    %1323 = vrot.lane.b32.xlu0 %v1320, 114
    %v1324 = vpop.permute.xlu0 %1323
    %1325 = vrot.lane.b32.xlu0 %v1319, 114
    %v1326 = vpop.permute.xlu0 %1325
    %vm1327 = vcmask 932864
    %v1328 = vsel %vm1327, %v1322, %v1324
    %v1329 = vsel %vm1327, %v1324, %v1326
    %v1332 = vsel %vm251, %v1328, 0.0
    %v1333 = vsel %vm252, %v1329, 0.0
    %v1334 = vstv %s1302
    %v1335 = vmul.f32 %v1334, %v1332
    %v1336 = vmul.f32 %v1334, %v1333
    %v1337 = vadd.f32 %v1300, %v1335
    %v1338 = vadd.f32 %v1301, %v1336
    %s1339 = sld [smem:[#allocation4 + $0x1e]]
    %v1340 = vld [vmem:[#allocation2 + $0x2] sm:$0x3f]
    %v1342 = vcombine.high %v1340, %v1340
    %v1344 = vunpack.c.l.s4 1983009808
    %v1345 = vunpack.c.0.s8 %v1344
    %v1346 = vlaneseq
    %v1347 = vshrl.u32 %v1346, 7
    %v1348 = vsub.s32 %v1345, %v1347
    %v1349 = vrot.slane %v1340, %v1348
    %v1351 = vunpack.c.l.s4 1983009808
    %v1352 = vunpack.c.0.s8 %v1351
    %v1353 = vlaneseq
    %v1354 = vshrl.u32 %v1353, 7
    %v1355 = vsub.s32 %v1352, %v1354
    %v1356 = vrot.slane %v1342, %v1355
    %v1357 = vcombine.high %v1349, %v1349
    %1358 = vrot.lane.b32.xlu0 %v1349, 113
    %v1359 = vpop.permute.xlu0 %1358
    %1360 = vrot.lane.b32.xlu0 %v1357, 113
    %v1361 = vpop.permute.xlu0 %1360
    %1362 = vrot.lane.b32.xlu0 %v1356, 113
    %v1363 = vpop.permute.xlu0 %1362
    %vm1364 = vcmask 924672
    %v1365 = vsel %vm1364, %v1359, %v1361
    %v1366 = vsel %vm1364, %v1361, %v1363
    %v1369 = vsel %vm299, %v1365, 0.0
    %v1370 = vsel %vm300, %v1366, 0.0
    %v1371 = vstv %s1339
    %v1372 = vmul.f32 %v1371, %v1369
    %v1373 = vmul.f32 %v1371, %v1370
    %v1374 = vadd.f32 %v1337, %v1372
    %v1375 = vadd.f32 %v1338, %v1373
    %s1376 = sld [smem:[#allocation4 + $0x1f]]
    %v1377 = vld [vmem:[#allocation2 + $0x2] sm:$0x3f]
    %v1378 = vstv %s1376
    %v1379 = vmul.f32 %v1378, %v1377
    %v1381 = vcombine.high %v1379, %v1379
    %v1383 = vunpack.c.l.s4 1983009808
    %v1384 = vunpack.c.0.s8 %v1383
    %v1385 = vlaneseq
    %v1386 = vshrl.u32 %v1385, 7
    %v1387 = vsub.s32 %v1384, %v1386
    %v1388 = vrot.slane %v1379, %v1387
    %v1390 = vunpack.c.l.s4 1983009808
    %v1391 = vunpack.c.0.s8 %v1390
    %v1392 = vlaneseq
    %v1393 = vshrl.u32 %v1392, 7
    %v1394 = vsub.s32 %v1391, %v1393
    %v1395 = vrot.slane %v1381, %v1394
    %v1396 = vcombine.high %v1388, %v1388
    %1397 = vrot.lane.b32.xlu0 %v1388, 112
    %v1398 = vpop.permute.xlu0 %1397
    %1399 = vrot.lane.b32.xlu0 %v1396, 112
    %v1400 = vpop.permute.xlu0 %1399
    %1401 = vrot.lane.b32.xlu0 %v1395, 112
    %v1402 = vpop.permute.xlu0 %1401
    %vm1403 = vcmask 916480
    %v1404 = vsel %vm1403, %v1398, %v1400
    %v1405 = vsel %vm1403, %v1400, %v1402
    %v1408 = vadd.f32 %v1374, %v1404
    %v1409 = vadd.f32 %v1375, %v1405
    %s1410 = sld [smem:[#allocation4 + $0x20]]
    %v1411 = vld [vmem:[#allocation2 + $0x2] sm:$0x3f]
    %v1413 = vcombine.high %v1411, %v1411
    %v1415 = vunpack.c.l.s4 1983009808
    %v1416 = vunpack.c.0.s8 %v1415
    %v1417 = vlaneseq
    %v1418 = vshrl.u32 %v1417, 7
    %v1419 = vsub.s32 %v1416, %v1418
    %v1420 = vrot.slane %v1411, %v1419
    %v1422 = vunpack.c.l.s4 1983009808
    %v1423 = vunpack.c.0.s8 %v1422
    %v1424 = vlaneseq
    %v1425 = vshrl.u32 %v1424, 7
    %v1426 = vsub.s32 %v1423, %v1425
    %v1427 = vrot.slane %v1413, %v1426
    %v1428 = vcombine.high %v1420, %v1420
    %1429 = vrot.lane.b32.xlu0 %v1420, 111
    %v1430 = vpop.permute.xlu0 %1429
    %1431 = vrot.lane.b32.xlu0 %v1428, 111
    %v1432 = vpop.permute.xlu0 %1431
    %1433 = vrot.lane.b32.xlu0 %v1427, 111
    %v1434 = vpop.permute.xlu0 %1433
    %vm1435 = vcmask 908288
    %v1436 = vsel %vm1435, %v1430, %v1432
    %v1437 = vsel %vm1435, %v1432, %v1434
    %v1440 = vsel %vm381, %v1436, 0.0
    %v1441 = vsel %vm382, %v1437, 0.0
    %v1442 = vstv %s1410
    %v1443 = vmul.f32 %v1442, %v1440
    %v1444 = vmul.f32 %v1442, %v1441
    %v1445 = vadd.f32 %v1408, %v1443
    %v1446 = vadd.f32 %v1409, %v1444
    %s1447 = sld [smem:[#allocation4 + $0x21]]
    %v1448 = vld [vmem:[#allocation2 + $0x2] sm:$0x3f]
    %v1450 = vcombine.high %v1448, %v1448
    %v1452 = vunpack.c.l.s4 1983009808
    %v1453 = vunpack.c.0.s8 %v1452
    %v1454 = vlaneseq
    %v1455 = vshrl.u32 %v1454, 7
    %v1456 = vsub.s32 %v1453, %v1455
    %v1457 = vrot.slane %v1448, %v1456
    %v1459 = vunpack.c.l.s4 1983009808
    %v1460 = vunpack.c.0.s8 %v1459
    %v1461 = vlaneseq
    %v1462 = vshrl.u32 %v1461, 7
    %v1463 = vsub.s32 %v1460, %v1462
    %v1464 = vrot.slane %v1450, %v1463
    %v1465 = vcombine.high %v1457, %v1457
    %1466 = vrot.lane.b32.xlu0 %v1457, 110
    %v1467 = vpop.permute.xlu0 %1466
    %1468 = vrot.lane.b32.xlu0 %v1465, 110
    %v1469 = vpop.permute.xlu0 %1468
    %1470 = vrot.lane.b32.xlu0 %v1464, 110
    %v1471 = vpop.permute.xlu0 %1470
    %vm1472 = vcmask 900096
    %v1473 = vsel %vm1472, %v1467, %v1469
    %v1474 = vsel %vm1472, %v1469, %v1471
    %v1477 = vsel %vm429, %v1473, 0.0
    %v1478 = vsel %vm430, %v1474, 0.0
    %v1479 = vstv %s1447
    %v1480 = vmul.f32 %v1479, %v1477
    %v1481 = vmul.f32 %v1479, %v1478
    %v1482 = vadd.f32 %v1445, %v1480
    %v1483 = vadd.f32 %v1446, %v1481
    %s1484 = sld [smem:[#allocation4 + $0x22]]
    %v1485 = vld [vmem:[#allocation2 + $0x2] sm:$0x3f]
    %v1487 = vcombine.high %v1485, %v1485
    %v1489 = vunpack.c.l.s4 1983009808
    %v1490 = vunpack.c.0.s8 %v1489
    %v1491 = vlaneseq
    %v1492 = vshrl.u32 %v1491, 7
    %v1493 = vsub.s32 %v1490, %v1492
    %v1494 = vrot.slane %v1485, %v1493
    %v1496 = vunpack.c.l.s4 1983009808
    %v1497 = vunpack.c.0.s8 %v1496
    %v1498 = vlaneseq
    %v1499 = vshrl.u32 %v1498, 7
    %v1500 = vsub.s32 %v1497, %v1499
    %v1501 = vrot.slane %v1487, %v1500
    %v1502 = vcombine.high %v1494, %v1494
    %1503 = vrot.lane.b32.xlu0 %v1494, 109
    %v1504 = vpop.permute.xlu0 %1503
    %1505 = vrot.lane.b32.xlu0 %v1502, 109
    %v1506 = vpop.permute.xlu0 %1505
    %1507 = vrot.lane.b32.xlu0 %v1501, 109
    %v1508 = vpop.permute.xlu0 %1507
    %vm1509 = vcmask 891904
    %v1510 = vsel %vm1509, %v1504, %v1506
    %v1511 = vsel %vm1509, %v1506, %v1508
    %v1514 = vsel %vm477, %v1510, 0.0
    %v1515 = vsel %vm478, %v1511, 0.0
    %v1516 = vstv %s1484
    %v1517 = vmul.f32 %v1516, %v1514
    %v1518 = vmul.f32 %v1516, %v1515
    %v1519 = vadd.f32 %v1482, %v1517
    %v1520 = vadd.f32 %v1483, %v1518
    %s1521 = sld [smem:[#allocation4 + $0x23]]
    %v1522 = vld [vmem:[#allocation2 + $0x2] sm:$0x3f]
    %v1524 = vcombine.high %v1522, %v1522
    %v1526 = vunpack.c.l.s4 1983009808
    %v1527 = vunpack.c.0.s8 %v1526
    %v1528 = vlaneseq
    %v1529 = vshrl.u32 %v1528, 7
    %v1530 = vsub.s32 %v1527, %v1529
    %v1531 = vrot.slane %v1522, %v1530
    %v1533 = vunpack.c.l.s4 1983009808
    %v1534 = vunpack.c.0.s8 %v1533
    %v1535 = vlaneseq
    %v1536 = vshrl.u32 %v1535, 7
    %v1537 = vsub.s32 %v1534, %v1536
    %v1538 = vrot.slane %v1524, %v1537
    %v1539 = vcombine.high %v1531, %v1531
    %1540 = vrot.lane.b32.xlu0 %v1531, 99
    %v1541 = vpop.permute.xlu0 %1540
    %1542 = vrot.lane.b32.xlu0 %v1539, 99
    %v1543 = vpop.permute.xlu0 %1542
    %1544 = vrot.lane.b32.xlu0 %v1538, 99
    %v1545 = vpop.permute.xlu0 %1544
    %vm1546 = vcmask 809984
    %v1547 = vsel %vm1546, %v1541, %v1543
    %v1548 = vsel %vm1546, %v1543, %v1545
    %v1551 = vsel %vm203, %v1547, 0.0
    %v1552 = vsel %vm204, %v1548, 0.0
    %v1553 = vstv %s1521
    %v1554 = vmul.f32 %v1553, %v1551
    %v1555 = vmul.f32 %v1553, %v1552
    %v1556 = vadd.f32 %v1519, %v1554
    %v1557 = vadd.f32 %v1520, %v1555
    %s1558 = sld [smem:[#allocation4 + $0x24]]
    %v1559 = vld [vmem:[#allocation2 + $0x2] sm:$0x3f]
    %v1561 = vcombine.high %v1559, %v1559
    %v1563 = vunpack.c.l.s4 1983009808
    %v1564 = vunpack.c.0.s8 %v1563
    %v1565 = vlaneseq
    %v1566 = vshrl.u32 %v1565, 7
    %v1567 = vsub.s32 %v1564, %v1566
    %v1568 = vrot.slane %v1559, %v1567
    %v1570 = vunpack.c.l.s4 1983009808
    %v1571 = vunpack.c.0.s8 %v1570
    %v1572 = vlaneseq
    %v1573 = vshrl.u32 %v1572, 7
    %v1574 = vsub.s32 %v1571, %v1573
    %v1575 = vrot.slane %v1561, %v1574
    %v1576 = vcombine.high %v1568, %v1568
    %1577 = vrot.lane.b32.xlu0 %v1568, 98
    %v1578 = vpop.permute.xlu0 %1577
    %1579 = vrot.lane.b32.xlu0 %v1576, 98
    %v1580 = vpop.permute.xlu0 %1579
    %1581 = vrot.lane.b32.xlu0 %v1575, 98
    %v1582 = vpop.permute.xlu0 %1581
    %vm1583 = vcmask 801792
    %v1584 = vsel %vm1583, %v1578, %v1580
    %v1585 = vsel %vm1583, %v1580, %v1582
    %v1588 = vsel %vm251, %v1584, 0.0
    %v1589 = vsel %vm252, %v1585, 0.0
    %v1590 = vstv %s1558
    %v1591 = vmul.f32 %v1590, %v1588
    %v1592 = vmul.f32 %v1590, %v1589
    %v1593 = vadd.f32 %v1556, %v1591
    %v1594 = vadd.f32 %v1557, %v1592
    %s1595 = sld [smem:[#allocation4 + $0x25]]
    %v1596 = vld [vmem:[#allocation2 + $0x2] sm:$0x3f]
    %v1598 = vcombine.high %v1596, %v1596
    %v1600 = vunpack.c.l.s4 1983009808
    %v1601 = vunpack.c.0.s8 %v1600
    %v1602 = vlaneseq
    %v1603 = vshrl.u32 %v1602, 7
    %v1604 = vsub.s32 %v1601, %v1603
    %v1605 = vrot.slane %v1596, %v1604
    %v1607 = vunpack.c.l.s4 1983009808
    %v1608 = vunpack.c.0.s8 %v1607
    %v1609 = vlaneseq
    %v1610 = vshrl.u32 %v1609, 7
    %v1611 = vsub.s32 %v1608, %v1610
    %v1612 = vrot.slane %v1598, %v1611
    %v1613 = vcombine.high %v1605, %v1605
    %1614 = vrot.lane.b32.xlu0 %v1605, 97
    %v1615 = vpop.permute.xlu0 %1614
    %1616 = vrot.lane.b32.xlu0 %v1613, 97
    %v1617 = vpop.permute.xlu0 %1616
    %1618 = vrot.lane.b32.xlu0 %v1612, 97
    %v1619 = vpop.permute.xlu0 %1618
    %vm1620 = vcmask 793600
    %v1621 = vsel %vm1620, %v1615, %v1617
    %v1622 = vsel %vm1620, %v1617, %v1619
    %v1625 = vsel %vm299, %v1621, 0.0
    %v1626 = vsel %vm300, %v1622, 0.0
    %v1627 = vstv %s1595
    %v1628 = vmul.f32 %v1627, %v1625
    %v1629 = vmul.f32 %v1627, %v1626
    %v1630 = vadd.f32 %v1593, %v1628
    %v1631 = vadd.f32 %v1594, %v1629
    %s1632 = sld [smem:[#allocation4 + $0x26]]
    %v1633 = vld [vmem:[#allocation2 + $0x2] sm:$0x3f]
    %v1634 = vstv %s1632
    %v1635 = vmul.f32 %v1634, %v1633
    %v1637 = vcombine.high %v1635, %v1635
    %v1639 = vunpack.c.l.s4 1983009808
    %v1640 = vunpack.c.0.s8 %v1639
    %v1641 = vlaneseq
    %v1642 = vshrl.u32 %v1641, 7
    %v1643 = vsub.s32 %v1640, %v1642
    %v1644 = vrot.slane %v1635, %v1643
    %v1646 = vunpack.c.l.s4 1983009808
    %v1647 = vunpack.c.0.s8 %v1646
    %v1648 = vlaneseq
    %v1649 = vshrl.u32 %v1648, 7
    %v1650 = vsub.s32 %v1647, %v1649
    %v1651 = vrot.slane %v1637, %v1650
    %v1652 = vcombine.high %v1644, %v1644
    %1653 = vrot.lane.b32.xlu0 %v1644, 96
    %v1654 = vpop.permute.xlu0 %1653
    %1655 = vrot.lane.b32.xlu0 %v1652, 96
    %v1656 = vpop.permute.xlu0 %1655
    %1657 = vrot.lane.b32.xlu0 %v1651, 96
    %v1658 = vpop.permute.xlu0 %1657
    %vm1659 = vcmask 785408
    %v1660 = vsel %vm1659, %v1654, %v1656
    %v1661 = vsel %vm1659, %v1656, %v1658
    %v1664 = vadd.f32 %v1630, %v1660
    %v1665 = vadd.f32 %v1631, %v1661
    %s1666 = sld [smem:[#allocation4 + $0x27]]
    %v1667 = vld [vmem:[#allocation2 + $0x2] sm:$0x3f]
    %v1669 = vcombine.high %v1667, %v1667
    %v1671 = vunpack.c.l.s4 1983009808
    %v1672 = vunpack.c.0.s8 %v1671
    %v1673 = vlaneseq
    %v1674 = vshrl.u32 %v1673, 7
    %v1675 = vsub.s32 %v1672, %v1674
    %v1676 = vrot.slane %v1667, %v1675
    %v1678 = vunpack.c.l.s4 1983009808
    %v1679 = vunpack.c.0.s8 %v1678
    %v1680 = vlaneseq
    %v1681 = vshrl.u32 %v1680, 7
    %v1682 = vsub.s32 %v1679, %v1681
    %v1683 = vrot.slane %v1669, %v1682
    %v1684 = vcombine.high %v1676, %v1676
    %1685 = vrot.lane.b32.xlu0 %v1676, 95
    %v1686 = vpop.permute.xlu0 %1685
    %1687 = vrot.lane.b32.xlu0 %v1684, 95
    %v1688 = vpop.permute.xlu0 %1687
    %1689 = vrot.lane.b32.xlu0 %v1683, 95
    %v1690 = vpop.permute.xlu0 %1689
    %vm1691 = vcmask 777216
    %v1692 = vsel %vm1691, %v1686, %v1688
    %v1693 = vsel %vm1691, %v1688, %v1690
    %v1696 = vsel %vm381, %v1692, 0.0
    %v1697 = vsel %vm382, %v1693, 0.0
    %v1698 = vstv %s1666
    %v1699 = vmul.f32 %v1698, %v1696
    %v1700 = vmul.f32 %v1698, %v1697
    %v1701 = vadd.f32 %v1664, %v1699
    %v1702 = vadd.f32 %v1665, %v1700
    %s1703 = sld [smem:[#allocation4 + $0x28]]
    %v1704 = vld [vmem:[#allocation2 + $0x2] sm:$0x3f]
    %v1706 = vcombine.high %v1704, %v1704
    %v1708 = vunpack.c.l.s4 1983009808
    %v1709 = vunpack.c.0.s8 %v1708
    %v1710 = vlaneseq
    %v1711 = vshrl.u32 %v1710, 7
    %v1712 = vsub.s32 %v1709, %v1711
    %v1713 = vrot.slane %v1704, %v1712
    %v1715 = vunpack.c.l.s4 1983009808
    %v1716 = vunpack.c.0.s8 %v1715
    %v1717 = vlaneseq
    %v1718 = vshrl.u32 %v1717, 7
    %v1719 = vsub.s32 %v1716, %v1718
    %v1720 = vrot.slane %v1706, %v1719
    %v1721 = vcombine.high %v1713, %v1713
    %1722 = vrot.lane.b32.xlu0 %v1713, 94
    %v1723 = vpop.permute.xlu0 %1722
    %1724 = vrot.lane.b32.xlu0 %v1721, 94
    %v1725 = vpop.permute.xlu0 %1724
    %1726 = vrot.lane.b32.xlu0 %v1720, 94
    %v1727 = vpop.permute.xlu0 %1726
    %vm1728 = vcmask 769024
    %v1729 = vsel %vm1728, %v1723, %v1725
    %v1730 = vsel %vm1728, %v1725, %v1727
    %v1733 = vsel %vm429, %v1729, 0.0
    %v1734 = vsel %vm430, %v1730, 0.0
    %v1735 = vstv %s1703
    %v1736 = vmul.f32 %v1735, %v1733
    %v1737 = vmul.f32 %v1735, %v1734
    %v1738 = vadd.f32 %v1701, %v1736
    %v1739 = vadd.f32 %v1702, %v1737
    %s1740 = sld [smem:[#allocation4 + $0x29]]
    %v1741 = vld [vmem:[#allocation2 + $0x2] sm:$0x3f]
    %v1743 = vcombine.high %v1741, %v1741
    %v1745 = vunpack.c.l.s4 1983009808
    %v1746 = vunpack.c.0.s8 %v1745
    %v1747 = vlaneseq
    %v1748 = vshrl.u32 %v1747, 7
    %v1749 = vsub.s32 %v1746, %v1748
    %v1750 = vrot.slane %v1741, %v1749
    %v1752 = vunpack.c.l.s4 1983009808
    %v1753 = vunpack.c.0.s8 %v1752
    %v1754 = vlaneseq
    %v1755 = vshrl.u32 %v1754, 7
    %v1756 = vsub.s32 %v1753, %v1755
    %v1757 = vrot.slane %v1743, %v1756
    %v1758 = vcombine.high %v1750, %v1750
    %1759 = vrot.lane.b32.xlu0 %v1750, 93
    %v1760 = vpop.permute.xlu0 %1759
    %1761 = vrot.lane.b32.xlu0 %v1758, 93
    %v1762 = vpop.permute.xlu0 %1761
    %1763 = vrot.lane.b32.xlu0 %v1757, 93
    %v1764 = vpop.permute.xlu0 %1763
    %vm1765 = vcmask 760832
    %v1766 = vsel %vm1765, %v1760, %v1762
    %v1767 = vsel %vm1765, %v1762, %v1764
    %v1770 = vsel %vm477, %v1766, 0.0
    %v1771 = vsel %vm478, %v1767, 0.0
    %v1772 = vstv %s1740
    %v1773 = vmul.f32 %v1772, %v1770
    %v1774 = vmul.f32 %v1772, %v1771
    %v1775 = vadd.f32 %v1738, %v1773
    %v1776 = vadd.f32 %v1739, %v1774
    %s1777 = sld [smem:[#allocation4 + $0x2a]]
    %v1778 = vld [vmem:[#allocation2 + $0x2] sm:$0x3f]
    %v1780 = vcombine.high %v1778, %v1778
    %v1782 = vunpack.c.l.s4 1983009808
    %v1783 = vunpack.c.0.s8 %v1782
    %v1784 = vlaneseq
    %v1785 = vshrl.u32 %v1784, 7
    %v1786 = vsub.s32 %v1783, %v1785
    %v1787 = vrot.slane %v1778, %v1786
    %v1789 = vunpack.c.l.s4 1983009808
    %v1790 = vunpack.c.0.s8 %v1789
    %v1791 = vlaneseq
    %v1792 = vshrl.u32 %v1791, 7
    %v1793 = vsub.s32 %v1790, %v1792
    %v1794 = vrot.slane %v1780, %v1793
    %v1795 = vcombine.high %v1787, %v1787
    %1796 = vrot.lane.b32.xlu0 %v1787, 83
    %v1797 = vpop.permute.xlu0 %1796
    %1798 = vrot.lane.b32.xlu0 %v1795, 83
    %v1799 = vpop.permute.xlu0 %1798
    %1800 = vrot.lane.b32.xlu0 %v1794, 83
    %v1801 = vpop.permute.xlu0 %1800
    %vm1802 = vcmask 678912
    %v1803 = vsel %vm1802, %v1797, %v1799
    %v1804 = vsel %vm1802, %v1799, %v1801
    %v1807 = vsel %vm203, %v1803, 0.0
    %v1808 = vsel %vm204, %v1804, 0.0
    %v1809 = vstv %s1777
    %v1810 = vmul.f32 %v1809, %v1807
    %v1811 = vmul.f32 %v1809, %v1808
    %v1812 = vadd.f32 %v1775, %v1810
    %v1813 = vadd.f32 %v1776, %v1811
    %s1814 = sld [smem:[#allocation4 + $0x2b]]
    %v1815 = vld [vmem:[#allocation2 + $0x2] sm:$0x3f]
    %v1817 = vcombine.high %v1815, %v1815
    %v1819 = vunpack.c.l.s4 1983009808
    %v1820 = vunpack.c.0.s8 %v1819
    %v1821 = vlaneseq
    %v1822 = vshrl.u32 %v1821, 7
    %v1823 = vsub.s32 %v1820, %v1822
    %v1824 = vrot.slane %v1815, %v1823
    %v1826 = vunpack.c.l.s4 1983009808
    %v1827 = vunpack.c.0.s8 %v1826
    %v1828 = vlaneseq
    %v1829 = vshrl.u32 %v1828, 7
    %v1830 = vsub.s32 %v1827, %v1829
    %v1831 = vrot.slane %v1817, %v1830
    %v1832 = vcombine.high %v1824, %v1824
    %1833 = vrot.lane.b32.xlu0 %v1824, 82
    %v1834 = vpop.permute.xlu0 %1833
    %1835 = vrot.lane.b32.xlu0 %v1832, 82
    %v1836 = vpop.permute.xlu0 %1835
    %1837 = vrot.lane.b32.xlu0 %v1831, 82
    %v1838 = vpop.permute.xlu0 %1837
    %vm1839 = vcmask 670720
    %v1840 = vsel %vm1839, %v1834, %v1836
    %v1841 = vsel %vm1839, %v1836, %v1838
    %v1844 = vsel %vm251, %v1840, 0.0
    %v1845 = vsel %vm252, %v1841, 0.0
    %v1846 = vstv %s1814
    %v1847 = vmul.f32 %v1846, %v1844
    %v1848 = vmul.f32 %v1846, %v1845
    %v1849 = vadd.f32 %v1812, %v1847
    %v1850 = vadd.f32 %v1813, %v1848
    %s1851 = sld [smem:[#allocation4 + $0x2c]]
    %v1852 = vld [vmem:[#allocation2 + $0x2] sm:$0x3f]
    %v1854 = vcombine.high %v1852, %v1852
    %v1856 = vunpack.c.l.s4 1983009808
    %v1857 = vunpack.c.0.s8 %v1856
    %v1858 = vlaneseq
    %v1859 = vshrl.u32 %v1858, 7
    %v1860 = vsub.s32 %v1857, %v1859
    %v1861 = vrot.slane %v1852, %v1860
    %v1863 = vunpack.c.l.s4 1983009808
    %v1864 = vunpack.c.0.s8 %v1863
    %v1865 = vlaneseq
    %v1866 = vshrl.u32 %v1865, 7
    %v1867 = vsub.s32 %v1864, %v1866
    %v1868 = vrot.slane %v1854, %v1867
    %v1869 = vcombine.high %v1861, %v1861
    %1870 = vrot.lane.b32.xlu0 %v1861, 81
    %v1871 = vpop.permute.xlu0 %1870
    %1872 = vrot.lane.b32.xlu0 %v1869, 81
    %v1873 = vpop.permute.xlu0 %1872
    %1874 = vrot.lane.b32.xlu0 %v1868, 81
    %v1875 = vpop.permute.xlu0 %1874
    %vm1876 = vcmask 662528
    %v1877 = vsel %vm1876, %v1871, %v1873
    %v1878 = vsel %vm1876, %v1873, %v1875
    %v1881 = vsel %vm299, %v1877, 0.0
    %v1882 = vsel %vm300, %v1878, 0.0
    %v1883 = vstv %s1851
    %v1884 = vmul.f32 %v1883, %v1881
    %v1885 = vmul.f32 %v1883, %v1882
    %v1886 = vadd.f32 %v1849, %v1884
    %v1887 = vadd.f32 %v1850, %v1885
    %s1888 = sld [smem:[#allocation4 + $0x2d]]
    %v1889 = vld [vmem:[#allocation2 + $0x2] sm:$0x3f]
    %v1890 = vstv %s1888
    %v1891 = vmul.f32 %v1890, %v1889
    %v1893 = vcombine.high %v1891, %v1891
    %v1895 = vunpack.c.l.s4 1983009808
    %v1896 = vunpack.c.0.s8 %v1895
    %v1897 = vlaneseq
    %v1898 = vshrl.u32 %v1897, 7
    %v1899 = vsub.s32 %v1896, %v1898
    %v1900 = vrot.slane %v1891, %v1899
    %v1902 = vunpack.c.l.s4 1983009808
    %v1903 = vunpack.c.0.s8 %v1902
    %v1904 = vlaneseq
    %v1905 = vshrl.u32 %v1904, 7
    %v1906 = vsub.s32 %v1903, %v1905
    %v1907 = vrot.slane %v1893, %v1906
    %v1908 = vcombine.high %v1900, %v1900
    %1909 = vrot.lane.b32.xlu0 %v1900, 80
    %v1910 = vpop.permute.xlu0 %1909
    %1911 = vrot.lane.b32.xlu0 %v1908, 80
    %v1912 = vpop.permute.xlu0 %1911
    %1913 = vrot.lane.b32.xlu0 %v1907, 80
    %v1914 = vpop.permute.xlu0 %1913
    %vm1915 = vcmask 654336
    %v1916 = vsel %vm1915, %v1910, %v1912
    %v1917 = vsel %vm1915, %v1912, %v1914
    %v1920 = vadd.f32 %v1886, %v1916
    %v1921 = vadd.f32 %v1887, %v1917
    %s1922 = sld [smem:[#allocation4 + $0x2e]]
    %v1923 = vld [vmem:[#allocation2 + $0x2] sm:$0x3f]
    %v1925 = vcombine.high %v1923, %v1923
    %v1927 = vunpack.c.l.s4 1983009808
    %v1928 = vunpack.c.0.s8 %v1927
    %v1929 = vlaneseq
    %v1930 = vshrl.u32 %v1929, 7
    %v1931 = vsub.s32 %v1928, %v1930
    %v1932 = vrot.slane %v1923, %v1931
    %v1934 = vunpack.c.l.s4 1983009808
    %v1935 = vunpack.c.0.s8 %v1934
    %v1936 = vlaneseq
    %v1937 = vshrl.u32 %v1936, 7
    %v1938 = vsub.s32 %v1935, %v1937
    %v1939 = vrot.slane %v1925, %v1938
    %v1940 = vcombine.high %v1932, %v1932
    %1941 = vrot.lane.b32.xlu0 %v1932, 79
    %v1942 = vpop.permute.xlu0 %1941
    %1943 = vrot.lane.b32.xlu0 %v1940, 79
    %v1944 = vpop.permute.xlu0 %1943
    %1945 = vrot.lane.b32.xlu0 %v1939, 79
    %v1946 = vpop.permute.xlu0 %1945
    %vm1947 = vcmask 646144
    %v1948 = vsel %vm1947, %v1942, %v1944
    %v1949 = vsel %vm1947, %v1944, %v1946
    %v1952 = vsel %vm381, %v1948, 0.0
    %v1953 = vsel %vm382, %v1949, 0.0
    %v1954 = vstv %s1922
    %v1955 = vmul.f32 %v1954, %v1952
    %v1956 = vmul.f32 %v1954, %v1953
    %v1957 = vadd.f32 %v1920, %v1955
    %v1958 = vadd.f32 %v1921, %v1956
    %s1959 = sld [smem:[#allocation4 + $0x2f]]
    %v1960 = vld [vmem:[#allocation2 + $0x2] sm:$0x3f]
    %v1962 = vcombine.high %v1960, %v1960
    %v1964 = vunpack.c.l.s4 1983009808
    %v1965 = vunpack.c.0.s8 %v1964
    %v1966 = vlaneseq
    %v1967 = vshrl.u32 %v1966, 7
    %v1968 = vsub.s32 %v1965, %v1967
    %v1969 = vrot.slane %v1960, %v1968
    %v1971 = vunpack.c.l.s4 1983009808
    %v1972 = vunpack.c.0.s8 %v1971
    %v1973 = vlaneseq
    %v1974 = vshrl.u32 %v1973, 7
    %v1975 = vsub.s32 %v1972, %v1974
    %v1976 = vrot.slane %v1962, %v1975
    %v1977 = vcombine.high %v1969, %v1969
    %1978 = vrot.lane.b32.xlu0 %v1969, 78
    %v1979 = vpop.permute.xlu0 %1978
    %1980 = vrot.lane.b32.xlu0 %v1977, 78
    %v1981 = vpop.permute.xlu0 %1980
    %1982 = vrot.lane.b32.xlu0 %v1976, 78
    %v1983 = vpop.permute.xlu0 %1982
    %vm1984 = vcmask 637952
    %v1985 = vsel %vm1984, %v1979, %v1981
    %v1986 = vsel %vm1984, %v1981, %v1983
    %v1989 = vsel %vm429, %v1985, 0.0
    %v1990 = vsel %vm430, %v1986, 0.0
    %v1991 = vstv %s1959
    %v1992 = vmul.f32 %v1991, %v1989
    %v1993 = vmul.f32 %v1991, %v1990
    %v1994 = vadd.f32 %v1957, %v1992
    %v1995 = vadd.f32 %v1958, %v1993
    %s1996 = sld [smem:[#allocation4 + $0x30]]
    %v1997 = vld [vmem:[#allocation2 + $0x2] sm:$0x3f]
    %v1999 = vcombine.high %v1997, %v1997
    %v2001 = vunpack.c.l.s4 1983009808
    %v2002 = vunpack.c.0.s8 %v2001
    %v2003 = vlaneseq
    %v2004 = vshrl.u32 %v2003, 7
    %v2005 = vsub.s32 %v2002, %v2004
    %v2006 = vrot.slane %v1997, %v2005
    %v2008 = vunpack.c.l.s4 1983009808
    %v2009 = vunpack.c.0.s8 %v2008
    %v2010 = vlaneseq
    %v2011 = vshrl.u32 %v2010, 7
    %v2012 = vsub.s32 %v2009, %v2011
    %v2013 = vrot.slane %v1999, %v2012
    %v2014 = vcombine.high %v2006, %v2006
    %2015 = vrot.lane.b32.xlu0 %v2006, 77
    %v2016 = vpop.permute.xlu0 %2015
    %2017 = vrot.lane.b32.xlu0 %v2014, 77
    %v2018 = vpop.permute.xlu0 %2017
    %2019 = vrot.lane.b32.xlu0 %v2013, 77
    %v2020 = vpop.permute.xlu0 %2019
    %vm2021 = vcmask 629760
    %v2022 = vsel %vm2021, %v2016, %v2018
    %v2023 = vsel %vm2021, %v2018, %v2020
    %v2026 = vsel %vm477, %v2022, 0.0
    %v2027 = vsel %vm478, %v2023, 0.0
    %v2028 = vstv %s1996
    %v2029 = vmul.f32 %v2028, %v2026
    %v2030 = vmul.f32 %v2028, %v2027
    %v2031 = vadd.f32 %v1994, %v2029
    %v2032 = vadd.f32 %v1995, %v2030
    %s2033 = sld [smem:[#allocation4 + $0x31]]
    %v2034 = vld [vmem:[%s183] sm:$0x3f]
    %v2036 = vcombine.high %v2034, %v2034
    %v2038 = vunpack.c.l.s4 1983009808
    %v2039 = vunpack.c.0.s8 %v2038
    %v2040 = vlaneseq
    %v2041 = vshrl.u32 %v2040, 7
    %v2042 = vsub.s32 %v2039, %v2041
    %v2043 = vrot.slane %v2034, %v2042
    %v2045 = vunpack.c.l.s4 1983009808
    %v2046 = vunpack.c.0.s8 %v2045
    %v2047 = vlaneseq
    %v2048 = vshrl.u32 %v2047, 7
    %v2049 = vsub.s32 %v2046, %v2048
    %v2050 = vrot.slane %v2036, %v2049
    %v2051 = vcombine.high %v2043, %v2043
    %2052 = vrot.lane.b32.xlu0 %v2043, 51
    %v2053 = vpop.permute.xlu0 %2052
    %2054 = vrot.lane.b32.xlu0 %v2051, 51
    %v2055 = vpop.permute.xlu0 %2054
    %2056 = vrot.lane.b32.xlu0 %v2050, 51
    %v2057 = vpop.permute.xlu0 %2056
    %v2058 = vsel %vm228, %v2053, %v2055
    %v2059 = vsel %vm228, %v2055, %v2057
    %v2062 = vsel %vm203, %v2058, 0.0
    %v2063 = vsel %vm204, %v2059, 0.0
    %v2064 = vstv %s2033
    %v2065 = vmul.f32 %v2064, %v2062
    %v2066 = vmul.f32 %v2064, %v2063
    %v2067 = vadd.f32 %v2031, %v2065
    %v2068 = vadd.f32 %v2032, %v2066
    %s2069 = sld [smem:[#allocation4 + $0x32]]
    %v2070 = vld [vmem:[%s183] sm:$0x3f]
    %v2072 = vcombine.high %v2070, %v2070
    %v2074 = vunpack.c.l.s4 1983009808
    %v2075 = vunpack.c.0.s8 %v2074
    %v2076 = vlaneseq
    %v2077 = vshrl.u32 %v2076, 7
    %v2078 = vsub.s32 %v2075, %v2077
    %v2079 = vrot.slane %v2070, %v2078
    %v2081 = vunpack.c.l.s4 1983009808
    %v2082 = vunpack.c.0.s8 %v2081
    %v2083 = vlaneseq
    %v2084 = vshrl.u32 %v2083, 7
    %v2085 = vsub.s32 %v2082, %v2084
    %v2086 = vrot.slane %v2072, %v2085
    %v2087 = vcombine.high %v2079, %v2079
    %2088 = vrot.lane.b32.xlu0 %v2079, 50
    %v2089 = vpop.permute.xlu0 %2088
    %2090 = vrot.lane.b32.xlu0 %v2087, 50
    %v2091 = vpop.permute.xlu0 %2090
    %2092 = vrot.lane.b32.xlu0 %v2086, 50
    %v2093 = vpop.permute.xlu0 %2092
    %v2094 = vsel %vm276, %v2089, %v2091
    %v2095 = vsel %vm276, %v2091, %v2093
    %v2098 = vsel %vm251, %v2094, 0.0
    %v2099 = vsel %vm252, %v2095, 0.0
    %v2100 = vstv %s2069
    %v2101 = vmul.f32 %v2100, %v2098
    %v2102 = vmul.f32 %v2100, %v2099
    %v2103 = vadd.f32 %v2067, %v2101
    %v2104 = vadd.f32 %v2068, %v2102
    %s2105 = sld [smem:[#allocation4 + $0x33]]
    %v2106 = vld [vmem:[%s183] sm:$0x3f]
    %v2108 = vcombine.high %v2106, %v2106
    %v2110 = vunpack.c.l.s4 1983009808
    %v2111 = vunpack.c.0.s8 %v2110
    %v2112 = vlaneseq
    %v2113 = vshrl.u32 %v2112, 7
    %v2114 = vsub.s32 %v2111, %v2113
    %v2115 = vrot.slane %v2106, %v2114
    %v2117 = vunpack.c.l.s4 1983009808
    %v2118 = vunpack.c.0.s8 %v2117
    %v2119 = vlaneseq
    %v2120 = vshrl.u32 %v2119, 7
    %v2121 = vsub.s32 %v2118, %v2120
    %v2122 = vrot.slane %v2108, %v2121
    %v2123 = vcombine.high %v2115, %v2115
    %2124 = vrot.lane.b32.xlu0 %v2115, 49
    %v2125 = vpop.permute.xlu0 %2124
    %2126 = vrot.lane.b32.xlu0 %v2123, 49
    %v2127 = vpop.permute.xlu0 %2126
    %2128 = vrot.lane.b32.xlu0 %v2122, 49
    %v2129 = vpop.permute.xlu0 %2128
    %v2130 = vsel %vm324, %v2125, %v2127
    %v2131 = vsel %vm324, %v2127, %v2129
    %v2134 = vsel %vm299, %v2130, 0.0
    %v2135 = vsel %vm300, %v2131, 0.0
    %v2136 = vstv %s2105
    %v2137 = vmul.f32 %v2136, %v2134
    %v2138 = vmul.f32 %v2136, %v2135
    %v2139 = vadd.f32 %v2103, %v2137
    %v2140 = vadd.f32 %v2104, %v2138
    %s2141 = sld [smem:[#allocation4 + $0x34]]
    %v2142 = vld [vmem:[%s183] sm:$0x3f]
    %v2143 = vstv %s2141
    %v2144 = vmul.f32 %v2143, %v2142
    %v2146 = vcombine.high %v2144, %v2144
    %v2148 = vunpack.c.l.s4 1983009808
    %v2149 = vunpack.c.0.s8 %v2148
    %v2150 = vlaneseq
    %v2151 = vshrl.u32 %v2150, 7
    %v2152 = vsub.s32 %v2149, %v2151
    %v2153 = vrot.slane %v2144, %v2152
    %v2155 = vunpack.c.l.s4 1983009808
    %v2156 = vunpack.c.0.s8 %v2155
    %v2157 = vlaneseq
    %v2158 = vshrl.u32 %v2157, 7
    %v2159 = vsub.s32 %v2156, %v2158
    %v2160 = vrot.slane %v2146, %v2159
    %v2161 = vcombine.high %v2153, %v2153
    %2162 = vrot.lane.b32.xlu0 %v2153, 48
    %v2163 = vpop.permute.xlu0 %2162
    %2164 = vrot.lane.b32.xlu0 %v2161, 48
    %v2165 = vpop.permute.xlu0 %2164
    %2166 = vrot.lane.b32.xlu0 %v2160, 48
    %v2167 = vpop.permute.xlu0 %2166
    %v2168 = vsel %vm363, %v2163, %v2165
    %v2169 = vsel %vm363, %v2165, %v2167
    %v2172 = vadd.f32 %v2139, %v2168
    %v2173 = vadd.f32 %v2140, %v2169
    %s2174 = sld [smem:[#allocation4 + $0x35]]
    %v2175 = vld [vmem:[%s183] sm:$0x3f]
    %v2177 = vcombine.high %v2175, %v2175
    %v2179 = vunpack.c.l.s4 1983009808
    %v2180 = vunpack.c.0.s8 %v2179
    %v2181 = vlaneseq
    %v2182 = vshrl.u32 %v2181, 7
    %v2183 = vsub.s32 %v2180, %v2182
    %v2184 = vrot.slane %v2175, %v2183
    %v2186 = vunpack.c.l.s4 1983009808
    %v2187 = vunpack.c.0.s8 %v2186
    %v2188 = vlaneseq
    %v2189 = vshrl.u32 %v2188, 7
    %v2190 = vsub.s32 %v2187, %v2189
    %v2191 = vrot.slane %v2177, %v2190
    %v2192 = vcombine.high %v2184, %v2184
    %2193 = vrot.lane.b32.xlu0 %v2184, 47
    %v2194 = vpop.permute.xlu0 %2193
    %2195 = vrot.lane.b32.xlu0 %v2192, 47
    %v2196 = vpop.permute.xlu0 %2195
    %2197 = vrot.lane.b32.xlu0 %v2191, 47
    %v2198 = vpop.permute.xlu0 %2197
    %v2199 = vsel %vm406, %v2194, %v2196
    %v2200 = vsel %vm406, %v2196, %v2198
    %v2203 = vsel %vm381, %v2199, 0.0
    %v2204 = vsel %vm382, %v2200, 0.0
    %v2205 = vstv %s2174
    %v2206 = vmul.f32 %v2205, %v2203
    %v2207 = vmul.f32 %v2205, %v2204
    %v2208 = vadd.f32 %v2172, %v2206
    %v2209 = vadd.f32 %v2173, %v2207
    %s2210 = sld [smem:[#allocation4 + $0x36]]
    %v2211 = vld [vmem:[%s183] sm:$0x3f]
    %v2213 = vcombine.high %v2211, %v2211
    %v2215 = vunpack.c.l.s4 1983009808
    %v2216 = vunpack.c.0.s8 %v2215
    %v2217 = vlaneseq
    %v2218 = vshrl.u32 %v2217, 7
    %v2219 = vsub.s32 %v2216, %v2218
    %v2220 = vrot.slane %v2211, %v2219
    %v2222 = vunpack.c.l.s4 1983009808
    %v2223 = vunpack.c.0.s8 %v2222
    %v2224 = vlaneseq
    %v2225 = vshrl.u32 %v2224, 7
    %v2226 = vsub.s32 %v2223, %v2225
    %v2227 = vrot.slane %v2213, %v2226
    %v2228 = vcombine.high %v2220, %v2220
    %2229 = vrot.lane.b32.xlu0 %v2220, 46
    %v2230 = vpop.permute.xlu0 %2229
    %2231 = vrot.lane.b32.xlu0 %v2228, 46
    %v2232 = vpop.permute.xlu0 %2231
    %2233 = vrot.lane.b32.xlu0 %v2227, 46
    %v2234 = vpop.permute.xlu0 %2233
    %v2235 = vsel %vm454, %v2230, %v2232
    %v2236 = vsel %vm454, %v2232, %v2234
    %v2239 = vsel %vm429, %v2235, 0.0
    %v2240 = vsel %vm430, %v2236, 0.0
    %v2241 = vstv %s2210
    %v2242 = vmul.f32 %v2241, %v2239
    %v2243 = vmul.f32 %v2241, %v2240
    %v2244 = vadd.f32 %v2208, %v2242
    %v2245 = vadd.f32 %v2209, %v2243
    %s2246 = sld [smem:[#allocation4 + $0x37]]
    %v2247 = vld [vmem:[%s183] sm:$0x3f]
    %v2249 = vcombine.high %v2247, %v2247
    %v2251 = vunpack.c.l.s4 1983009808
    %v2252 = vunpack.c.0.s8 %v2251
    %v2253 = vlaneseq
    %v2254 = vshrl.u32 %v2253, 7
    %v2255 = vsub.s32 %v2252, %v2254
    %v2256 = vrot.slane %v2247, %v2255
    %v2258 = vunpack.c.l.s4 1983009808
    %v2259 = vunpack.c.0.s8 %v2258
    %v2260 = vlaneseq
    %v2261 = vshrl.u32 %v2260, 7
    %v2262 = vsub.s32 %v2259, %v2261
    %v2263 = vrot.slane %v2249, %v2262
    %v2264 = vcombine.high %v2256, %v2256
    %2265 = vrot.lane.b32.xlu0 %v2256, 45
    %v2266 = vpop.permute.xlu0 %2265
    %2267 = vrot.lane.b32.xlu0 %v2264, 45
    %v2268 = vpop.permute.xlu0 %2267
    %2269 = vrot.lane.b32.xlu0 %v2263, 45
    %v2270 = vpop.permute.xlu0 %2269
    %v2271 = vsel %vm502, %v2266, %v2268
    %v2272 = vsel %vm502, %v2268, %v2270
    %v2275 = vsel %vm477, %v2271, 0.0
    %v2276 = vsel %vm478, %v2272, 0.0
    %v2277 = vstv %s2246
    %v2278 = vmul.f32 %v2277, %v2275
    %v2279 = vmul.f32 %v2277, %v2276
    %v2280 = vadd.f32 %v2244, %v2278
    %v2281 = vadd.f32 %v2245, %v2279
    %s2282 = sld [smem:[#allocation4 + $0x38]]
    %v2283 = vld [vmem:[%s183] sm:$0x3f]
    %v2285 = vcombine.high %v2283, %v2283
    %v2287 = vunpack.c.l.s4 1983009808
    %v2288 = vunpack.c.0.s8 %v2287
    %v2289 = vlaneseq
    %v2290 = vshrl.u32 %v2289, 7
    %v2291 = vsub.s32 %v2288, %v2290
    %v2292 = vrot.slane %v2283, %v2291
    %v2294 = vunpack.c.l.s4 1983009808
    %v2295 = vunpack.c.0.s8 %v2294
    %v2296 = vlaneseq
    %v2297 = vshrl.u32 %v2296, 7
    %v2298 = vsub.s32 %v2295, %v2297
    %v2299 = vrot.slane %v2285, %v2298
    %v2300 = vcombine.high %v2292, %v2292
    %2301 = vrot.lane.b32.xlu0 %v2292, 35
    %v2302 = vpop.permute.xlu0 %2301
    %2303 = vrot.lane.b32.xlu0 %v2300, 35
    %v2304 = vpop.permute.xlu0 %2303
    %2305 = vrot.lane.b32.xlu0 %v2299, 35
    %v2306 = vpop.permute.xlu0 %2305
    %v2307 = vsel %vm539, %v2302, %v2304
    %v2308 = vsel %vm539, %v2304, %v2306
    %v2311 = vsel %vm203, %v2307, 0.0
    %v2312 = vsel %vm204, %v2308, 0.0
    %v2313 = vstv %s2282
    %v2314 = vmul.f32 %v2313, %v2311
    %v2315 = vmul.f32 %v2313, %v2312
    %v2316 = vadd.f32 %v2280, %v2314
    %v2317 = vadd.f32 %v2281, %v2315
    %s2318 = sld [smem:[#allocation4 + $0x39]]
    %v2319 = vld [vmem:[%s183] sm:$0x3f]
    %v2321 = vcombine.high %v2319, %v2319
    %v2323 = vunpack.c.l.s4 1983009808
    %v2324 = vunpack.c.0.s8 %v2323
    %v2325 = vlaneseq
    %v2326 = vshrl.u32 %v2325, 7
    %v2327 = vsub.s32 %v2324, %v2326
    %v2328 = vrot.slane %v2319, %v2327
    %v2330 = vunpack.c.l.s4 1983009808
    %v2331 = vunpack.c.0.s8 %v2330
    %v2332 = vlaneseq
    %v2333 = vshrl.u32 %v2332, 7
    %v2334 = vsub.s32 %v2331, %v2333
    %v2335 = vrot.slane %v2321, %v2334
    %v2336 = vcombine.high %v2328, %v2328
    %2337 = vrot.lane.b32.xlu0 %v2328, 34
    %v2338 = vpop.permute.xlu0 %2337
    %2339 = vrot.lane.b32.xlu0 %v2336, 34
    %v2340 = vpop.permute.xlu0 %2339
    %2341 = vrot.lane.b32.xlu0 %v2335, 34
    %v2342 = vpop.permute.xlu0 %2341
    %v2343 = vsel %vm576, %v2338, %v2340
    %v2344 = vsel %vm576, %v2340, %v2342
    %v2347 = vsel %vm251, %v2343, 0.0
    %v2348 = vsel %vm252, %v2344, 0.0
    %v2349 = vstv %s2318
    %v2350 = vmul.f32 %v2349, %v2347
    %v2351 = vmul.f32 %v2349, %v2348
    %v2352 = vadd.f32 %v2316, %v2350
    %v2353 = vadd.f32 %v2317, %v2351
    %s2354 = sld [smem:[#allocation4 + $0x3a]]
    %v2355 = vld [vmem:[%s183] sm:$0x3f]
    %v2357 = vcombine.high %v2355, %v2355
    %v2359 = vunpack.c.l.s4 1983009808
    %v2360 = vunpack.c.0.s8 %v2359
    %v2361 = vlaneseq
    %v2362 = vshrl.u32 %v2361, 7
    %v2363 = vsub.s32 %v2360, %v2362
    %v2364 = vrot.slane %v2355, %v2363
    %v2366 = vunpack.c.l.s4 1983009808
    %v2367 = vunpack.c.0.s8 %v2366
    %v2368 = vlaneseq
    %v2369 = vshrl.u32 %v2368, 7
    %v2370 = vsub.s32 %v2367, %v2369
    %v2371 = vrot.slane %v2357, %v2370
    %v2372 = vcombine.high %v2364, %v2364
    %2373 = vrot.lane.b32.xlu0 %v2364, 33
    %v2374 = vpop.permute.xlu0 %2373
    %2375 = vrot.lane.b32.xlu0 %v2372, 33
    %v2376 = vpop.permute.xlu0 %2375
    %2377 = vrot.lane.b32.xlu0 %v2371, 33
    %v2378 = vpop.permute.xlu0 %2377
    %v2379 = vsel %vm613, %v2374, %v2376
    %v2380 = vsel %vm613, %v2376, %v2378
    %v2383 = vsel %vm299, %v2379, 0.0
    %v2384 = vsel %vm300, %v2380, 0.0
    %v2385 = vstv %s2354
    %v2386 = vmul.f32 %v2385, %v2383
    %v2387 = vmul.f32 %v2385, %v2384
    %v2388 = vadd.f32 %v2352, %v2386
    %v2389 = vadd.f32 %v2353, %v2387
    %s2390 = sld [smem:[#allocation4 + $0x3b]]
    %v2391 = vld [vmem:[%s183] sm:$0x3f]
    %v2392 = vstv %s2390
    %v2393 = vmul.f32 %v2392, %v2391
    %v2395 = vcombine.high %v2393, %v2393
    %v2397 = vunpack.c.l.s4 1983009808
    %v2398 = vunpack.c.0.s8 %v2397
    %v2399 = vlaneseq
    %v2400 = vshrl.u32 %v2399, 7
    %v2401 = vsub.s32 %v2398, %v2400
    %v2402 = vrot.slane %v2393, %v2401
    %v2404 = vunpack.c.l.s4 1983009808
    %v2405 = vunpack.c.0.s8 %v2404
    %v2406 = vlaneseq
    %v2407 = vshrl.u32 %v2406, 7
    %v2408 = vsub.s32 %v2405, %v2407
    %v2409 = vrot.slane %v2395, %v2408
    %v2410 = vcombine.high %v2402, %v2402
    %2411 = vrot.lane.b32.xlu0 %v2402, 32
    %v2412 = vpop.permute.xlu0 %2411
    %2413 = vrot.lane.b32.xlu0 %v2410, 32
    %v2414 = vpop.permute.xlu0 %2413
    %2415 = vrot.lane.b32.xlu0 %v2409, 32
    %v2416 = vpop.permute.xlu0 %2415
    %v2417 = vsel %vm652, %v2412, %v2414
    %v2418 = vsel %vm652, %v2414, %v2416
    %v2421 = vadd.f32 %v2388, %v2417
    %v2422 = vadd.f32 %v2389, %v2418
    %s2423 = sld [smem:[#allocation4 + $0x3c]]
    %v2424 = vld [vmem:[%s183] sm:$0x3f]
    %v2426 = vcombine.high %v2424, %v2424
    %v2428 = vunpack.c.l.s4 1983009808
    %v2429 = vunpack.c.0.s8 %v2428
    %v2430 = vlaneseq
    %v2431 = vshrl.u32 %v2430, 7
    %v2432 = vsub.s32 %v2429, %v2431
    %v2433 = vrot.slane %v2424, %v2432
    %v2435 = vunpack.c.l.s4 1983009808
    %v2436 = vunpack.c.0.s8 %v2435
    %v2437 = vlaneseq
    %v2438 = vshrl.u32 %v2437, 7
    %v2439 = vsub.s32 %v2436, %v2438
    %v2440 = vrot.slane %v2426, %v2439
    %v2441 = vcombine.high %v2433, %v2433
    %2442 = vrot.lane.b32.xlu0 %v2433, 31
    %v2443 = vpop.permute.xlu0 %2442
    %2444 = vrot.lane.b32.xlu0 %v2441, 31
    %v2445 = vpop.permute.xlu0 %2444
    %2446 = vrot.lane.b32.xlu0 %v2440, 31
    %v2447 = vpop.permute.xlu0 %2446
    %v2448 = vsel %vm684, %v2443, %v2445
    %v2449 = vsel %vm684, %v2445, %v2447
    %v2452 = vsel %vm381, %v2448, 0.0
    %v2453 = vsel %vm382, %v2449, 0.0
    %v2454 = vstv %s2423
    %v2455 = vmul.f32 %v2454, %v2452
    %v2456 = vmul.f32 %v2454, %v2453
    %v2457 = vadd.f32 %v2421, %v2455
    %v2458 = vadd.f32 %v2422, %v2456
    %s2459 = sld [smem:[#allocation4 + $0x3d]]
    %v2460 = vld [vmem:[%s183] sm:$0x3f]
    %v2462 = vcombine.high %v2460, %v2460
    %v2464 = vunpack.c.l.s4 1983009808
    %v2465 = vunpack.c.0.s8 %v2464
    %v2466 = vlaneseq
    %v2467 = vshrl.u32 %v2466, 7
    %v2468 = vsub.s32 %v2465, %v2467
    %v2469 = vrot.slane %v2460, %v2468
    %v2471 = vunpack.c.l.s4 1983009808
    %v2472 = vunpack.c.0.s8 %v2471
    %v2473 = vlaneseq
    %v2474 = vshrl.u32 %v2473, 7
    %v2475 = vsub.s32 %v2472, %v2474
    %v2476 = vrot.slane %v2462, %v2475
    %v2477 = vcombine.high %v2469, %v2469
    %2478 = vrot.lane.b32.xlu0 %v2469, 30
    %v2479 = vpop.permute.xlu0 %2478
    %2480 = vrot.lane.b32.xlu0 %v2477, 30
    %v2481 = vpop.permute.xlu0 %2480
    %2482 = vrot.lane.b32.xlu0 %v2476, 30
    %v2483 = vpop.permute.xlu0 %2482
    %v2484 = vsel %vm721, %v2479, %v2481
    %v2485 = vsel %vm721, %v2481, %v2483
    %v2488 = vsel %vm429, %v2484, 0.0
    %v2489 = vsel %vm430, %v2485, 0.0
    %v2490 = vstv %s2459
    %v2491 = vmul.f32 %v2490, %v2488
    %v2492 = vmul.f32 %v2490, %v2489
    %v2493 = vadd.f32 %v2457, %v2491
    %v2494 = vadd.f32 %v2458, %v2492
    %s2495 = sld [smem:[#allocation4 + $0x3e]]
    %v2496 = vld [vmem:[%s183] sm:$0x3f]
    %v2498 = vcombine.high %v2496, %v2496
    %v2500 = vunpack.c.l.s4 1983009808
    %v2501 = vunpack.c.0.s8 %v2500
    %v2502 = vlaneseq
    %v2503 = vshrl.u32 %v2502, 7
    %v2504 = vsub.s32 %v2501, %v2503
    %v2505 = vrot.slane %v2496, %v2504
    %v2507 = vunpack.c.l.s4 1983009808
    %v2508 = vunpack.c.0.s8 %v2507
    %v2509 = vlaneseq
    %v2510 = vshrl.u32 %v2509, 7
    %v2511 = vsub.s32 %v2508, %v2510
    %v2512 = vrot.slane %v2498, %v2511
    %v2513 = vcombine.high %v2505, %v2505
    %2514 = vrot.lane.b32.xlu0 %v2505, 29
    %v2515 = vpop.permute.xlu0 %2514
    %2516 = vrot.lane.b32.xlu0 %v2513, 29
    %v2517 = vpop.permute.xlu0 %2516
    %2518 = vrot.lane.b32.xlu0 %v2512, 29
    %v2519 = vpop.permute.xlu0 %2518
    %v2520 = vsel %vm758, %v2515, %v2517
    %v2521 = vsel %vm758, %v2517, %v2519
    %v2524 = vsel %vm477, %v2520, 0.0
    %v2525 = vsel %vm478, %v2521, 0.0
    %v2526 = vstv %s2495
    %v2527 = vmul.f32 %v2526, %v2524
    %v2528 = vmul.f32 %v2526, %v2525
    %v2529 = vadd.f32 %v2493, %v2527
    %v2530 = vadd.f32 %v2494, %v2528
    %s2531 = sld [smem:[#allocation4 + $0x3f]]
    %v2532 = vld [vmem:[%s183] sm:$0x3f]
    %v2534 = vcombine.high %v2532, %v2532
    %v2536 = vunpack.c.l.s4 1983009808
    %v2537 = vunpack.c.0.s8 %v2536
    %v2538 = vlaneseq
    %v2539 = vshrl.u32 %v2538, 7
    %v2540 = vsub.s32 %v2537, %v2539
    %v2541 = vrot.slane %v2532, %v2540
    %v2543 = vunpack.c.l.s4 1983009808
    %v2544 = vunpack.c.0.s8 %v2543
    %v2545 = vlaneseq
    %v2546 = vshrl.u32 %v2545, 7
    %v2547 = vsub.s32 %v2544, %v2546
    %v2548 = vrot.slane %v2534, %v2547
    %v2549 = vcombine.high %v2541, %v2541
    %2550 = vrot.lane.b32.xlu0 %v2541, 19
    %v2551 = vpop.permute.xlu0 %2550
    %2552 = vrot.lane.b32.xlu0 %v2549, 19
    %v2553 = vpop.permute.xlu0 %2552
    %2554 = vrot.lane.b32.xlu0 %v2548, 19
    %v2555 = vpop.permute.xlu0 %2554
    %v2556 = vsel %vm795, %v2551, %v2553
    %v2557 = vsel %vm795, %v2553, %v2555
    %v2560 = vsel %vm203, %v2556, 0.0
    %v2561 = vsel %vm204, %v2557, 0.0
    %v2562 = vstv %s2531
    %v2563 = vmul.f32 %v2562, %v2560
    %v2564 = vmul.f32 %v2562, %v2561
    %v2565 = vadd.f32 %v2529, %v2563
    %v2566 = vadd.f32 %v2530, %v2564
    %s2567 = sld [smem:[#allocation4 + $0x40]]
    %v2568 = vld [vmem:[%s183] sm:$0x3f]
    %v2570 = vcombine.high %v2568, %v2568
    %v2572 = vunpack.c.l.s4 1983009808
    %v2573 = vunpack.c.0.s8 %v2572
    %v2574 = vlaneseq
    %v2575 = vshrl.u32 %v2574, 7
    %v2576 = vsub.s32 %v2573, %v2575
    %v2577 = vrot.slane %v2568, %v2576
    %v2579 = vunpack.c.l.s4 1983009808
    %v2580 = vunpack.c.0.s8 %v2579
    %v2581 = vlaneseq
    %v2582 = vshrl.u32 %v2581, 7
    %v2583 = vsub.s32 %v2580, %v2582
    %v2584 = vrot.slane %v2570, %v2583
    %v2585 = vcombine.high %v2577, %v2577
    %2586 = vrot.lane.b32.xlu0 %v2577, 18
    %v2587 = vpop.permute.xlu0 %2586
    %2588 = vrot.lane.b32.xlu0 %v2585, 18
    %v2589 = vpop.permute.xlu0 %2588
    %2590 = vrot.lane.b32.xlu0 %v2584, 18
    %v2591 = vpop.permute.xlu0 %2590
    %v2592 = vsel %vm832, %v2587, %v2589
    %v2593 = vsel %vm832, %v2589, %v2591
    %v2596 = vsel %vm251, %v2592, 0.0
    %v2597 = vsel %vm252, %v2593, 0.0
    %v2598 = vstv %s2567
    %v2599 = vmul.f32 %v2598, %v2596
    %v2600 = vmul.f32 %v2598, %v2597
    %v2601 = vadd.f32 %v2565, %v2599
    %v2602 = vadd.f32 %v2566, %v2600
    %s2603 = sld [smem:[#allocation4 + $0x41]]
    %v2604 = vld [vmem:[%s183] sm:$0x3f]
    %v2606 = vcombine.high %v2604, %v2604
    %v2608 = vunpack.c.l.s4 1983009808
    %v2609 = vunpack.c.0.s8 %v2608
    %v2610 = vlaneseq
    %v2611 = vshrl.u32 %v2610, 7
    %v2612 = vsub.s32 %v2609, %v2611
    %v2613 = vrot.slane %v2604, %v2612
    %v2615 = vunpack.c.l.s4 1983009808
    %v2616 = vunpack.c.0.s8 %v2615
    %v2617 = vlaneseq
    %v2618 = vshrl.u32 %v2617, 7
    %v2619 = vsub.s32 %v2616, %v2618
    %v2620 = vrot.slane %v2606, %v2619
    %v2621 = vcombine.high %v2613, %v2613
    %2622 = vrot.lane.b32.xlu0 %v2613, 17
    %v2623 = vpop.permute.xlu0 %2622
    %2624 = vrot.lane.b32.xlu0 %v2621, 17
    %v2625 = vpop.permute.xlu0 %2624
    %2626 = vrot.lane.b32.xlu0 %v2620, 17
    %v2627 = vpop.permute.xlu0 %2626
    %v2628 = vsel %vm869, %v2623, %v2625
    %v2629 = vsel %vm869, %v2625, %v2627
    %v2632 = vsel %vm299, %v2628, 0.0
    %v2633 = vsel %vm300, %v2629, 0.0
    %v2634 = vstv %s2603
    %v2635 = vmul.f32 %v2634, %v2632
    %v2636 = vmul.f32 %v2634, %v2633
    %v2637 = vadd.f32 %v2601, %v2635
    %v2638 = vadd.f32 %v2602, %v2636
    %s2639 = sld [smem:[#allocation4 + $0x42]]
    %v2640 = vld [vmem:[%s183] sm:$0x3f]
    %v2641 = vstv %s2639
    %v2642 = vmul.f32 %v2641, %v2640
    %v2644 = vcombine.high %v2642, %v2642
    %v2646 = vunpack.c.l.s4 1983009808
    %v2647 = vunpack.c.0.s8 %v2646
    %v2648 = vlaneseq
    %v2649 = vshrl.u32 %v2648, 7
    %v2650 = vsub.s32 %v2647, %v2649
    %v2651 = vrot.slane %v2642, %v2650
    %v2653 = vunpack.c.l.s4 1983009808
    %v2654 = vunpack.c.0.s8 %v2653
    %v2655 = vlaneseq
    %v2656 = vshrl.u32 %v2655, 7
    %v2657 = vsub.s32 %v2654, %v2656
    %v2658 = vrot.slane %v2644, %v2657
    %v2659 = vcombine.high %v2651, %v2651
    %2660 = vrot.lane.b32.xlu0 %v2651, 16
    %v2661 = vpop.permute.xlu0 %2660
    %2662 = vrot.lane.b32.xlu0 %v2659, 16
    %v2663 = vpop.permute.xlu0 %2662
    %2664 = vrot.lane.b32.xlu0 %v2658, 16
    %v2665 = vpop.permute.xlu0 %2664
    %v2666 = vsel %vm908, %v2661, %v2663
    %v2667 = vsel %vm908, %v2663, %v2665
    %v2670 = vadd.f32 %v2637, %v2666
    %v2671 = vadd.f32 %v2638, %v2667
    %s2672 = sld [smem:[#allocation4 + $0x43]]
    %v2673 = vld [vmem:[%s183] sm:$0x3f]
    %v2675 = vcombine.high %v2673, %v2673
    %v2677 = vunpack.c.l.s4 1983009808
    %v2678 = vunpack.c.0.s8 %v2677
    %v2679 = vlaneseq
    %v2680 = vshrl.u32 %v2679, 7
    %v2681 = vsub.s32 %v2678, %v2680
    %v2682 = vrot.slane %v2673, %v2681
    %v2684 = vunpack.c.l.s4 1983009808
    %v2685 = vunpack.c.0.s8 %v2684
    %v2686 = vlaneseq
    %v2687 = vshrl.u32 %v2686, 7
    %v2688 = vsub.s32 %v2685, %v2687
    %v2689 = vrot.slane %v2675, %v2688
    %v2690 = vcombine.high %v2682, %v2682
    %2691 = vrot.lane.b32.xlu0 %v2682, 15
    %v2692 = vpop.permute.xlu0 %2691
    %2693 = vrot.lane.b32.xlu0 %v2690, 15
    %v2694 = vpop.permute.xlu0 %2693
    %2695 = vrot.lane.b32.xlu0 %v2689, 15
    %v2696 = vpop.permute.xlu0 %2695
    %v2697 = vsel %vm940, %v2692, %v2694
    %v2698 = vsel %vm940, %v2694, %v2696
    %v2701 = vsel %vm381, %v2697, 0.0
    %v2702 = vsel %vm382, %v2698, 0.0
    %v2703 = vstv %s2672
    %v2704 = vmul.f32 %v2703, %v2701
    %v2705 = vmul.f32 %v2703, %v2702
    %v2706 = vadd.f32 %v2670, %v2704
    %v2707 = vadd.f32 %v2671, %v2705
    %s2708 = sld [smem:[#allocation4 + $0x44]]
    %v2709 = vld [vmem:[%s183] sm:$0x3f]
    %v2711 = vcombine.high %v2709, %v2709
    %v2713 = vunpack.c.l.s4 1983009808
    %v2714 = vunpack.c.0.s8 %v2713
    %v2715 = vlaneseq
    %v2716 = vshrl.u32 %v2715, 7
    %v2717 = vsub.s32 %v2714, %v2716
    %v2718 = vrot.slane %v2709, %v2717
    %v2720 = vunpack.c.l.s4 1983009808
    %v2721 = vunpack.c.0.s8 %v2720
    %v2722 = vlaneseq
    %v2723 = vshrl.u32 %v2722, 7
    %v2724 = vsub.s32 %v2721, %v2723
    %v2725 = vrot.slane %v2711, %v2724
    %v2726 = vcombine.high %v2718, %v2718
    %2727 = vrot.lane.b32.xlu0 %v2718, 14
    %v2728 = vpop.permute.xlu0 %2727
    %2729 = vrot.lane.b32.xlu0 %v2726, 14
    %v2730 = vpop.permute.xlu0 %2729
    %2731 = vrot.lane.b32.xlu0 %v2725, 14
    %v2732 = vpop.permute.xlu0 %2731
    %v2733 = vsel %vm977, %v2728, %v2730
    %v2734 = vsel %vm977, %v2730, %v2732
    %v2737 = vsel %vm429, %v2733, 0.0
    %v2738 = vsel %vm430, %v2734, 0.0
    %v2739 = vstv %s2708
    %v2740 = vmul.f32 %v2739, %v2737
    %v2741 = vmul.f32 %v2739, %v2738
    %v2742 = vadd.f32 %v2706, %v2740
    %v2743 = vadd.f32 %v2707, %v2741
    %s2744 = sld [smem:[#allocation4 + $0x45]]
    %v2745 = vld [vmem:[%s183] sm:$0x3f]
    %v2747 = vcombine.high %v2745, %v2745
    %v2749 = vunpack.c.l.s4 1983009808
    %v2750 = vunpack.c.0.s8 %v2749
    %v2751 = vlaneseq
    %v2752 = vshrl.u32 %v2751, 7
    %v2753 = vsub.s32 %v2750, %v2752
    %v2754 = vrot.slane %v2745, %v2753
    %v2756 = vunpack.c.l.s4 1983009808
    %v2757 = vunpack.c.0.s8 %v2756
    %v2758 = vlaneseq
    %v2759 = vshrl.u32 %v2758, 7
    %v2760 = vsub.s32 %v2757, %v2759
    %v2761 = vrot.slane %v2747, %v2760
    %v2762 = vcombine.high %v2754, %v2754
    %2763 = vrot.lane.b32.xlu0 %v2754, 13
    %v2764 = vpop.permute.xlu0 %2763
    %2765 = vrot.lane.b32.xlu0 %v2762, 13
    %v2766 = vpop.permute.xlu0 %2765
    %2767 = vrot.lane.b32.xlu0 %v2761, 13
    %v2768 = vpop.permute.xlu0 %2767
    %v2769 = vsel %vm1014, %v2764, %v2766
    %v2770 = vsel %vm1014, %v2766, %v2768
    %v2773 = vsel %vm477, %v2769, 0.0
    %v2774 = vsel %vm478, %v2770, 0.0
    %v2775 = vstv %s2744
    %v2776 = vmul.f32 %v2775, %v2773
    %v2777 = vmul.f32 %v2775, %v2774
    %v2778 = vadd.f32 %v2742, %v2776
    %v2779 = vadd.f32 %v2743, %v2777
    %s2780 = sld [smem:[#allocation4 + $0x46]]
    %v2781 = vld [vmem:[%s183] sm:$0x3f]
    %v2783 = vcombine.high %v2781, %v2781
    %v2785 = vunpack.c.l.s4 1983009808
    %v2786 = vunpack.c.0.s8 %v2785
    %v2787 = vlaneseq
    %v2788 = vshrl.u32 %v2787, 7
    %v2789 = vsub.s32 %v2786, %v2788
    %v2790 = vrot.slane %v2781, %v2789
    %v2792 = vunpack.c.l.s4 1983009808
    %v2793 = vunpack.c.0.s8 %v2792
    %v2794 = vlaneseq
    %v2795 = vshrl.u32 %v2794, 7
    %v2796 = vsub.s32 %v2793, %v2795
    %v2797 = vrot.slane %v2783, %v2796
    %v2798 = vcombine.high %v2790, %v2790
    %2799 = vrot.lane.b32.xlu0 %v2790, 3
    %v2800 = vpop.permute.xlu0 %2799
    %2801 = vrot.lane.b32.xlu0 %v2798, 3
    %v2802 = vpop.permute.xlu0 %2801
    %2803 = vrot.lane.b32.xlu0 %v2797, 3
    %v2804 = vpop.permute.xlu0 %2803
    %v2805 = vsel %vm1051, %v2800, %v2802
    %v2806 = vsel %vm1051, %v2802, %v2804
    %v2809 = vsel %vm203, %v2805, 0.0
    %v2810 = vsel %vm204, %v2806, 0.0
    %v2811 = vstv %s2780
    %v2812 = vmul.f32 %v2811, %v2809
    %v2813 = vmul.f32 %v2811, %v2810
    %v2814 = vadd.f32 %v2778, %v2812
    %v2815 = vadd.f32 %v2779, %v2813
    %s2816 = sld [smem:[#allocation4 + $0x47]]
    %v2817 = vld [vmem:[%s183] sm:$0x3f]
    %v2819 = vcombine.high %v2817, %v2817
    %v2821 = vunpack.c.l.s4 1983009808
    %v2822 = vunpack.c.0.s8 %v2821
    %v2823 = vlaneseq
    %v2824 = vshrl.u32 %v2823, 7
    %v2825 = vsub.s32 %v2822, %v2824
    %v2826 = vrot.slane %v2817, %v2825
    %v2828 = vunpack.c.l.s4 1983009808
    %v2829 = vunpack.c.0.s8 %v2828
    %v2830 = vlaneseq
    %v2831 = vshrl.u32 %v2830, 7
    %v2832 = vsub.s32 %v2829, %v2831
    %v2833 = vrot.slane %v2819, %v2832
    %v2834 = vcombine.high %v2826, %v2826
    %2835 = vrot.lane.b32.xlu0 %v2826, 2
    %v2836 = vpop.permute.xlu0 %2835
    %2837 = vrot.lane.b32.xlu0 %v2834, 2
    %v2838 = vpop.permute.xlu0 %2837
    %2839 = vrot.lane.b32.xlu0 %v2833, 2
    %v2840 = vpop.permute.xlu0 %2839
    %v2841 = vsel %vm1088, %v2836, %v2838
    %v2842 = vsel %vm1088, %v2838, %v2840
    %v2845 = vsel %vm251, %v2841, 0.0
    %v2846 = vsel %vm252, %v2842, 0.0
    %v2847 = vstv %s2816
    %v2848 = vmul.f32 %v2847, %v2845
    %v2849 = vmul.f32 %v2847, %v2846
    %v2850 = vadd.f32 %v2814, %v2848
    %v2851 = vadd.f32 %v2815, %v2849
    %s2852 = sld [smem:[#allocation4 + $0x48]]
    %v2853 = vld [vmem:[%s183] sm:$0x3f]
    %v2855 = vcombine.high %v2853, %v2853
    %v2857 = vunpack.c.l.s4 1983009808
    %v2858 = vunpack.c.0.s8 %v2857
    %v2859 = vlaneseq
    %v2860 = vshrl.u32 %v2859, 7
    %v2861 = vsub.s32 %v2858, %v2860
    %v2862 = vrot.slane %v2853, %v2861
    %v2864 = vunpack.c.l.s4 1983009808
    %v2865 = vunpack.c.0.s8 %v2864
    %v2866 = vlaneseq
    %v2867 = vshrl.u32 %v2866, 7
    %v2868 = vsub.s32 %v2865, %v2867
    %v2869 = vrot.slane %v2855, %v2868
    %v2870 = vcombine.high %v2862, %v2862
    %2871 = vrot.lane.b32.xlu0 %v2862, 1
    %v2872 = vpop.permute.xlu0 %2871
    %2873 = vrot.lane.b32.xlu0 %v2870, 1
    %v2874 = vpop.permute.xlu0 %2873
    %2875 = vrot.lane.b32.xlu0 %v2869, 1
    %v2876 = vpop.permute.xlu0 %2875
    %v2877 = vsel %vm1125, %v2872, %v2874
    %v2878 = vsel %vm1125, %v2874, %v2876
    %v2881 = vsel %vm299, %v2877, 0.0
    %v2882 = vsel %vm300, %v2878, 0.0
    %v2883 = vstv %s2852
    %v2884 = vmul.f32 %v2883, %v2881
    %v2885 = vmul.f32 %v2883, %v2882
    %v2886 = vadd.f32 %v2850, %v2884
    %v2887 = vadd.f32 %v2851, %v2885
    %s2888 = sld [smem:[#allocation4 + $0x49]]
    %v2889 = vld [vmem:[%s183 + $0x2] sm:$0xf]
    %v2890 = vstv %s2888
    %v2891 = vmul.f32 %v2890, %v2889
    %v2894 = vunpack.c.l.s4 1983009808
    %v2895 = vunpack.c.0.s8 %v2894
    %v2896 = vlaneseq
    %v2897 = vshrl.u32 %v2896, 7
    %v2898 = vsub.s32 %v2895, %v2897
    %v2899 = vrot.slane %v2891, %v2898
    %v2900 = vcombine.high %v2899, %v2899
    %v2903 = vadd.f32 %v2886, %v2899
    %v2904 = vadd.f32 %v2887, %v2900
    %s2905 = sld [smem:[#allocation4 + $0x4a]]
    %v2906 = vld [vmem:[%s183 + $0x2] sm:$0x3f]
    %v2908 = vcombine.high %v2906, %v2906
    %v2910 = vunpack.c.l.s4 1983009808
    %v2911 = vunpack.c.0.s8 %v2910
    %v2912 = vlaneseq
    %v2913 = vshrl.u32 %v2912, 7
    %v2914 = vsub.s32 %v2911, %v2913
    %v2915 = vrot.slane %v2906, %v2914
    %v2917 = vunpack.c.l.s4 1983009808
    %v2918 = vunpack.c.0.s8 %v2917
    %v2919 = vlaneseq
    %v2920 = vshrl.u32 %v2919, 7
    %v2921 = vsub.s32 %v2918, %v2920
    %v2922 = vrot.slane %v2908, %v2921
    %v2923 = vcombine.high %v2915, %v2915
    %2924 = vrot.lane.b32.xlu0 %v2915, 127
    %v2925 = vpop.permute.xlu0 %2924
    %2926 = vrot.lane.b32.xlu0 %v2923, 127
    %v2927 = vpop.permute.xlu0 %2926
    %2928 = vrot.lane.b32.xlu0 %v2922, 127
    %v2929 = vpop.permute.xlu0 %2928
    %v2930 = vsel %vm1179, %v2925, %v2927
    %v2931 = vsel %vm1179, %v2927, %v2929
    %v2934 = vsel %vm381, %v2930, 0.0
    %v2935 = vsel %vm382, %v2931, 0.0
    %v2936 = vstv %s2905
    %v2937 = vmul.f32 %v2936, %v2934
    %v2938 = vmul.f32 %v2936, %v2935
    %v2939 = vadd.f32 %v2903, %v2937
    %v2940 = vadd.f32 %v2904, %v2938
    %s2941 = sld [smem:[#allocation4 + $0x4b]]
    %v2942 = vld [vmem:[%s183 + $0x2] sm:$0x3f]
    %v2944 = vcombine.high %v2942, %v2942
    %v2946 = vunpack.c.l.s4 1983009808
    %v2947 = vunpack.c.0.s8 %v2946
    %v2948 = vlaneseq
    %v2949 = vshrl.u32 %v2948, 7
    %v2950 = vsub.s32 %v2947, %v2949
    %v2951 = vrot.slane %v2942, %v2950
    %v2953 = vunpack.c.l.s4 1983009808
    %v2954 = vunpack.c.0.s8 %v2953
    %v2955 = vlaneseq
    %v2956 = vshrl.u32 %v2955, 7
    %v2957 = vsub.s32 %v2954, %v2956
    %v2958 = vrot.slane %v2944, %v2957
    %v2959 = vcombine.high %v2951, %v2951
    %2960 = vrot.lane.b32.xlu0 %v2951, 126
    %v2961 = vpop.permute.xlu0 %2960
    %2962 = vrot.lane.b32.xlu0 %v2959, 126
    %v2963 = vpop.permute.xlu0 %2962
    %2964 = vrot.lane.b32.xlu0 %v2958, 126
    %v2965 = vpop.permute.xlu0 %2964
    %v2966 = vsel %vm1216, %v2961, %v2963
    %v2967 = vsel %vm1216, %v2963, %v2965
    %v2970 = vsel %vm429, %v2966, 0.0
    %v2971 = vsel %vm430, %v2967, 0.0
    %v2972 = vstv %s2941
    %v2973 = vmul.f32 %v2972, %v2970
    %v2974 = vmul.f32 %v2972, %v2971
    %v2975 = vadd.f32 %v2939, %v2973
    %v2976 = vadd.f32 %v2940, %v2974
    %s2977 = sld [smem:[#allocation4 + $0x4c]]
    %v2978 = vld [vmem:[%s183 + $0x2] sm:$0x3f]
    %v2980 = vcombine.high %v2978, %v2978
    %v2982 = vunpack.c.l.s4 1983009808
    %v2983 = vunpack.c.0.s8 %v2982
    %v2984 = vlaneseq
    %v2985 = vshrl.u32 %v2984, 7
    %v2986 = vsub.s32 %v2983, %v2985
    %v2987 = vrot.slane %v2978, %v2986
    %v2989 = vunpack.c.l.s4 1983009808
    %v2990 = vunpack.c.0.s8 %v2989
    %v2991 = vlaneseq
    %v2992 = vshrl.u32 %v2991, 7
    %v2993 = vsub.s32 %v2990, %v2992
    %v2994 = vrot.slane %v2980, %v2993
    %v2995 = vcombine.high %v2987, %v2987
    %2996 = vrot.lane.b32.xlu0 %v2987, 125
    %v2997 = vpop.permute.xlu0 %2996
    %2998 = vrot.lane.b32.xlu0 %v2995, 125
    %v2999 = vpop.permute.xlu0 %2998
    %3000 = vrot.lane.b32.xlu0 %v2994, 125
    %v3001 = vpop.permute.xlu0 %3000
    %v3002 = vsel %vm1253, %v2997, %v2999
    %v3003 = vsel %vm1253, %v2999, %v3001
    %v3006 = vsel %vm477, %v3002, 0.0
    %v3007 = vsel %vm478, %v3003, 0.0
    %v3008 = vstv %s2977
    %v3009 = vmul.f32 %v3008, %v3006
    %v3010 = vmul.f32 %v3008, %v3007
    %v3011 = vadd.f32 %v2975, %v3009
    %v3012 = vadd.f32 %v2976, %v3010
    %s3013 = sld [smem:[#allocation4 + $0x4d]]
    %v3014 = vld [vmem:[%s183 + $0x2] sm:$0x3f]
    %v3016 = vcombine.high %v3014, %v3014
    %v3018 = vunpack.c.l.s4 1983009808
    %v3019 = vunpack.c.0.s8 %v3018
    %v3020 = vlaneseq
    %v3021 = vshrl.u32 %v3020, 7
    %v3022 = vsub.s32 %v3019, %v3021
    %v3023 = vrot.slane %v3014, %v3022
    %v3025 = vunpack.c.l.s4 1983009808
    %v3026 = vunpack.c.0.s8 %v3025
    %v3027 = vlaneseq
    %v3028 = vshrl.u32 %v3027, 7
    %v3029 = vsub.s32 %v3026, %v3028
    %v3030 = vrot.slane %v3016, %v3029
    %v3031 = vcombine.high %v3023, %v3023
    %3032 = vrot.lane.b32.xlu0 %v3023, 115
    %v3033 = vpop.permute.xlu0 %3032
    %3034 = vrot.lane.b32.xlu0 %v3031, 115
    %v3035 = vpop.permute.xlu0 %3034
    %3036 = vrot.lane.b32.xlu0 %v3030, 115
    %v3037 = vpop.permute.xlu0 %3036
    %v3038 = vsel %vm1290, %v3033, %v3035
    %v3039 = vsel %vm1290, %v3035, %v3037
    %v3042 = vsel %vm203, %v3038, 0.0
    %v3043 = vsel %vm204, %v3039, 0.0
    %v3044 = vstv %s3013
    %v3045 = vmul.f32 %v3044, %v3042
    %v3046 = vmul.f32 %v3044, %v3043
    %v3047 = vadd.f32 %v3011, %v3045
    %v3048 = vadd.f32 %v3012, %v3046
    %s3049 = sld [smem:[#allocation4 + $0x4e]]
    %v3050 = vld [vmem:[%s183 + $0x2] sm:$0x3f]
    %v3052 = vcombine.high %v3050, %v3050
    %v3054 = vunpack.c.l.s4 1983009808
    %v3055 = vunpack.c.0.s8 %v3054
    %v3056 = vlaneseq
    %v3057 = vshrl.u32 %v3056, 7
    %v3058 = vsub.s32 %v3055, %v3057
    %v3059 = vrot.slane %v3050, %v3058
    %v3061 = vunpack.c.l.s4 1983009808
    %v3062 = vunpack.c.0.s8 %v3061
    %v3063 = vlaneseq
    %v3064 = vshrl.u32 %v3063, 7
    %v3065 = vsub.s32 %v3062, %v3064
    %v3066 = vrot.slane %v3052, %v3065
    %v3067 = vcombine.high %v3059, %v3059
    %3068 = vrot.lane.b32.xlu0 %v3059, 114
    %v3069 = vpop.permute.xlu0 %3068
    %3070 = vrot.lane.b32.xlu0 %v3067, 114
    %v3071 = vpop.permute.xlu0 %3070
    %3072 = vrot.lane.b32.xlu0 %v3066, 114
    %v3073 = vpop.permute.xlu0 %3072
    %v3074 = vsel %vm1327, %v3069, %v3071
    %v3075 = vsel %vm1327, %v3071, %v3073
    %v3078 = vsel %vm251, %v3074, 0.0
    %v3079 = vsel %vm252, %v3075, 0.0
    %v3080 = vstv %s3049
    %v3081 = vmul.f32 %v3080, %v3078
    %v3082 = vmul.f32 %v3080, %v3079
    %v3083 = vadd.f32 %v3047, %v3081
    %v3084 = vadd.f32 %v3048, %v3082
    %s3085 = sld [smem:[#allocation4 + $0x4f]]
    %v3086 = vld [vmem:[%s183 + $0x2] sm:$0x3f]
    %v3088 = vcombine.high %v3086, %v3086
    %v3090 = vunpack.c.l.s4 1983009808
    %v3091 = vunpack.c.0.s8 %v3090
    %v3092 = vlaneseq
    %v3093 = vshrl.u32 %v3092, 7
    %v3094 = vsub.s32 %v3091, %v3093
    %v3095 = vrot.slane %v3086, %v3094
    %v3097 = vunpack.c.l.s4 1983009808
    %v3098 = vunpack.c.0.s8 %v3097
    %v3099 = vlaneseq
    %v3100 = vshrl.u32 %v3099, 7
    %v3101 = vsub.s32 %v3098, %v3100
    %v3102 = vrot.slane %v3088, %v3101
    %v3103 = vcombine.high %v3095, %v3095
    %3104 = vrot.lane.b32.xlu0 %v3095, 113
    %v3105 = vpop.permute.xlu0 %3104
    %3106 = vrot.lane.b32.xlu0 %v3103, 113
    %v3107 = vpop.permute.xlu0 %3106
    %3108 = vrot.lane.b32.xlu0 %v3102, 113
    %v3109 = vpop.permute.xlu0 %3108
    %v3110 = vsel %vm1364, %v3105, %v3107
    %v3111 = vsel %vm1364, %v3107, %v3109
    %v3114 = vsel %vm299, %v3110, 0.0
    %v3115 = vsel %vm300, %v3111, 0.0
    %v3116 = vstv %s3085
    %v3117 = vmul.f32 %v3116, %v3114
    %v3118 = vmul.f32 %v3116, %v3115
    %v3119 = vadd.f32 %v3083, %v3117
    %v3120 = vadd.f32 %v3084, %v3118
    %s3121 = sld [smem:[#allocation4 + $0x50]]
    %v3122 = vld [vmem:[%s183 + $0x2] sm:$0x3f]
    %v3123 = vstv %s3121
    %v3124 = vmul.f32 %v3123, %v3122
    %v3126 = vcombine.high %v3124, %v3124
    %v3128 = vunpack.c.l.s4 1983009808
    %v3129 = vunpack.c.0.s8 %v3128
    %v3130 = vlaneseq
    %v3131 = vshrl.u32 %v3130, 7
    %v3132 = vsub.s32 %v3129, %v3131
    %v3133 = vrot.slane %v3124, %v3132
    %v3135 = vunpack.c.l.s4 1983009808
    %v3136 = vunpack.c.0.s8 %v3135
    %v3137 = vlaneseq
    %v3138 = vshrl.u32 %v3137, 7
    %v3139 = vsub.s32 %v3136, %v3138
    %v3140 = vrot.slane %v3126, %v3139
    %v3141 = vcombine.high %v3133, %v3133
    %3142 = vrot.lane.b32.xlu0 %v3133, 112
    %v3143 = vpop.permute.xlu0 %3142
    %3144 = vrot.lane.b32.xlu0 %v3141, 112
    %v3145 = vpop.permute.xlu0 %3144
    %3146 = vrot.lane.b32.xlu0 %v3140, 112
    %v3147 = vpop.permute.xlu0 %3146
    %v3148 = vsel %vm1403, %v3143, %v3145
    %v3149 = vsel %vm1403, %v3145, %v3147
    %v3152 = vadd.f32 %v3119, %v3148
    %v3153 = vadd.f32 %v3120, %v3149
    %s3154 = sld [smem:[#allocation4 + $0x51]]
    %v3155 = vld [vmem:[%s183 + $0x2] sm:$0x3f]
    %v3157 = vcombine.high %v3155, %v3155
    %v3159 = vunpack.c.l.s4 1983009808
    %v3160 = vunpack.c.0.s8 %v3159
    %v3161 = vlaneseq
    %v3162 = vshrl.u32 %v3161, 7
    %v3163 = vsub.s32 %v3160, %v3162
    %v3164 = vrot.slane %v3155, %v3163
    %v3166 = vunpack.c.l.s4 1983009808
    %v3167 = vunpack.c.0.s8 %v3166
    %v3168 = vlaneseq
    %v3169 = vshrl.u32 %v3168, 7
    %v3170 = vsub.s32 %v3167, %v3169
    %v3171 = vrot.slane %v3157, %v3170
    %v3172 = vcombine.high %v3164, %v3164
    %3173 = vrot.lane.b32.xlu0 %v3164, 111
    %v3174 = vpop.permute.xlu0 %3173
    %3175 = vrot.lane.b32.xlu0 %v3172, 111
    %v3176 = vpop.permute.xlu0 %3175
    %3177 = vrot.lane.b32.xlu0 %v3171, 111
    %v3178 = vpop.permute.xlu0 %3177
    %v3179 = vsel %vm1435, %v3174, %v3176
    %v3180 = vsel %vm1435, %v3176, %v3178
    %v3183 = vsel %vm381, %v3179, 0.0
    %v3184 = vsel %vm382, %v3180, 0.0
    %v3185 = vstv %s3154
    %v3186 = vmul.f32 %v3185, %v3183
    %v3187 = vmul.f32 %v3185, %v3184
    %v3188 = vadd.f32 %v3152, %v3186
    %v3189 = vadd.f32 %v3153, %v3187
    %s3190 = sld [smem:[#allocation4 + $0x52]]
    %v3191 = vld [vmem:[%s183 + $0x2] sm:$0x3f]
    %v3193 = vcombine.high %v3191, %v3191
    %v3195 = vunpack.c.l.s4 1983009808
    %v3196 = vunpack.c.0.s8 %v3195
    %v3197 = vlaneseq
    %v3198 = vshrl.u32 %v3197, 7
    %v3199 = vsub.s32 %v3196, %v3198
    %v3200 = vrot.slane %v3191, %v3199
    %v3202 = vunpack.c.l.s4 1983009808
    %v3203 = vunpack.c.0.s8 %v3202
    %v3204 = vlaneseq
    %v3205 = vshrl.u32 %v3204, 7
    %v3206 = vsub.s32 %v3203, %v3205
    %v3207 = vrot.slane %v3193, %v3206
    %v3208 = vcombine.high %v3200, %v3200
    %3209 = vrot.lane.b32.xlu0 %v3200, 110
    %v3210 = vpop.permute.xlu0 %3209
    %3211 = vrot.lane.b32.xlu0 %v3208, 110
    %v3212 = vpop.permute.xlu0 %3211
    %3213 = vrot.lane.b32.xlu0 %v3207, 110
    %v3214 = vpop.permute.xlu0 %3213
    %v3215 = vsel %vm1472, %v3210, %v3212
    %v3216 = vsel %vm1472, %v3212, %v3214
    %v3219 = vsel %vm429, %v3215, 0.0
    %v3220 = vsel %vm430, %v3216, 0.0
    %v3221 = vstv %s3190
    %v3222 = vmul.f32 %v3221, %v3219
    %v3223 = vmul.f32 %v3221, %v3220
    %v3224 = vadd.f32 %v3188, %v3222
    %v3225 = vadd.f32 %v3189, %v3223
    %s3226 = sld [smem:[#allocation4 + $0x53]]
    %v3227 = vld [vmem:[%s183 + $0x2] sm:$0x3f]
    %v3229 = vcombine.high %v3227, %v3227
    %v3231 = vunpack.c.l.s4 1983009808
    %v3232 = vunpack.c.0.s8 %v3231
    %v3233 = vlaneseq
    %v3234 = vshrl.u32 %v3233, 7
    %v3235 = vsub.s32 %v3232, %v3234
    %v3236 = vrot.slane %v3227, %v3235
    %v3238 = vunpack.c.l.s4 1983009808
    %v3239 = vunpack.c.0.s8 %v3238
    %v3240 = vlaneseq
    %v3241 = vshrl.u32 %v3240, 7
    %v3242 = vsub.s32 %v3239, %v3241
    %v3243 = vrot.slane %v3229, %v3242
    %v3244 = vcombine.high %v3236, %v3236
    %3245 = vrot.lane.b32.xlu0 %v3236, 109
    %v3246 = vpop.permute.xlu0 %3245
    %3247 = vrot.lane.b32.xlu0 %v3244, 109
    %v3248 = vpop.permute.xlu0 %3247
    %3249 = vrot.lane.b32.xlu0 %v3243, 109
    %v3250 = vpop.permute.xlu0 %3249
    %v3251 = vsel %vm1509, %v3246, %v3248
    %v3252 = vsel %vm1509, %v3248, %v3250
    %v3255 = vsel %vm477, %v3251, 0.0
    %v3256 = vsel %vm478, %v3252, 0.0
    %v3257 = vstv %s3226
    %v3258 = vmul.f32 %v3257, %v3255
    %v3259 = vmul.f32 %v3257, %v3256
    %v3260 = vadd.f32 %v3224, %v3258
    %v3261 = vadd.f32 %v3225, %v3259
    %s3262 = sld [smem:[#allocation4 + $0x54]]
    %v3263 = vld [vmem:[%s183 + $0x2] sm:$0x3f]
    %v3265 = vcombine.high %v3263, %v3263
    %v3267 = vunpack.c.l.s4 1983009808
    %v3268 = vunpack.c.0.s8 %v3267
    %v3269 = vlaneseq
    %v3270 = vshrl.u32 %v3269, 7
    %v3271 = vsub.s32 %v3268, %v3270
    %v3272 = vrot.slane %v3263, %v3271
    %v3274 = vunpack.c.l.s4 1983009808
    %v3275 = vunpack.c.0.s8 %v3274
    %v3276 = vlaneseq
    %v3277 = vshrl.u32 %v3276, 7
    %v3278 = vsub.s32 %v3275, %v3277
    %v3279 = vrot.slane %v3265, %v3278
    %v3280 = vcombine.high %v3272, %v3272
    %3281 = vrot.lane.b32.xlu0 %v3272, 99
    %v3282 = vpop.permute.xlu0 %3281
    %3283 = vrot.lane.b32.xlu0 %v3280, 99
    %v3284 = vpop.permute.xlu0 %3283
    %3285 = vrot.lane.b32.xlu0 %v3279, 99
    %v3286 = vpop.permute.xlu0 %3285
    %v3287 = vsel %vm1546, %v3282, %v3284
    %v3288 = vsel %vm1546, %v3284, %v3286
    %v3291 = vsel %vm203, %v3287, 0.0
    %v3292 = vsel %vm204, %v3288, 0.0
    %v3293 = vstv %s3262
    %v3294 = vmul.f32 %v3293, %v3291
    %v3295 = vmul.f32 %v3293, %v3292
    %v3296 = vadd.f32 %v3260, %v3294
    %v3297 = vadd.f32 %v3261, %v3295
    %s3298 = sld [smem:[#allocation4 + $0x55]]
    %v3299 = vld [vmem:[%s183 + $0x2] sm:$0x3f]
    %v3301 = vcombine.high %v3299, %v3299
    %v3303 = vunpack.c.l.s4 1983009808
    %v3304 = vunpack.c.0.s8 %v3303
    %v3305 = vlaneseq
    %v3306 = vshrl.u32 %v3305, 7
    %v3307 = vsub.s32 %v3304, %v3306
    %v3308 = vrot.slane %v3299, %v3307
    %v3310 = vunpack.c.l.s4 1983009808
    %v3311 = vunpack.c.0.s8 %v3310
    %v3312 = vlaneseq
    %v3313 = vshrl.u32 %v3312, 7
    %v3314 = vsub.s32 %v3311, %v3313
    %v3315 = vrot.slane %v3301, %v3314
    %v3316 = vcombine.high %v3308, %v3308
    %3317 = vrot.lane.b32.xlu0 %v3308, 98
    %v3318 = vpop.permute.xlu0 %3317
    %3319 = vrot.lane.b32.xlu0 %v3316, 98
    %v3320 = vpop.permute.xlu0 %3319
    %3321 = vrot.lane.b32.xlu0 %v3315, 98
    %v3322 = vpop.permute.xlu0 %3321
    %v3323 = vsel %vm1583, %v3318, %v3320
    %v3324 = vsel %vm1583, %v3320, %v3322
    %v3327 = vsel %vm251, %v3323, 0.0
    %v3328 = vsel %vm252, %v3324, 0.0
    %v3329 = vstv %s3298
    %v3330 = vmul.f32 %v3329, %v3327
    %v3331 = vmul.f32 %v3329, %v3328
    %v3332 = vadd.f32 %v3296, %v3330
    %v3333 = vadd.f32 %v3297, %v3331
    %s3334 = sld [smem:[#allocation4 + $0x56]]
    %v3335 = vld [vmem:[%s183 + $0x2] sm:$0x3f]
    %v3337 = vcombine.high %v3335, %v3335
    %v3339 = vunpack.c.l.s4 1983009808
    %v3340 = vunpack.c.0.s8 %v3339
    %v3341 = vlaneseq
    %v3342 = vshrl.u32 %v3341, 7
    %v3343 = vsub.s32 %v3340, %v3342
    %v3344 = vrot.slane %v3335, %v3343
    %v3346 = vunpack.c.l.s4 1983009808
    %v3347 = vunpack.c.0.s8 %v3346
    %v3348 = vlaneseq
    %v3349 = vshrl.u32 %v3348, 7
    %v3350 = vsub.s32 %v3347, %v3349
    %v3351 = vrot.slane %v3337, %v3350
    %v3352 = vcombine.high %v3344, %v3344
    %3353 = vrot.lane.b32.xlu0 %v3344, 97
    %v3354 = vpop.permute.xlu0 %3353
    %3355 = vrot.lane.b32.xlu0 %v3352, 97
    %v3356 = vpop.permute.xlu0 %3355
    %3357 = vrot.lane.b32.xlu0 %v3351, 97
    %v3358 = vpop.permute.xlu0 %3357
    %v3359 = vsel %vm1620, %v3354, %v3356
    %v3360 = vsel %vm1620, %v3356, %v3358
    %v3363 = vsel %vm299, %v3359, 0.0
    %v3364 = vsel %vm300, %v3360, 0.0
    %v3365 = vstv %s3334
    %v3366 = vmul.f32 %v3365, %v3363
    %v3367 = vmul.f32 %v3365, %v3364
    %v3368 = vadd.f32 %v3332, %v3366
    %v3369 = vadd.f32 %v3333, %v3367
    %s3370 = sld [smem:[#allocation4 + $0x57]]
    %v3371 = vld [vmem:[%s183 + $0x2] sm:$0x3f]
    %v3372 = vstv %s3370
    %v3373 = vmul.f32 %v3372, %v3371
    %v3375 = vcombine.high %v3373, %v3373
    %v3377 = vunpack.c.l.s4 1983009808
    %v3378 = vunpack.c.0.s8 %v3377
    %v3379 = vlaneseq
    %v3380 = vshrl.u32 %v3379, 7
    %v3381 = vsub.s32 %v3378, %v3380
    %v3382 = vrot.slane %v3373, %v3381
    %v3384 = vunpack.c.l.s4 1983009808
    %v3385 = vunpack.c.0.s8 %v3384
    %v3386 = vlaneseq
    %v3387 = vshrl.u32 %v3386, 7
    %v3388 = vsub.s32 %v3385, %v3387
    %v3389 = vrot.slane %v3375, %v3388
    %v3390 = vcombine.high %v3382, %v3382
    %3391 = vrot.lane.b32.xlu0 %v3382, 96
    %v3392 = vpop.permute.xlu0 %3391
    %3393 = vrot.lane.b32.xlu0 %v3390, 96
    %v3394 = vpop.permute.xlu0 %3393
    %3395 = vrot.lane.b32.xlu0 %v3389, 96
    %v3396 = vpop.permute.xlu0 %3395
    %v3397 = vsel %vm1659, %v3392, %v3394
    %v3398 = vsel %vm1659, %v3394, %v3396
    %v3401 = vadd.f32 %v3368, %v3397
    %v3402 = vadd.f32 %v3369, %v3398
    %s3403 = sld [smem:[#allocation4 + $0x58]]
    %v3404 = vld [vmem:[%s183 + $0x2] sm:$0x3f]
    %v3406 = vcombine.high %v3404, %v3404
    %v3408 = vunpack.c.l.s4 1983009808
    %v3409 = vunpack.c.0.s8 %v3408
    %v3410 = vlaneseq
    %v3411 = vshrl.u32 %v3410, 7
    %v3412 = vsub.s32 %v3409, %v3411
    %v3413 = vrot.slane %v3404, %v3412
    %v3415 = vunpack.c.l.s4 1983009808
    %v3416 = vunpack.c.0.s8 %v3415
    %v3417 = vlaneseq
    %v3418 = vshrl.u32 %v3417, 7
    %v3419 = vsub.s32 %v3416, %v3418
    %v3420 = vrot.slane %v3406, %v3419
    %v3421 = vcombine.high %v3413, %v3413
    %3422 = vrot.lane.b32.xlu0 %v3413, 95
    %v3423 = vpop.permute.xlu0 %3422
    %3424 = vrot.lane.b32.xlu0 %v3421, 95
    %v3425 = vpop.permute.xlu0 %3424
    %3426 = vrot.lane.b32.xlu0 %v3420, 95
    %v3427 = vpop.permute.xlu0 %3426
    %v3428 = vsel %vm1691, %v3423, %v3425
    %v3429 = vsel %vm1691, %v3425, %v3427
    %v3432 = vsel %vm381, %v3428, 0.0
    %v3433 = vsel %vm382, %v3429, 0.0
    %v3434 = vstv %s3403
    %v3435 = vmul.f32 %v3434, %v3432
    %v3436 = vmul.f32 %v3434, %v3433
    %v3437 = vadd.f32 %v3401, %v3435
    %v3438 = vadd.f32 %v3402, %v3436
    %s3439 = sld [smem:[#allocation4 + $0x59]]
    %v3440 = vld [vmem:[%s183 + $0x2] sm:$0x3f]
    %v3442 = vcombine.high %v3440, %v3440
    %v3444 = vunpack.c.l.s4 1983009808
    %v3445 = vunpack.c.0.s8 %v3444
    %v3446 = vlaneseq
    %v3447 = vshrl.u32 %v3446, 7
    %v3448 = vsub.s32 %v3445, %v3447
    %v3449 = vrot.slane %v3440, %v3448
    %v3451 = vunpack.c.l.s4 1983009808
    %v3452 = vunpack.c.0.s8 %v3451
    %v3453 = vlaneseq
    %v3454 = vshrl.u32 %v3453, 7
    %v3455 = vsub.s32 %v3452, %v3454
    %v3456 = vrot.slane %v3442, %v3455
    %v3457 = vcombine.high %v3449, %v3449
    %3458 = vrot.lane.b32.xlu0 %v3449, 94
    %v3459 = vpop.permute.xlu0 %3458
    %3460 = vrot.lane.b32.xlu0 %v3457, 94
    %v3461 = vpop.permute.xlu0 %3460
    %3462 = vrot.lane.b32.xlu0 %v3456, 94
    %v3463 = vpop.permute.xlu0 %3462
    %v3464 = vsel %vm1728, %v3459, %v3461
    %v3465 = vsel %vm1728, %v3461, %v3463
    %v3468 = vsel %vm429, %v3464, 0.0
    %v3469 = vsel %vm430, %v3465, 0.0
    %v3470 = vstv %s3439
    %v3471 = vmul.f32 %v3470, %v3468
    %v3472 = vmul.f32 %v3470, %v3469
    %v3473 = vadd.f32 %v3437, %v3471
    %v3474 = vadd.f32 %v3438, %v3472
    %s3475 = sld [smem:[#allocation4 + $0x5a]]
    %v3476 = vld [vmem:[%s183 + $0x2] sm:$0x3f]
    %v3478 = vcombine.high %v3476, %v3476
    %v3480 = vunpack.c.l.s4 1983009808
    %v3481 = vunpack.c.0.s8 %v3480
    %v3482 = vlaneseq
    %v3483 = vshrl.u32 %v3482, 7
    %v3484 = vsub.s32 %v3481, %v3483
    %v3485 = vrot.slane %v3476, %v3484
    %v3487 = vunpack.c.l.s4 1983009808
    %v3488 = vunpack.c.0.s8 %v3487
    %v3489 = vlaneseq
    %v3490 = vshrl.u32 %v3489, 7
    %v3491 = vsub.s32 %v3488, %v3490
    %v3492 = vrot.slane %v3478, %v3491
    %v3493 = vcombine.high %v3485, %v3485
    %3494 = vrot.lane.b32.xlu0 %v3485, 93
    %v3495 = vpop.permute.xlu0 %3494
    %3496 = vrot.lane.b32.xlu0 %v3493, 93
    %v3497 = vpop.permute.xlu0 %3496
    %3498 = vrot.lane.b32.xlu0 %v3492, 93
    %v3499 = vpop.permute.xlu0 %3498
    %v3500 = vsel %vm1765, %v3495, %v3497
    %v3501 = vsel %vm1765, %v3497, %v3499
    %v3504 = vsel %vm477, %v3500, 0.0
    %v3505 = vsel %vm478, %v3501, 0.0
    %v3506 = vstv %s3475
    %v3507 = vmul.f32 %v3506, %v3504
    %v3508 = vmul.f32 %v3506, %v3505
    %v3509 = vadd.f32 %v3473, %v3507
    %v3510 = vadd.f32 %v3474, %v3508
    %s3511 = sld [smem:[#allocation4 + $0x5b]]
    %v3512 = vld [vmem:[%s183 + $0x2] sm:$0x3f]
    %v3514 = vcombine.high %v3512, %v3512
    %v3516 = vunpack.c.l.s4 1983009808
    %v3517 = vunpack.c.0.s8 %v3516
    %v3518 = vlaneseq
    %v3519 = vshrl.u32 %v3518, 7
    %v3520 = vsub.s32 %v3517, %v3519
    %v3521 = vrot.slane %v3512, %v3520
    %v3523 = vunpack.c.l.s4 1983009808
    %v3524 = vunpack.c.0.s8 %v3523
    %v3525 = vlaneseq
    %v3526 = vshrl.u32 %v3525, 7
    %v3527 = vsub.s32 %v3524, %v3526
    %v3528 = vrot.slane %v3514, %v3527
    %v3529 = vcombine.high %v3521, %v3521
    %3530 = vrot.lane.b32.xlu0 %v3521, 83
    %v3531 = vpop.permute.xlu0 %3530
    %3532 = vrot.lane.b32.xlu0 %v3529, 83
    %v3533 = vpop.permute.xlu0 %3532
    %3534 = vrot.lane.b32.xlu0 %v3528, 83
    %v3535 = vpop.permute.xlu0 %3534
    %v3536 = vsel %vm1802, %v3531, %v3533
    %v3537 = vsel %vm1802, %v3533, %v3535
    %v3540 = vsel %vm203, %v3536, 0.0
    %v3541 = vsel %vm204, %v3537, 0.0
    %v3542 = vstv %s3511
    %v3543 = vmul.f32 %v3542, %v3540
    %v3544 = vmul.f32 %v3542, %v3541
    %v3545 = vadd.f32 %v3509, %v3543
    %v3546 = vadd.f32 %v3510, %v3544
    %s3547 = sld [smem:[#allocation4 + $0x5c]]
    %v3548 = vld [vmem:[%s183 + $0x2] sm:$0x3f]
    %v3550 = vcombine.high %v3548, %v3548
    %v3552 = vunpack.c.l.s4 1983009808
    %v3553 = vunpack.c.0.s8 %v3552
    %v3554 = vlaneseq
    %v3555 = vshrl.u32 %v3554, 7
    %v3556 = vsub.s32 %v3553, %v3555
    %v3557 = vrot.slane %v3548, %v3556
    %v3559 = vunpack.c.l.s4 1983009808
    %v3560 = vunpack.c.0.s8 %v3559
    %v3561 = vlaneseq
    %v3562 = vshrl.u32 %v3561, 7
    %v3563 = vsub.s32 %v3560, %v3562
    %v3564 = vrot.slane %v3550, %v3563
    %v3565 = vcombine.high %v3557, %v3557
    %3566 = vrot.lane.b32.xlu0 %v3557, 82
    %v3567 = vpop.permute.xlu0 %3566
    %3568 = vrot.lane.b32.xlu0 %v3565, 82
    %v3569 = vpop.permute.xlu0 %3568
    %3570 = vrot.lane.b32.xlu0 %v3564, 82
    %v3571 = vpop.permute.xlu0 %3570
    %v3572 = vsel %vm1839, %v3567, %v3569
    %v3573 = vsel %vm1839, %v3569, %v3571
    %v3576 = vsel %vm251, %v3572, 0.0
    %v3577 = vsel %vm252, %v3573, 0.0
    %v3578 = vstv %s3547
    %v3579 = vmul.f32 %v3578, %v3576
    %v3580 = vmul.f32 %v3578, %v3577
    %v3581 = vadd.f32 %v3545, %v3579
    %v3582 = vadd.f32 %v3546, %v3580
    %s3583 = sld [smem:[#allocation4 + $0x5d]]
    %v3584 = vld [vmem:[%s183 + $0x2] sm:$0x3f]
    %v3586 = vcombine.high %v3584, %v3584
    %v3588 = vunpack.c.l.s4 1983009808
    %v3589 = vunpack.c.0.s8 %v3588
    %v3590 = vlaneseq
    %v3591 = vshrl.u32 %v3590, 7
    %v3592 = vsub.s32 %v3589, %v3591
    %v3593 = vrot.slane %v3584, %v3592
    %v3595 = vunpack.c.l.s4 1983009808
    %v3596 = vunpack.c.0.s8 %v3595
    %v3597 = vlaneseq
    %v3598 = vshrl.u32 %v3597, 7
    %v3599 = vsub.s32 %v3596, %v3598
    %v3600 = vrot.slane %v3586, %v3599
    %v3601 = vcombine.high %v3593, %v3593
    %3602 = vrot.lane.b32.xlu0 %v3593, 81
    %v3603 = vpop.permute.xlu0 %3602
    %3604 = vrot.lane.b32.xlu0 %v3601, 81
    %v3605 = vpop.permute.xlu0 %3604
    %3606 = vrot.lane.b32.xlu0 %v3600, 81
    %v3607 = vpop.permute.xlu0 %3606
    %v3608 = vsel %vm1876, %v3603, %v3605
    %v3609 = vsel %vm1876, %v3605, %v3607
    %v3612 = vsel %vm299, %v3608, 0.0
    %v3613 = vsel %vm300, %v3609, 0.0
    %v3614 = vstv %s3583
    %v3615 = vmul.f32 %v3614, %v3612
    %v3616 = vmul.f32 %v3614, %v3613
    %v3617 = vadd.f32 %v3581, %v3615
    %v3618 = vadd.f32 %v3582, %v3616
    %s3619 = sld [smem:[#allocation4 + $0x5e]]
    %v3620 = vld [vmem:[%s183 + $0x2] sm:$0x3f]
    %v3621 = vstv %s3619
    %v3622 = vmul.f32 %v3621, %v3620
    %v3624 = vcombine.high %v3622, %v3622
    %v3626 = vunpack.c.l.s4 1983009808
    %v3627 = vunpack.c.0.s8 %v3626
    %v3628 = vlaneseq
    %v3629 = vshrl.u32 %v3628, 7
    %v3630 = vsub.s32 %v3627, %v3629
    %v3631 = vrot.slane %v3622, %v3630
    %v3633 = vunpack.c.l.s4 1983009808
    %v3634 = vunpack.c.0.s8 %v3633
    %v3635 = vlaneseq
    %v3636 = vshrl.u32 %v3635, 7
    %v3637 = vsub.s32 %v3634, %v3636
    %v3638 = vrot.slane %v3624, %v3637
    %v3639 = vcombine.high %v3631, %v3631
    %3640 = vrot.lane.b32.xlu0 %v3631, 80
    %v3641 = vpop.permute.xlu0 %3640
    %3642 = vrot.lane.b32.xlu0 %v3639, 80
    %v3643 = vpop.permute.xlu0 %3642
    %3644 = vrot.lane.b32.xlu0 %v3638, 80
    %v3645 = vpop.permute.xlu0 %3644
    %v3646 = vsel %vm1915, %v3641, %v3643
    %v3647 = vsel %vm1915, %v3643, %v3645
    %v3650 = vadd.f32 %v3617, %v3646
    %v3651 = vadd.f32 %v3618, %v3647
    %s3652 = sld [smem:[#allocation4 + $0x5f]]
    %v3653 = vld [vmem:[%s183 + $0x2] sm:$0x3f]
    %v3655 = vcombine.high %v3653, %v3653
    %v3657 = vunpack.c.l.s4 1983009808
    %v3658 = vunpack.c.0.s8 %v3657
    %v3659 = vlaneseq
    %v3660 = vshrl.u32 %v3659, 7
    %v3661 = vsub.s32 %v3658, %v3660
    %v3662 = vrot.slane %v3653, %v3661
    %v3664 = vunpack.c.l.s4 1983009808
    %v3665 = vunpack.c.0.s8 %v3664
    %v3666 = vlaneseq
    %v3667 = vshrl.u32 %v3666, 7
    %v3668 = vsub.s32 %v3665, %v3667
    %v3669 = vrot.slane %v3655, %v3668
    %v3670 = vcombine.high %v3662, %v3662
    %3671 = vrot.lane.b32.xlu0 %v3662, 79
    %v3672 = vpop.permute.xlu0 %3671
    %3673 = vrot.lane.b32.xlu0 %v3670, 79
    %v3674 = vpop.permute.xlu0 %3673
    %3675 = vrot.lane.b32.xlu0 %v3669, 79
    %v3676 = vpop.permute.xlu0 %3675
    %v3677 = vsel %vm1947, %v3672, %v3674
    %v3678 = vsel %vm1947, %v3674, %v3676
    %v3681 = vsel %vm381, %v3677, 0.0
    %v3682 = vsel %vm382, %v3678, 0.0
    %v3683 = vstv %s3652
    %v3684 = vmul.f32 %v3683, %v3681
    %v3685 = vmul.f32 %v3683, %v3682
    %v3686 = vadd.f32 %v3650, %v3684
    %v3687 = vadd.f32 %v3651, %v3685
    %s3688 = sld [smem:[#allocation4 + $0x60]]
    %v3689 = vld [vmem:[%s183 + $0x2] sm:$0x3f]
    %v3691 = vcombine.high %v3689, %v3689
    %v3693 = vunpack.c.l.s4 1983009808
    %v3694 = vunpack.c.0.s8 %v3693
    %v3695 = vlaneseq
    %v3696 = vshrl.u32 %v3695, 7
    %v3697 = vsub.s32 %v3694, %v3696
    %v3698 = vrot.slane %v3689, %v3697
    %v3700 = vunpack.c.l.s4 1983009808
    %v3701 = vunpack.c.0.s8 %v3700
    %v3702 = vlaneseq
    %v3703 = vshrl.u32 %v3702, 7
    %v3704 = vsub.s32 %v3701, %v3703
    %v3705 = vrot.slane %v3691, %v3704
    %v3706 = vcombine.high %v3698, %v3698
    %3707 = vrot.lane.b32.xlu0 %v3698, 78
    %v3708 = vpop.permute.xlu0 %3707
    %3709 = vrot.lane.b32.xlu0 %v3706, 78
    %v3710 = vpop.permute.xlu0 %3709
    %3711 = vrot.lane.b32.xlu0 %v3705, 78
    %v3712 = vpop.permute.xlu0 %3711
    %v3713 = vsel %vm1984, %v3708, %v3710
    %v3714 = vsel %vm1984, %v3710, %v3712
    %v3717 = vsel %vm429, %v3713, 0.0
    %v3718 = vsel %vm430, %v3714, 0.0
    %v3719 = vstv %s3688
    %v3720 = vmul.f32 %v3719, %v3717
    %v3721 = vmul.f32 %v3719, %v3718
    %v3722 = vadd.f32 %v3686, %v3720
    %v3723 = vadd.f32 %v3687, %v3721
    %s3724 = sld [smem:[#allocation4 + $0x61]]
    %v3725 = vld [vmem:[%s183 + $0x2] sm:$0x3f]
    %v3727 = vcombine.high %v3725, %v3725
    %v3729 = vunpack.c.l.s4 1983009808
    %v3730 = vunpack.c.0.s8 %v3729
    %v3731 = vlaneseq
    %v3732 = vshrl.u32 %v3731, 7
    %v3733 = vsub.s32 %v3730, %v3732
    %v3734 = vrot.slane %v3725, %v3733
    %v3736 = vunpack.c.l.s4 1983009808
    %v3737 = vunpack.c.0.s8 %v3736
    %v3738 = vlaneseq
    %v3739 = vshrl.u32 %v3738, 7
    %v3740 = vsub.s32 %v3737, %v3739
    %v3741 = vrot.slane %v3727, %v3740
    %v3742 = vcombine.high %v3734, %v3734
    %3743 = vrot.lane.b32.xlu0 %v3734, 77
    %v3744 = vpop.permute.xlu0 %3743
    %3745 = vrot.lane.b32.xlu0 %v3742, 77
    %v3746 = vpop.permute.xlu0 %3745
    %3747 = vrot.lane.b32.xlu0 %v3741, 77
    %v3748 = vpop.permute.xlu0 %3747
    %v3749 = vsel %vm2021, %v3744, %v3746
    %v3750 = vsel %vm2021, %v3746, %v3748
    %v3753 = vsel %vm477, %v3749, 0.0
    %v3754 = vsel %vm478, %v3750, 0.0
    %v3755 = vstv %s3724
    %v3756 = vmul.f32 %v3755, %v3753
    %v3757 = vmul.f32 %v3755, %v3754
    %v3758 = vadd.f32 %v3722, %v3756
    %v3759 = vadd.f32 %v3723, %v3757
    %s3760 = sld [smem:[#allocation3]]
    %v3761 = vstv %s3760
    %v3762 = vadd.f32 %v3758, %v3761
    %v3763 = vadd.f32 %v3759, %v3761
    %v3764 = vxor.u32 %v3762, 2147483648
    %v3765 = vxor.u32 %v3763, 2147483648
    %v3766 = vmul.f32 %v3764, 1.442695
    %v3767 = vpow.pop %v3766
    %v3768 = vmul.f32 %v3765, 1.442695
    %v3769 = vpow.pop %v3768
    %v3770 = vadd.f32 %v3767, 1.0
    %v3771 = vadd.f32 %v3769, 1.0
    %v3772 = vrcp.pop %v3770
    %v3773 = vmul.f32 1.0, %v3772
    %v3774 = vrcp.pop %v3771
    %v3775 = vmul.f32 1.0, %v3774
    %v3778 = vcombine.low %v3773, %v3775
    %v3780 = vunpack.c.l.s4 1966171168
    %v3781 = vunpack.c.0.s8 %v3780
    %v3782 = vlaneseq
    %v3783 = vshrl.u32 %v3782, 7
    %v3784 = vsub.s32 %v3781, %v3783
    %v3785 = vrot.slane %v3778, %v3784
    %v3786 = vcombine.high %v3785, %v3785
    %v3788 = vunpack.c.l.s4 1966171168
    %v3789 = vunpack.c.0.s8 %v3788
    %v3790 = vlaneseq
    %v3791 = vshrl.u32 %v3790, 7
    %v3792 = vsub.s32 %v3789, %v3791
    %v3793 = vrot.slane %v3785, %v3792
    %v3795 = vunpack.c.l.s4 1966171168
    %v3796 = vunpack.c.0.s8 %v3795
    %v3797 = vlaneseq
    %v3798 = vshrl.u32 %v3797, 7
    %v3799 = vsub.s32 %v3796, %v3798
    %v3800 = vrot.slane %v3786, %v3799
    %v3801 = vlaneseq
    %v3802 = vshrl.u32 %v3801, 7
    %v3803 = vsub.s32 0, %v3802
    %v3804 = vrot.slane %v3793, %v3803
    %v3805 = vlaneseq
    %v3806 = vshrl.u32 %v3805, 7
    %v3807 = vsub.s32 1, %v3806
    %v3808 = vrot.slane %v3793, %v3807
    %v3809 = vlaneseq
    %v3810 = vshrl.u32 %v3809, 7
    %v3811 = vsub.s32 0, %v3810
    %v3812 = vrot.slane %v3800, %v3811
    %v3813 = vlaneseq
    %v3814 = vshrl.u32 %v3813, 7
    %v3815 = vsub.s32 1, %v3814
    %v3816 = vrot.slane %v3800, %v3815
    %v3817 = vcombine.low %v3804, %v3808
    %v3818 = vcombine.low %v3812, %v3816
    %v3821 = vmul.f32 %v46, %v3817
    %v3822 = vmul.f32 %v47, %v3818
    %3823 = vst [vmem:[#allocation9] sm:$0xff] %v3821
    %3824 = vst [vmem:[#allocation9 + $0x8] sm:$0xff] %v3822
    // Predicated region
    $region26: #{tpu_custom_call.1} parent=1 // pred_check
      _
    $region27: #{tpu_custom_call.1} parent=1 // pred_check_branch
      %3826 = sbr.rel (0) target = $region29
    $region28: #{tpu_custom_call.1} parent=1 // pred_region
      %s3828 = ssub.s32 256, 256
      %3829 = vsyncadd [#allocation6], %s3828
      %s3830 = sshll.u32 [#allocation9], 4
      %s3831 = int_to_ptr.vmem [resolvable:$true] %s3830
      %3836 = dma.vmem_to_hbm [thread:$0]  %s3831, 256, %s4, [#allocation6], 128, 128, 8
    $region29: #{tpu_custom_call.1} parent=1 // pred_fallthru
      _
    // Predicated region
    $region30: #{tpu_custom_call.1} parent=1 // pred_check
      _
    $region31: #{tpu_custom_call.1} parent=1 // pred_check_branch
      %3838 = sbr.rel (0) target = $region33
    $region32: #{tpu_custom_call.1} parent=1 // pred_region
      %3839 = dma.done [#allocation6], 256
    $region33: #{tpu_custom_call.1} parent=1 // pred_fallthru
      _
    %3840 = vsyncpa [#allocation5], 1
    %3841 = vsyncpa [#allocation6], 1
    %3842 = vsyncpa [#allocation7], 1

</llo_original>
